<compile_context>
chip_gen: v7x
topology: tpu7x:2x2x1
jax: 0.10.0
libtpu: 0.0.40
codegen_flags: <defaults>
</compile_context>

<pallas_src>
import functools
import math

import jax
import jax.numpy as jnp
from jax.experimental import pallas as pl
from jax.experimental.pallas import tpu as pltpu

# ----------------------------- constants ------------------------------------
IMG_MEAN = jnp.asarray([0.485, 0.456, 0.406], jnp.float32)   # torchvision transform
IMG_STD = jnp.asarray([0.229, 0.224, 0.225], jnp.float32)
NUM_CLASSES = 91                                             # COCO classes
NUM_ANCHORS = 3
ANCHOR_SIZES = (8.0, 16.0, 32.0)
FEAT_STRIDE = 4                                              # two stride-2 convs
TOPK = 16                                                    # proposals kept per image
SCORE_THRESH = 0.6
INTERESTED_IDS = (3, 6, 8)
BBOX_XFORM_CLIP = math.log(1000.0 / 16.0)                    # torchvision dw/dh clamp

C1 = 128                            # conv1 out channels (lane-dense stand-in)
CF = 128                            # conv2 / RPN feature channels (lane-dense)
FC1_OUT = 256                       # RoI fc1 width (>=128 lanes for the MXU)
CLS_PAD = 128                       # 91 class logits padded to one lane tile
REG_PAD = 384                       # 364 box-reg outputs padded to 3 lane tiles
HEAD_PAD = CLS_PAD + REG_PAD        # fused RoI head output width (512)
RPN_HEAD_PAD = 128                  # 3 objectness + 12 deltas, lane-padded
VMEM_LIMIT = 64 * 1024 * 1024       # explicit scoped-VMEM budget for K1/K2


# --------------------------- layout helpers ----------------------------------
def space_to_depth2(x):
    """[B,H,W,C] (H,W even) -> [B,H/2,W/2,4C], channel order (pi, pj, c)."""
    B, H, W, C = x.shape
    assert H % 2 == 0 and W % 2 == 0
    x = x.reshape(B, H // 2, 2, W // 2, 2, C)
    x = x.transpose(0, 1, 3, 2, 4, 5)                        # (b, R, S, pi, pj, c)
    return x.reshape(B, H // 2, W // 2, 4 * C)


def _conv3x3_to_s2d(w):
    """3x3 stride-2 conv weight -> 2x2 stride-1 s2d-conv weight, rows (r,s,pi,pj,c)."""
    kh, kw, cin, cout = w.shape
    wp = jnp.zeros((4, 4, cin, cout), w.dtype).at[:kh, :kw].set(w)
    wp = wp.reshape(2, 2, 2, 2, cin, cout)                   # (r, pi, s, pj, c, co)
    wp = wp.transpose(0, 2, 1, 3, 4, 5)                      # (r, s, pi, pj, c, co)
    return wp.reshape(4 * 4 * cin, cout)


# --------------------------- Pallas kernels ---------------------------------
def _s2d_conv_fused(xv, w_ref, bias, *, ho, wo, cin4):
    """2x2 stride-1 conv over an s2d tile: 4 taps fused into ONE wide-K matmul."""
    taps = [xv[r:r + ho, s:s + wo, :].reshape(ho * wo, cin4)
            for r in range(2) for s in range(2)]
    a = jnp.concatenate(taps, axis=-1)                       # (ho*wo, 4*cin4) bf16
    acc = jnp.dot(a, w_ref[...], preferred_element_type=jnp.float32) + bias
    return jnp.maximum(acc, 0.0)


def _backbone1_kernel(x_ref, w1_ref, b1_ref, o_ref, *, ho, wo, cin4):
    # conv1 (3x3 stride-2 as a 2x2 s2d conv); 1/std scale is folded into w1.
    o_ref[...] = _s2d_conv_fused(x_ref[...], w1_ref, b1_ref[...],
                                 ho=ho, wo=wo, cin4=cin4).astype(o_ref.dtype)


def _backbone2_rpn_kernel(x_ref, w2_ref, b2_ref, wr_ref, br_ref, wh_ref, bh_ref,
                          f_ref, rpn_ref, fpad_ref, *, hf, wf, cin4, cf):
    # conv2 (stride-2 3x3 as s2d conv), all 4 taps in one K=4*cin4 matmul.
    f = _s2d_conv_fused(x_ref[...], w2_ref, b2_ref[...], ho=hf, wo=wf, cin4=cin4)
    f3 = f.astype(jnp.bfloat16).reshape(hf, wf, cf)          # cast ONCE
    f_ref[...] = f3                                          # kept for RoI sampling

    # RPN 3x3 stride-1 conv via a bf16 zero-border scratch.  The logical padded
    # map occupies scratch columns [1:wf+3]; interior lives at columns [2:wf+2]
    # so every store uses an even sublane offset/width (packed-bf16 friendly).
    # Only the 1-wide border is zeroed (4 thin stores, no full zero pass).
    fpad_ref[0:1, :, :] = jnp.zeros((1, wf + 4, cf), jnp.bfloat16)
    fpad_ref[hf + 1:hf + 2, :, :] = jnp.zeros((1, wf + 4, cf), jnp.bfloat16)
    fpad_ref[:, 0:2, :] = jnp.zeros((hf + 2, 2, cf), jnp.bfloat16)
    fpad_ref[:, wf + 2:wf + 4, :] = jnp.zeros((hf + 2, 2, cf), jnp.bfloat16)
    fpad_ref[1:hf + 1, 2:wf + 2, :] = f3
    fp = fpad_ref[...]

    # all 9 taps fused into one K=9*cf matmul (tap (di,dj) -> rows (di*3+dj)*cf).
    rtaps = [fp[di:di + hf, dj + 1:dj + 1 + wf, :].reshape(hf * wf, cf)
             for di in range(3) for dj in range(3)]
    ar = jnp.concatenate(rtaps, axis=-1)                     # (hf*wf, 9*cf) bf16
    t = jnp.maximum(
        jnp.dot(ar, wr_ref[...], preferred_element_type=jnp.float32) + br_ref[...], 0.0)

    # fused lane-padded 1x1 objectness + box-delta heads: [obj(3) | reg(12) | pad]
    rpn = jnp.dot(t.astype(jnp.bfloat16), wh_ref[...],
                  preferred_element_type=jnp.float32) + bh_ref[...]
    rpn_ref[...] = rpn.astype(rpn_ref.dtype)                 # bf16 writeback


def _roi_head_kernel(rf_ref, w1_ref, b1_ref, wh_ref, bh_ref, probs_ref, reg_ref):
    # fc1 + ReLU (bf16 input pre-cast in the wrapper, f32 accumulate)
    h1 = jnp.maximum(
        jnp.dot(rf_ref[...], w1_ref[...], preferred_element_type=jnp.float32)
        + b1_ref[...], 0.0)
    # fused cls|reg head: cols [0:91]=cls, [91:128]=-1e9 bias pad, [128:492]=reg
    hl = jnp.dot(h1.astype(jnp.bfloat16), wh_ref[...],
                 preferred_element_type=jnp.float32) + bh_ref[...]
    cls = hl[:, :CLS_PAD]
    m = jnp.max(cls, axis=-1, keepdims=True)
    e = jnp.exp(cls - m)
    denom = jnp.sum(e, axis=-1, keepdims=True)
    probs_ref[...] = e / denom          # exact reciprocal: score-threshold fidelity
    reg_ref[...] = hl[:, CLS_PAD:]


# --------------------------- kernel wrappers ---------------------------------
def run_backbone1(xs, w1, b1):
    B, Hs, Ws, C4 = xs.shape
    Ho, Wo = Hs - 1, Ws - 1
    Cout = w1.shape[-1]
    # TODO(synk): at realistic resolutions (800px) add a row-tile grid axis with
    #             halo DMA so the working set fits v7x's 64 MiB VMEM.
    out = pl.pallas_call(
        functools.partial(_backbone1_kernel, ho=Ho, wo=Wo, cin4=C4),
        out_shape=jax.ShapeDtypeStruct((B * Ho * Wo, Cout), jnp.bfloat16),
        grid=(B,),
        in_specs=[
            pl.BlockSpec((None, Hs, Ws, C4), lambda b: (b, 0, 0, 0)),
            pl.BlockSpec(w1.shape, lambda b: (0, 0)),
            pl.BlockSpec((1, Cout), lambda b: (0, 0)),
        ],
        out_specs=pl.BlockSpec((Ho * Wo, Cout), lambda b: (b, 0)),
        compiler_params=pltpu.CompilerParams(
            dimension_semantics=("parallel",), vmem_limit_bytes=VMEM_LIMIT),
    )(xs, w1, b1)
    return out.reshape(B, Ho, Wo, Cout)


def run_backbone2_rpn(c1s, w2, b2, wr, br, wh, bh, hf, wf):
    B, Hs, Ws, C4 = c1s.shape
    Cf = w2.shape[-1]
    Nh = wh.shape[-1]
    f, rpn = pl.pallas_call(
        functools.partial(_backbone2_rpn_kernel, hf=hf, wf=wf, cin4=C4, cf=Cf),
        out_shape=(jax.ShapeDtypeStruct((B, hf, wf, Cf), jnp.bfloat16),
                   jax.ShapeDtypeStruct((B * hf * wf, Nh), jnp.bfloat16)),
        grid=(B,),
        in_specs=[
            pl.BlockSpec((None, Hs, Ws, C4), lambda b: (b, 0, 0, 0)),
            pl.BlockSpec(w2.shape, lambda b: (0, 0)),
            pl.BlockSpec((1, Cf), lambda b: (0, 0)),
            pl.BlockSpec(wr.shape, lambda b: (0, 0)),
            pl.BlockSpec((1, Cf), lambda b: (0, 0)),
            pl.BlockSpec(wh.shape, lambda b: (0, 0)),
            pl.BlockSpec((1, Nh), lambda b: (0, 0)),
        ],
        out_specs=(pl.BlockSpec((None, hf, wf, Cf), lambda b: (b, 0, 0, 0)),
                   pl.BlockSpec((hf * wf, Nh), lambda b: (b, 0))),
        scratch_shapes=[pltpu.VMEM((hf + 2, wf + 4, Cf), jnp.bfloat16)],
        compiler_params=pltpu.CompilerParams(
            dimension_semantics=("parallel",), vmem_limit_bytes=VMEM_LIMIT),
    )(c1s, w2, b2, wr, br, wh, bh)
    return f, rpn


def run_roi_head(rf, fc1_w, fc1_b, head_w, head_b, *, tile_m=128):
    # NOTE(perf review): at M=B*TOPK=32 this is launch-overhead dominated and
    # XLA would do fine; the M-tile parallel grid is kept so it scales to ~1000
    # proposals without rework.
    M, Cin = rf.shape
    tm = min(tile_m, M)
    grid_m = pl.cdiv(M, tm)
    Mp = grid_m * tm
    if Mp != M:
        rf = jnp.pad(rf, ((0, Mp - M), (0, 0)))
    probs, reg = pl.pallas_call(
        _roi_head_kernel,
        out_shape=(jax.ShapeDtypeStruct((Mp, CLS_PAD), jnp.float32),
                   jax.ShapeDtypeStruct((Mp, REG_PAD), jnp.float32)),
        grid=(grid_m,),
        in_specs=[
            pl.BlockSpec((tm, Cin), lambda i: (i, 0)),
            pl.BlockSpec(fc1_w.shape, lambda i: (0, 0)),
            pl.BlockSpec((1, fc1_w.shape[1]), lambda i: (0, 0)),
            pl.BlockSpec(head_w.shape, lambda i: (0, 0)),
            pl.BlockSpec((1, head_w.shape[1]), lambda i: (0, 0)),
        ],
        out_specs=(pl.BlockSpec((tm, CLS_PAD), lambda i: (i, 0)),
                   pl.BlockSpec((tm, REG_PAD), lambda i: (i, 0))),
        compiler_params=pltpu.CompilerParams(dimension_semantics=("parallel",)),
    )(rf, fc1_w, fc1_b, head_w, head_b)
    return probs[:M], reg[:M]


# ------------------------------ box utilities --------------------------------
def decode_boxes(anchors, deltas):
    wa = anchors[..., 2] - anchors[..., 0]
    ha = anchors[..., 3] - anchors[..., 1]
    xa = anchors[..., 0] + 0.5 * wa
    ya = anchors[..., 1] + 0.5 * ha
    dx, dy = deltas[..., 0], deltas[..., 1]
    dw = jnp.minimum(deltas[..., 2], BBOX_XFORM_CLIP)
    dh = jnp.minimum(deltas[..., 3], BBOX_XFORM_CLIP)
    xc = dx * wa + xa
    yc = dy * ha + ya
    w = jnp.exp(dw) * wa
    h = jnp.exp(dh) * ha
    return jnp.stack([xc - 0.5 * w, yc - 0.5 * h, xc + 0.5 * w, yc + 0.5 * h], axis=-1)


def clip_boxes(boxes, size):
    h, w = size
    x1 = jnp.clip(boxes[..., 0], 0.0, float(w))
    y1 = jnp.clip(boxes[..., 1], 0.0, float(h))
    x2 = jnp.clip(boxes[..., 2], 0.0, float(w))
    y2 = jnp.clip(boxes[..., 3], 0.0, float(h))
    return jnp.stack([x1, y1, x2, y2], axis=-1)


def make_anchors(Hf, Wf):
    ys = (jnp.arange(Hf, dtype=jnp.float32) + 0.5) * FEAT_STRIDE
    xs = (jnp.arange(Wf, dtype=jnp.float32) + 0.5) * FEAT_STRIDE
    cy, cx = jnp.meshgrid(ys, xs, indexing="ij")
    half = jnp.asarray(ANCHOR_SIZES, jnp.float32) * 0.5
    x1 = cx[..., None] - half
    y1 = cy[..., None] - half
    x2 = cx[..., None] + half
    y2 = cy[..., None] + half
    return jnp.stack([x1, y1, x2, y2], axis=-1).reshape(-1, 4)   # [Hf*Wf*A, 4]


def roi_center_features(feat, boxes):
    # TODO(synk): ROIAlign (7x7 bilinear multi-bin pooling) replaced by
    #             nearest-neighbour sampling at the box centre (dynamic gather).
    B, Hf, Wf, C = feat.shape
    cx = (boxes[..., 0] + boxes[..., 2]) * 0.5 / FEAT_STRIDE
    cy = (boxes[..., 1] + boxes[..., 3]) * 0.5 / FEAT_STRIDE
    ix = jnp.clip(cx, 0, Wf - 1).astype(jnp.int32)
    iy = jnp.clip(cy, 0, Hf - 1).astype(jnp.int32)
    bidx = jnp.arange(B)[:, None]
    return feat[bidx, iy, ix]                                # [B,K,C]


# ------------------------------ parameters -----------------------------------
def init_params():
    key = jax.random.PRNGKey(0)
    ks = jax.random.split(key, 8)

    def w(k, shape, scale=0.05):
        return scale * jax.random.normal(k, shape, jnp.float32)

    p = {
        # backbone (tiny lane-dense stand-in for ResNet50-FPN)
        "conv1_w": w(ks[0], (3, 3, 3, C1)), "conv1_b": jnp.zeros((C1,), jnp.float32),
        "conv2_w": w(ks[1], (3, 3, C1, CF)), "conv2_b": jnp.zeros((CF,), jnp.float32),
        # RPN head
        "rpn_conv_w": w(ks[2], (3, 3, CF, CF)), "rpn_conv_b": jnp.zeros((CF,), jnp.float32),
        "rpn_cls_w": w(ks[3], (1, 1, CF, NUM_ANCHORS)), "rpn_cls_b": jnp.zeros((NUM_ANCHORS,), jnp.float32),
        "rpn_reg_w": w(ks[4], (1, 1, CF, 4 * NUM_ANCHORS)), "rpn_reg_b": jnp.zeros((4 * NUM_ANCHORS,), jnp.float32),
        # RoI box head
        "fc1_w": w(ks[5], (CF, FC1_OUT)), "fc1_b": jnp.zeros((FC1_OUT,), jnp.float32),
        "cls_w": w(ks[6], (FC1_OUT, NUM_CLASSES)), "cls_b": jnp.zeros((NUM_CLASSES,), jnp.float32),
        "reg_w": w(ks[7], (FC1_OUT, NUM_CLASSES * 4)), "reg_b": jnp.zeros((NUM_CLASSES * 4,), jnp.float32),
    }
    return p


def prepare_params(p):
    """One-time weight prep: fold 1/std into conv1, s2d weights, fused lane-padded
    heads, bf16 casts of every MXU operand."""
    bf = jnp.bfloat16
    # fold the per-channel 1/std scale into the conv1 weight (conv is linear);
    # mean shift stays in the wrapper BEFORE padding so border semantics hold.
    conv1_scaled = p["conv1_w"] * (1.0 / IMG_STD).reshape(1, 1, 3, 1)
    prep = {
        "mean": IMG_MEAN.reshape(1, 1, 1, 3),
        "w1": _conv3x3_to_s2d(conv1_scaled).astype(bf), "b1": p["conv1_b"].reshape(1, -1),
        "w2": _conv3x3_to_s2d(p["conv2_w"]).astype(bf), "b2": p["conv2_b"].reshape(1, -1),
        "wr": p["rpn_conv_w"].reshape(9 * CF, CF).astype(bf), "br": p["rpn_conv_b"].reshape(1, -1),
        "fc1_w": p["fc1_w"].astype(bf), "fc1_b": p["fc1_b"].reshape(1, -1),
    }
    # fused, lane-padded RPN 1x1 heads: [objectness(3) | deltas(12) | zero pad]
    wh = jnp.zeros((CF, RPN_HEAD_PAD), jnp.float32)
    wh = wh.at[:, :NUM_ANCHORS].set(p["rpn_cls_w"].reshape(CF, NUM_ANCHORS))
    wh = wh.at[:, NUM_ANCHORS:NUM_ANCHORS + 4 * NUM_ANCHORS].set(
        p["rpn_reg_w"].reshape(CF, 4 * NUM_ANCHORS))
    bh = jnp.zeros((RPN_HEAD_PAD,), jnp.float32)
    bh = bh.at[:NUM_ANCHORS].set(p["rpn_cls_b"])
    bh = bh.at[NUM_ANCHORS:NUM_ANCHORS + 4 * NUM_ANCHORS].set(p["rpn_reg_b"])
    prep["w_rpn_head"] = wh.astype(bf)
    prep["b_rpn_head"] = bh.reshape(1, -1)
    # fused, lane-padded RoI head: cols [0:91]=cls, [91:128]=-1e9 bias pad, [128:492]=reg
    whd = jnp.zeros((FC1_OUT, HEAD_PAD), jnp.float32)
    whd = whd.at[:, :NUM_CLASSES].set(p["cls_w"])
    whd = whd.at[:, CLS_PAD:CLS_PAD + 4 * NUM_CLASSES].set(p["reg_w"])
    bhd = jnp.zeros((HEAD_PAD,), jnp.float32)
    bhd = bhd.at[:NUM_CLASSES].set(p["cls_b"])
    bhd = bhd.at[NUM_CLASSES:CLS_PAD].set(-1e9)              # kill pad lanes in softmax
    bhd = bhd.at[CLS_PAD:CLS_PAD + 4 * NUM_CLASSES].set(p["reg_b"])
    prep["head_w"] = whd.astype(bf)
    prep["head_b"] = bhd.reshape(1, -1)
    return prep


# ------------------------------ forward pass ----------------------------------
def maskrcnn_forward(images_nchw, prep):
    B, C, H, W = images_nchw.shape

    # ---- transform (GeneralizedRCNNTransform): NCHW->NHWC + mean shift fuse
    #      with the unavoidable pad/space-to-depth layout pass; the 1/std scale
    #      is folded into the conv1 weights.
    x = jnp.transpose(images_nchw, (0, 2, 3, 1)).astype(jnp.float32) - prep["mean"]
    # TODO(synk): transform resize / batching-pad and postprocess rescale are identity.
    xp = jnp.pad(x, ((0, 0), (1, 1), (1, 1), (0, 0)))
    xs = space_to_depth2(xp).astype(jnp.bfloat16)            # bf16 MXU operand

    # ---- backbone ------------------------------------------------------------
    # TODO(synk): pretrained ResNet50-FPN replaced by a 2-layer conv stand-in.
    c1 = run_backbone1(xs, prep["w1"], prep["b1"])           # bf16 [B,H/2,W/2,C1]
    c1p = jnp.pad(c1, ((0, 0), (1, 1), (1, 1), (0, 0)))
    c1s = space_to_depth2(c1p)                               # bf16 [B,H/4+1,W/4+1,4*C1]
    Hf, Wf = c1.shape[1] // 2, c1.shape[2] // 2

    # ---- conv2 + RPN conv + fused cls/reg heads (single Pallas kernel) --------
    f, rpn = run_backbone2_rpn(c1s, prep["w2"], prep["b2"], prep["wr"], prep["br"],
                               prep["w_rpn_head"], prep["b_rpn_head"], Hf, Wf)
    rpn = rpn.reshape(B, Hf, Wf, RPN_HEAD_PAD).astype(jnp.float32)
    logits = rpn[..., :NUM_ANCHORS]                          # [B,Hf,Wf,A]
    deltas = rpn[..., NUM_ANCHORS:NUM_ANCHORS + 4 * NUM_ANCHORS]
    anchors = make_anchors(Hf, Wf)                           # [Hf*Wf*A,4]
    obj = jax.nn.sigmoid(logits.reshape(B, Hf * Wf * NUM_ANCHORS))
    deltas = deltas.reshape(B, Hf * Wf * NUM_ANCHORS, 4)
    proposals = clip_boxes(decode_boxes(anchors[None], deltas), (H, W))
    _, top_idx = jax.lax.top_k(obj, TOPK)
    proposals = jnp.take_along_axis(proposals, top_idx[..., None], axis=1)  # [B,K,4]
    # TODO(synk): RPN NMS omitted (pure top-k proposal selection).

    # ---- RoI heads: fused fc1 + (cls|reg) + softmax in one Pallas kernel ------
    roi_feat = roi_center_features(f, proposals)             # bf16 [B,K,CF]
    rf = roi_feat.reshape(B * TOPK, -1).astype(jnp.bfloat16)
    probs, reg = run_roi_head(rf, prep["fc1_w"], prep["fc1_b"],
                              prep["head_w"], prep["head_b"])
    labels = jnp.argmax(probs[:, 1:NUM_CLASSES], axis=-1) + 1    # exclude background 0
    scores = jnp.take_along_axis(probs, labels[:, None], axis=1)[:, 0]
    box_reg = reg[:, :4 * NUM_CLASSES].reshape(B * TOPK, NUM_CLASSES, 4)
    sel_deltas = jnp.take_along_axis(box_reg, labels[:, None, None], axis=1)[:, 0]
    det_boxes = clip_boxes(decode_boxes(proposals.reshape(B * TOPK, 4), sel_deltas), (H, W))
    # TODO(synk): per-class NMS in roi_heads postprocess omitted.

    labels = labels.reshape(B, TOPK)
    scores = scores.reshape(B, TOPK)
    det_boxes = det_boxes.reshape(B, TOPK, 4)

    # ---- final filter: labels in {3,6,8} and score > 0.6 -----------------------
    interested = jnp.zeros_like(labels, dtype=bool)
    for cid in INTERESTED_IDS:
        interested = interested | (labels == cid)
    keep = interested & (scores > SCORE_THRESH)
    # TODO(synk): dynamic-length index_select not expressible; return padded boxes + mask
    boxes_out = det_boxes * keep[..., None].astype(det_boxes.dtype)
    return boxes_out, keep, labels, scores


# ---------------------------------- main --------------------------------------
if __name__ == "__main__":
    raw_params = init_params()
    prep_params = prepare_params(raw_params)

    key = jax.random.PRNGKey(0)
    # PyTorch-style NCHW input (batch of 2 RGB 32x32 images)
    images = jax.random.uniform(key, (2, 3, 32, 32), jnp.float32)

    fwd = jax.jit(maskrcnn_forward)
    boxes, keep, labels, scores = fwd(images, prep_params)
    jax.block_until_ready((boxes, keep, labels, scores))

    assert boxes.shape == (2, TOPK, 4)
    assert keep.shape == (2, TOPK)
    print("KERNEL_OK")
</pallas_src>

<mosaic_0001>
module attributes {stable_mosaic.version = 11 : i64} {
  func.func @_backbone1_kernel(%arg0: i32, %arg1: memref<1x17x17x12xbf16, #tpu.memory_space<vmem>>, %arg2: memref<48x128xbf16, #tpu.memory_space<vmem>>, %arg3: memref<1x128xf32, #tpu.memory_space<vmem>>, %arg4: memref<256x128xbf16, #tpu.memory_space<vmem>>) attributes {dimension_semantics = [#tpu.dimension_semantics<parallel>], iteration_bounds = array<i64: 2>, scalar_prefetch = 0 : i64, scratch_operands = 0 : i64, tpu.core_type = #tpu.core_type<tc>, window_params = [{transform_indices = @transform_0, window_bounds = array<i64: 1, 17, 17, 12>}, {pipeline_mode = #tpu.pipeline_mode<synchronous>, transform_indices = @transform_1, window_bounds = array<i64: 48, 128>}, {pipeline_mode = #tpu.pipeline_mode<synchronous>, transform_indices = @transform_2, window_bounds = array<i64: 1, 128>}, {transform_indices = @transform_3, window_bounds = array<i64: 256, 128>}]} {
    %c0 = arith.constant 0 : index
    %c0_0 = arith.constant 0 : index
    %c0_1 = arith.constant 0 : index
    %c0_2 = arith.constant 0 : index
    %0 = vector.load %arg1[%c0, %c0_0, %c0_1, %c0_2] : memref<1x17x17x12xbf16, #tpu.memory_space<vmem>>, vector<1x17x17x12xbf16>
    %1 = vector.shape_cast %0 : vector<1x17x17x12xbf16> to vector<17x17x12xbf16>
    %c0_3 = arith.constant 0 : index
    %c0_4 = arith.constant 0 : index
    %2 = vector.load %arg3[%c0_3, %c0_4] : memref<1x128xf32, #tpu.memory_space<vmem>>, vector<1x128xf32>
    %3 = vector.extract_strided_slice %1 {offsets = [0, 0, 0], sizes = [16, 16, 12], strides = [1, 1, 1]} : vector<17x17x12xbf16> to vector<16x16x12xbf16>
    %4 = vector.shape_cast %3 : vector<16x16x12xbf16> to vector<256x12xbf16>
    %5 = vector.extract_strided_slice %1 {offsets = [0, 1, 0], sizes = [16, 16, 12], strides = [1, 1, 1]} : vector<17x17x12xbf16> to vector<16x16x12xbf16>
    %6 = vector.shape_cast %5 : vector<16x16x12xbf16> to vector<256x12xbf16>
    %7 = vector.extract_strided_slice %1 {offsets = [1, 0, 0], sizes = [16, 16, 12], strides = [1, 1, 1]} : vector<17x17x12xbf16> to vector<16x16x12xbf16>
    %8 = vector.shape_cast %7 : vector<16x16x12xbf16> to vector<256x12xbf16>
    %9 = vector.extract_strided_slice %1 {offsets = [1, 1, 0], sizes = [16, 16, 12], strides = [1, 1, 1]} : vector<17x17x12xbf16> to vector<16x16x12xbf16>
    %10 = vector.shape_cast %9 : vector<16x16x12xbf16> to vector<256x12xbf16>
    %11 = tpu.concatenate %4, %6, %8, %10 in 1 : vector<256x12xbf16>, vector<256x12xbf16>, vector<256x12xbf16>, vector<256x12xbf16> -> vector<256x48xbf16>
    %c0_5 = arith.constant 0 : index
    %c0_6 = arith.constant 0 : index
    %12 = vector.load %arg2[%c0_5, %c0_6] : memref<48x128xbf16, #tpu.memory_space<vmem>>, vector<48x128xbf16>
    %cst = arith.constant dense<0.000000e+00> : vector<256x128xf32>
    %13 = tpu.matmul %11, %12, %cst {dimension_numbers = #tpu.dot_dimension_numbers<[1], [0], [0], [1], [0, 0, 1, 1], [], []>} : vector<256x48xbf16>, vector<48x128xbf16>, vector<256x128xf32> -> vector<256x128xf32>
    %14 = vector.broadcast %2 : vector<1x128xf32> to vector<256x128xf32>
    %15 = arith.addf %13, %14 : vector<256x128xf32>
    %cst_7 = arith.constant 0.000000e+00 : f32
    %16 = vector.broadcast %cst_7 : f32 to vector<256x128xf32>
    %17 = arith.maximumf %15, %16 : vector<256x128xf32>
    %18 = arith.truncf %17 : vector<256x128xf32> to vector<256x128xbf16>
    %c0_8 = arith.constant 0 : index
    %c0_9 = arith.constant 0 : index
    %19 = vector.load %arg4[%c0_8, %c0_9] : memref<256x128xbf16, #tpu.memory_space<vmem>>, vector<256x128xbf16>
    tpu.vector_store %arg4[%c0_8, %c0_9], %18 {strides = array<i32>} : memref<256x128xbf16, #tpu.memory_space<vmem>>, vector<256x128xbf16>,
    return
  }
  func.func @transform_0(%arg0: i32) -> (i32, i32, i32, i32) {
    %c0_i32 = arith.constant 0 : i32
    %c0_i32_0 = arith.constant 0 : i32
    %c0_i32_1 = arith.constant 0 : i32
    %c0_i32_2 = arith.constant 0 : i32
    return %arg0, %c0_i32, %c0_i32_0, %c0_i32_1 : i32, i32, i32, i32
  }
  func.func @transform_1(%arg0: i32) -> (i32, i32) {
    %c0_i32 = arith.constant 0 : i32
    %c0_i32_0 = arith.constant 0 : i32
    %c0_i32_1 = arith.constant 0 : i32
    return %c0_i32, %c0_i32_0 : i32, i32
  }
  func.func @transform_2(%arg0: i32) -> (i32, i32) {
    %c0_i32 = arith.constant 0 : i32
    %c0_i32_0 = arith.constant 0 : i32
    %c0_i32_1 = arith.constant 0 : i32
    return %c0_i32, %c0_i32_0 : i32, i32
  }
  func.func @transform_3(%arg0: i32) -> (i32, i32) {
    %c0_i32 = arith.constant 0 : i32
    %c0_i32_0 = arith.constant 0 : i32
    return %arg0, %c0_i32 : i32, i32
  }
}

module attributes {stable_mosaic.version = 11 : i64} {
  func.func @_backbone2_rpn_kernel(%arg0: i32, %arg1: memref<1x9x9x512xbf16, #tpu.memory_space<vmem>>, %arg2: memref<2048x128xbf16, #tpu.memory_space<vmem>>, %arg3: memref<1x128xf32, #tpu.memory_space<vmem>>, %arg4: memref<1152x128xbf16, #tpu.memory_space<vmem>>, %arg5: memref<1x128xf32, #tpu.memory_space<vmem>>, %arg6: memref<128x128xbf16, #tpu.memory_space<vmem>>, %arg7: memref<1x128xf32, #tpu.memory_space<vmem>>, %arg8: memref<1x8x8x128xbf16, #tpu.memory_space<vmem>>, %arg9: memref<64x128xbf16, #tpu.memory_space<vmem>>, %arg10: memref<10x12x128xbf16, #tpu.memory_space<vmem>>) attributes {dimension_semantics = [#tpu.dimension_semantics<parallel>], iteration_bounds = array<i64: 2>, scalar_prefetch = 0 : i64, scratch_operands = 1 : i64, tpu.core_type = #tpu.core_type<tc>, window_params = [{transform_indices = @transform_0, window_bounds = array<i64: 1, 9, 9, 512>}, {pipeline_mode = #tpu.pipeline_mode<synchronous>, transform_indices = @transform_1, window_bounds = array<i64: 2048, 128>}, {pipeline_mode = #tpu.pipeline_mode<synchronous>, transform_indices = @transform_2, window_bounds = array<i64: 1, 128>}, {pipeline_mode = #tpu.pipeline_mode<synchronous>, transform_indices = @transform_3, window_bounds = array<i64: 1152, 128>}, {pipeline_mode = #tpu.pipeline_mode<synchronous>, transform_indices = @transform_4, window_bounds = array<i64: 1, 128>}, {pipeline_mode = #tpu.pipeline_mode<synchronous>, transform_indices = @transform_5, window_bounds = array<i64: 128, 128>}, {pipeline_mode = #tpu.pipeline_mode<synchronous>, transform_indices = @transform_6, window_bounds = array<i64: 1, 128>}, {transform_indices = @transform_7, window_bounds = array<i64: 1, 8, 8, 128>}, {transform_indices = @transform_8, window_bounds = array<i64: 64, 128>}]} {
    %c0 = arith.constant 0 : index
    %c0_0 = arith.constant 0 : index
    %c0_1 = arith.constant 0 : index
    %c0_2 = arith.constant 0 : index
    %0 = vector.load %arg1[%c0, %c0_0, %c0_1, %c0_2] : memref<1x9x9x512xbf16, #tpu.memory_space<vmem>>, vector<1x9x9x512xbf16>
    %1 = vector.shape_cast %0 : vector<1x9x9x512xbf16> to vector<9x9x512xbf16>
    %c0_3 = arith.constant 0 : index
    %c0_4 = arith.constant 0 : index
    %2 = vector.load %arg3[%c0_3, %c0_4] : memref<1x128xf32, #tpu.memory_space<vmem>>, vector<1x128xf32>
    %3 = vector.extract_strided_slice %1 {offsets = [0, 0, 0], sizes = [8, 8, 512], strides = [1, 1, 1]} : vector<9x9x512xbf16> to vector<8x8x512xbf16>
    %4 = vector.shape_cast %3 : vector<8x8x512xbf16> to vector<64x512xbf16>
    %5 = vector.extract_strided_slice %1 {offsets = [0, 1, 0], sizes = [8, 8, 512], strides = [1, 1, 1]} : vector<9x9x512xbf16> to vector<8x8x512xbf16>
    %6 = vector.shape_cast %5 : vector<8x8x512xbf16> to vector<64x512xbf16>
    %7 = vector.extract_strided_slice %1 {offsets = [1, 0, 0], sizes = [8, 8, 512], strides = [1, 1, 1]} : vector<9x9x512xbf16> to vector<8x8x512xbf16>
    %8 = vector.shape_cast %7 : vector<8x8x512xbf16> to vector<64x512xbf16>
    %9 = vector.extract_strided_slice %1 {offsets = [1, 1, 0], sizes = [8, 8, 512], strides = [1, 1, 1]} : vector<9x9x512xbf16> to vector<8x8x512xbf16>
    %10 = vector.shape_cast %9 : vector<8x8x512xbf16> to vector<64x512xbf16>
    %11 = tpu.concatenate %4, %6, %8, %10 in 1 : vector<64x512xbf16>, vector<64x512xbf16>, vector<64x512xbf16>, vector<64x512xbf16> -> vector<64x2048xbf16>
    %c0_5 = arith.constant 0 : index
    %c0_6 = arith.constant 0 : index
    %12 = vector.load %arg2[%c0_5, %c0_6] : memref<2048x128xbf16, #tpu.memory_space<vmem>>, vector<2048x128xbf16>
    %cst = arith.constant dense<0.000000e+00> : vector<64x128xf32>
    %13 = tpu.matmul %11, %12, %cst {dimension_numbers = #tpu.dot_dimension_numbers<[1], [0], [0], [1], [0, 0, 1, 1], [], []>} : vector<64x2048xbf16>, vector<2048x128xbf16>, vector<64x128xf32> -> vector<64x128xf32>
    %14 = vector.broadcast %2 : vector<1x128xf32> to vector<64x128xf32>
    %15 = arith.addf %13, %14 : vector<64x128xf32>
    %cst_7 = arith.constant 0.000000e+00 : f32
    %16 = vector.broadcast %cst_7 : f32 to vector<64x128xf32>
    %17 = arith.maximumf %15, %16 : vector<64x128xf32>
    %18 = arith.truncf %17 : vector<64x128xf32> to vector<64x128xbf16>
    %19 = vector.shape_cast %18 : vector<64x128xbf16> to vector<8x8x128xbf16>
    %c0_8 = arith.constant 0 : index
    %c0_9 = arith.constant 0 : index
    %c0_10 = arith.constant 0 : index
    %c0_11 = arith.constant 0 : index
    %20 = vector.load %arg8[%c0_8, %c0_9, %c0_10, %c0_11] : memref<1x8x8x128xbf16, #tpu.memory_space<vmem>>, vector<1x8x8x128xbf16>
    %21 = vector.shape_cast %20 : vector<1x8x8x128xbf16> to vector<8x8x128xbf16>
    %22 = vector.shape_cast %19 : vector<8x8x128xbf16> to vector<1x8x8x128xbf16>
    tpu.vector_store %arg8[%c0_8, %c0_9, %c0_10, %c0_11], %22 {strides = array<i32>} : memref<1x8x8x128xbf16, #tpu.memory_space<vmem>>, vector<1x8x8x128xbf16>,
    %cst_12 = arith.constant 0.000000e+00 : bf16
    %23 = vector.broadcast %cst_12 : bf16 to vector<1x12x128xbf16>
    %c0_13 = arith.constant 0 : index
    %c0_14 = arith.constant 0 : index
    %c0_15 = arith.constant 0 : index
    %24 = vector.load %arg10[%c0_13, %c0_14, %c0_15] : memref<10x12x128xbf16, #tpu.memory_space<vmem>>, vector<1x12x128xbf16>
    tpu.vector_store %arg10[%c0_13, %c0_14, %c0_15], %23 {strides = array<i32>} : memref<10x12x128xbf16, #tpu.memory_space<vmem>>, vector<1x12x128xbf16>,
    %cst_16 = arith.constant 0.000000e+00 : bf16
    %25 = vector.broadcast %cst_16 : bf16 to vector<1x12x128xbf16>
    %c9 = arith.constant 9 : index
    %c0_17 = arith.constant 0 : index
    %c0_18 = arith.constant 0 : index
    %26 = vector.load %arg10[%c9, %c0_17, %c0_18] : memref<10x12x128xbf16, #tpu.memory_space<vmem>>, vector<1x12x128xbf16>
    tpu.vector_store %arg10[%c9, %c0_17, %c0_18], %25 {strides = array<i32>} : memref<10x12x128xbf16, #tpu.memory_space<vmem>>, vector<1x12x128xbf16>,
    %cst_19 = arith.constant 0.000000e+00 : bf16
    %27 = vector.broadcast %cst_19 : bf16 to vector<10x2x128xbf16>
    %c0_20 = arith.constant 0 : index
    %c0_21 = arith.constant 0 : index
    %c0_22 = arith.constant 0 : index
    %28 = vector.load %arg10[%c0_20, %c0_21, %c0_22] : memref<10x12x128xbf16, #tpu.memory_space<vmem>>, vector<10x2x128xbf16>
    tpu.vector_store %arg10[%c0_20, %c0_21, %c0_22], %27 {strides = array<i32>} : memref<10x12x128xbf16, #tpu.memory_space<vmem>>, vector<10x2x128xbf16>,
    %cst_23 = arith.constant 0.000000e+00 : bf16
    %29 = vector.broadcast %cst_23 : bf16 to vector<10x2x128xbf16>
    %c0_24 = arith.constant 0 : index
    %c10 = arith.constant 10 : index
    %c0_25 = arith.constant 0 : index
    %30 = vector.load %arg10[%c0_24, %c10, %c0_25] : memref<10x12x128xbf16, #tpu.memory_space<vmem>>, vector<10x2x128xbf16>
    tpu.vector_store %arg10[%c0_24, %c10, %c0_25], %29 {strides = array<i32>} : memref<10x12x128xbf16, #tpu.memory_space<vmem>>, vector<10x2x128xbf16>,
    %c1 = arith.constant 1 : index
    %c2 = arith.constant 2 : index
    %c0_26 = arith.constant 0 : index
    %31 = vector.load %arg10[%c1, %c2, %c0_26] : memref<10x12x128xbf16, #tpu.memory_space<vmem>>, vector<8x8x128xbf16>
    tpu.vector_store %arg10[%c1, %c2, %c0_26], %19 {strides = array<i32>} : memref<10x12x128xbf16, #tpu.memory_space<vmem>>, vector<8x8x128xbf16>,
    %c0_27 = arith.constant 0 : index
    %c0_28 = arith.constant 0 : index
    %c0_29 = arith.constant 0 : index
    %32 = vector.load %arg10[%c0_27, %c0_28, %c0_29] : memref<10x12x128xbf16, #tpu.memory_space<vmem>>, vector<10x12x128xbf16>
    %33 = vector.extract_strided_slice %32 {offsets = [0, 1, 0], sizes = [8, 8, 128], strides = [1, 1, 1]} : vector<10x12x128xbf16> to vector<8x8x128xbf16>
    %34 = vector.shape_cast %33 : vector<8x8x128xbf16> to vector<64x128xbf16>
    %35 = vector.extract_strided_slice %32 {offsets = [0, 2, 0], sizes = [8, 8, 128], strides = [1, 1, 1]} : vector<10x12x128xbf16> to vector<8x8x128xbf16>
    %36 = vector.shape_cast %35 : vector<8x8x128xbf16> to vector<64x128xbf16>
    %37 = vector.extract_strided_slice %32 {offsets = [0, 3, 0], sizes = [8, 8, 128], strides = [1, 1, 1]} : vector<10x12x128xbf16> to vector<8x8x128xbf16>
    %38 = vector.shape_cast %37 : vector<8x8x128xbf16> to vector<64x128xbf16>
    %39 = vector.extract_strided_slice %32 {offsets = [1, 1, 0], sizes = [8, 8, 128], strides = [1, 1, 1]} : vector<10x12x128xbf16> to vector<8x8x128xbf16>
    %40 = vector.shape_cast %39 : vector<8x8x128xbf16> to vector<64x128xbf16>
    %41 = vector.extract_strided_slice %32 {offsets = [1, 2, 0], sizes = [8, 8, 128], strides = [1, 1, 1]} : vector<10x12x128xbf16> to vector<8x8x128xbf16>
    %42 = vector.shape_cast %41 : vector<8x8x128xbf16> to vector<64x128xbf16>
    %43 = vector.extract_strided_slice %32 {offsets = [1, 3, 0], sizes = [8, 8, 128], strides = [1, 1, 1]} : vector<10x12x128xbf16> to vector<8x8x128xbf16>
    %44 = vector.shape_cast %43 : vector<8x8x128xbf16> to vector<64x128xbf16>
    %45 = vector.extract_strided_slice %32 {offsets = [2, 1, 0], sizes = [8, 8, 128], strides = [1, 1, 1]} : vector<10x12x128xbf16> to vector<8x8x128xbf16>
    %46 = vector.shape_cast %45 : vector<8x8x128xbf16> to vector<64x128xbf16>
    %47 = vector.extract_strided_slice %32 {offsets = [2, 2, 0], sizes = [8, 8, 128], strides = [1, 1, 1]} : vector<10x12x128xbf16> to vector<8x8x128xbf16>
    %48 = vector.shape_cast %47 : vector<8x8x128xbf16> to vector<64x128xbf16>
    %49 = vector.extract_strided_slice %32 {offsets = [2, 3, 0], sizes = [8, 8, 128], strides = [1, 1, 1]} : vector<10x12x128xbf16> to vector<8x8x128xbf16>
    %50 = vector.shape_cast %49 : vector<8x8x128xbf16> to vector<64x128xbf16>
    %51 = tpu.concatenate %34, %36, %38, %40, %42, %44, %46, %48, %50 in 1 : vector<64x128xbf16>, vector<64x128xbf16>, vector<64x128xbf16>, vector<64x128xbf16>, vector<64x128xbf16>, vector<64x128xbf16>, vector<64x128xbf16>, vector<64x128xbf16>, vector<64x128xbf16> -> vector<64x1152xbf16>
    %c0_30 = arith.constant 0 : index
    %c0_31 = arith.constant 0 : index
    %52 = vector.load %arg4[%c0_30, %c0_31] : memref<1152x128xbf16, #tpu.memory_space<vmem>>, vector<1152x128xbf16>
    %cst_32 = arith.constant dense<0.000000e+00> : vector<64x128xf32>
    %53 = tpu.matmul %51, %52, %cst_32 {dimension_numbers = #tpu.dot_dimension_numbers<[1], [0], [0], [1], [0, 0, 1, 1], [], []>} : vector<64x1152xbf16>, vector<1152x128xbf16>, vector<64x128xf32> -> vector<64x128xf32>
    %c0_33 = arith.constant 0 : index
    %c0_34 = arith.constant 0 : index
    %54 = vector.load %arg5[%c0_33, %c0_34] : memref<1x128xf32, #tpu.memory_space<vmem>>, vector<1x128xf32>
    %55 = vector.broadcast %54 : vector<1x128xf32> to vector<64x128xf32>
    %56 = arith.addf %53, %55 : vector<64x128xf32>
    %cst_35 = arith.constant 0.000000e+00 : f32
    %57 = vector.broadcast %cst_35 : f32 to vector<64x128xf32>
    %58 = arith.maximumf %56, %57 : vector<64x128xf32>
    %59 = arith.truncf %58 : vector<64x128xf32> to vector<64x128xbf16>
    %c0_36 = arith.constant 0 : index
    %c0_37 = arith.constant 0 : index
    %60 = vector.load %arg6[%c0_36, %c0_37] : memref<128x128xbf16, #tpu.memory_space<vmem>>, vector<128x128xbf16>
    %cst_38 = arith.constant dense<0.000000e+00> : vector<64x128xf32>
    %61 = tpu.matmul %59, %60, %cst_38 {dimension_numbers = #tpu.dot_dimension_numbers<[1], [0], [0], [1], [0, 0, 1, 1], [], []>} : vector<64x128xbf16>, vector<128x128xbf16>, vector<64x128xf32> -> vector<64x128xf32>
    %c0_39 = arith.constant 0 : index
    %c0_40 = arith.constant 0 : index
    %62 = vector.load %arg7[%c0_39, %c0_40] : memref<1x128xf32, #tpu.memory_space<vmem>>, vector<1x128xf32>
    %63 = vector.broadcast %62 : vector<1x128xf32> to vector<64x128xf32>
    %64 = arith.addf %61, %63 : vector<64x128xf32>
    %65 = arith.truncf %64 : vector<64x128xf32> to vector<64x128xbf16>
    %c0_41 = arith.constant 0 : index
    %c0_42 = arith.constant 0 : index
    %66 = vector.load %arg9[%c0_41, %c0_42] : memref<64x128xbf16, #tpu.memory_space<vmem>>, vector<64x128xbf16>
    tpu.vector_store %arg9[%c0_41, %c0_42], %65 {strides = array<i32>} : memref<64x128xbf16, #tpu.memory_space<vmem>>, vector<64x128xbf16>,
    return
  }
  func.func @transform_0(%arg0: i32) -> (i32, i32, i32, i32) {
    %c0_i32 = arith.constant 0 : i32
    %c0_i32_0 = arith.constant 0 : i32
    %c0_i32_1 = arith.constant 0 : i32
    %c0_i32_2 = arith.constant 0 : i32
    return %arg0, %c0_i32, %c0_i32_0, %c0_i32_1 : i32, i32, i32, i32
  }
  func.func @transform_1(%arg0: i32) -> (i32, i32) {
    %c0_i32 = arith.constant 0 : i32
    %c0_i32_0 = arith.constant 0 : i32
    %c0_i32_1 = arith.constant 0 : i32
    return %c0_i32, %c0_i32_0 : i32, i32
  }
  func.func @transform_2(%arg0: i32) -> (i32, i32) {
    %c0_i32 = arith.constant 0 : i32
    %c0_i32_0 = arith.constant 0 : i32
    %c0_i32_1 = arith.constant 0 : i32
    return %c0_i32, %c0_i32_0 : i32, i32
  }
  func.func @transform_3(%arg0: i32) -> (i32, i32) {
    %c0_i32 = arith.constant 0 : i32
    %c0_i32_0 = arith.constant 0 : i32
    %c0_i32_1 = arith.constant 0 : i32
    return %c0_i32, %c0_i32_0 : i32, i32
  }
  func.func @transform_4(%arg0: i32) -> (i32, i32) {
    %c0_i32 = arith.constant 0 : i32
    %c0_i32_0 = arith.constant 0 : i32
    %c0_i32_1 = arith.constant 0 : i32
    return %c0_i32, %c0_i32_0 : i32, i32
  }
  func.func @transform_5(%arg0: i32) -> (i32, i32) {
    %c0_i32 = arith.constant 0 : i32
    %c0_i32_0 = arith.constant 0 : i32
    %c0_i32_1 = arith.constant 0 : i32
    return %c0_i32, %c0_i32_0 : i32, i32
  }
  func.func @transform_6(%arg0: i32) -> (i32, i32) {
    %c0_i32 = arith.constant 0 : i32
    %c0_i32_0 = arith.constant 0 : i32
    %c0_i32_1 = arith.constant 0 : i32
    return %c0_i32, %c0_i32_0 : i32, i32
  }
  func.func @transform_7(%arg0: i32) -> (i32, i32, i32, i32) {
    %c0_i32 = arith.constant 0 : i32
    %c0_i32_0 = arith.constant 0 : i32
    %c0_i32_1 = arith.constant 0 : i32
    %c0_i32_2 = arith.constant 0 : i32
    return %arg0, %c0_i32, %c0_i32_0, %c0_i32_1 : i32, i32, i32, i32
  }
  func.func @transform_8(%arg0: i32) -> (i32, i32) {
    %c0_i32 = arith.constant 0 : i32
    %c0_i32_0 = arith.constant 0 : i32
    return %arg0, %c0_i32 : i32, i32
  }
}

module attributes {stable_mosaic.version = 11 : i64} {
  func.func @_roi_head_kernel(%arg0: i32, %arg1: memref<32x128xbf16, #tpu.memory_space<vmem>>, %arg2: memref<128x256xbf16, #tpu.memory_space<vmem>>, %arg3: memref<1x256xf32, #tpu.memory_space<vmem>>, %arg4: memref<256x512xbf16, #tpu.memory_space<vmem>>, %arg5: memref<1x512xf32, #tpu.memory_space<vmem>>, %arg6: memref<32x128xf32, #tpu.memory_space<vmem>>, %arg7: memref<32x384xf32, #tpu.memory_space<vmem>>) attributes {dimension_semantics = [#tpu.dimension_semantics<parallel>], iteration_bounds = array<i64: 1>, scalar_prefetch = 0 : i64, scratch_operands = 0 : i64, tpu.core_type = #tpu.core_type<tc>, window_params = [{transform_indices = @transform_0, window_bounds = array<i64: 32, 128>}, {pipeline_mode = #tpu.pipeline_mode<synchronous>, transform_indices = @transform_1, window_bounds = array<i64: 128, 256>}, {pipeline_mode = #tpu.pipeline_mode<synchronous>, transform_indices = @transform_2, window_bounds = array<i64: 1, 256>}, {pipeline_mode = #tpu.pipeline_mode<synchronous>, transform_indices = @transform_3, window_bounds = array<i64: 256, 512>}, {pipeline_mode = #tpu.pipeline_mode<synchronous>, transform_indices = @transform_4, window_bounds = array<i64: 1, 512>}, {transform_indices = @transform_5, window_bounds = array<i64: 32, 128>}, {transform_indices = @transform_6, window_bounds = array<i64: 32, 384>}]} {
    %c0 = arith.constant 0 : index
    %c0_0 = arith.constant 0 : index
    %0 = vector.load %arg1[%c0, %c0_0] : memref<32x128xbf16, #tpu.memory_space<vmem>>, vector<32x128xbf16>
    %c0_1 = arith.constant 0 : index
    %c0_2 = arith.constant 0 : index
    %1 = vector.load %arg2[%c0_1, %c0_2] : memref<128x256xbf16, #tpu.memory_space<vmem>>, vector<128x256xbf16>
    %cst = arith.constant dense<0.000000e+00> : vector<32x256xf32>
    %2 = tpu.matmul %0, %1, %cst {dimension_numbers = #tpu.dot_dimension_numbers<[1], [0], [0], [1], [0, 0, 1, 1], [], []>} : vector<32x128xbf16>, vector<128x256xbf16>, vector<32x256xf32> -> vector<32x256xf32>
    %c0_3 = arith.constant 0 : index
    %c0_4 = arith.constant 0 : index
    %3 = vector.load %arg3[%c0_3, %c0_4] : memref<1x256xf32, #tpu.memory_space<vmem>>, vector<1x256xf32>
    %4 = vector.broadcast %3 : vector<1x256xf32> to vector<32x256xf32>
    %5 = arith.addf %2, %4 : vector<32x256xf32>
    %cst_5 = arith.constant 0.000000e+00 : f32
    %6 = vector.broadcast %cst_5 : f32 to vector<32x256xf32>
    %7 = arith.maximumf %5, %6 : vector<32x256xf32>
    %8 = arith.truncf %7 : vector<32x256xf32> to vector<32x256xbf16>
    %c0_6 = arith.constant 0 : index
    %c0_7 = arith.constant 0 : index
    %9 = vector.load %arg4[%c0_6, %c0_7] : memref<256x512xbf16, #tpu.memory_space<vmem>>, vector<256x512xbf16>
    %cst_8 = arith.constant dense<0.000000e+00> : vector<32x512xf32>
    %10 = tpu.matmul %8, %9, %cst_8 {dimension_numbers = #tpu.dot_dimension_numbers<[1], [0], [0], [1], [0, 0, 1, 1], [], []>} : vector<32x256xbf16>, vector<256x512xbf16>, vector<32x512xf32> -> vector<32x512xf32>
    %c0_9 = arith.constant 0 : index
    %c0_10 = arith.constant 0 : index
    %11 = vector.load %arg5[%c0_9, %c0_10] : memref<1x512xf32, #tpu.memory_space<vmem>>, vector<1x512xf32>
    %12 = vector.broadcast %11 : vector<1x512xf32> to vector<32x512xf32>
    %13 = arith.addf %10, %12 : vector<32x512xf32>
    %14 = vector.extract_strided_slice %13 {offsets = [0, 0], sizes = [32, 128], strides = [1, 1]} : vector<32x512xf32> to vector<32x128xf32>
    %cst_11 = arith.constant dense<0xFF800000> : vector<32xf32>
    %15 = vector.multi_reduction <maximumf>, %14, %cst_11 [1] : vector<32x128xf32> to vector<32xf32>
    %16 = vector.shape_cast %15 : vector<32xf32> to vector<32x1xf32>
    %17 = vector.broadcast %16 : vector<32x1xf32> to vector<32x128xf32>
    %18 = arith.subf %14, %17 : vector<32x128xf32>
    %19 = math.exp %18 : vector<32x128xf32>
    %cst_12 = arith.constant dense<0.000000e+00> : vector<32xf32>
    %20 = vector.multi_reduction <add>, %19, %cst_12 [1] : vector<32x128xf32> to vector<32xf32>
    %21 = vector.shape_cast %20 : vector<32xf32> to vector<32x1xf32>
    %22 = vector.broadcast %21 : vector<32x1xf32> to vector<32x128xf32>
    %23 = arith.divf %19, %22 : vector<32x128xf32>
    %c0_13 = arith.constant 0 : index
    %c0_14 = arith.constant 0 : index
    %24 = vector.load %arg6[%c0_13, %c0_14] : memref<32x128xf32, #tpu.memory_space<vmem>>, vector<32x128xf32>
    tpu.vector_store %arg6[%c0_13, %c0_14], %23 {strides = array<i32>} : memref<32x128xf32, #tpu.memory_space<vmem>>, vector<32x128xf32>,
    %25 = vector.extract_strided_slice %13 {offsets = [0, 128], sizes = [32, 384], strides = [1, 1]} : vector<32x512xf32> to vector<32x384xf32>
    %c0_15 = arith.constant 0 : index
    %c0_16 = arith.constant 0 : index
    %26 = vector.load %arg7[%c0_15, %c0_16] : memref<32x384xf32, #tpu.memory_space<vmem>>, vector<32x384xf32>
    tpu.vector_store %arg7[%c0_15, %c0_16], %25 {strides = array<i32>} : memref<32x384xf32, #tpu.memory_space<vmem>>, vector<32x384xf32>,
    return
  }
  func.func @transform_0(%arg0: i32) -> (i32, i32) {
    %c0_i32 = arith.constant 0 : i32
    %c0_i32_0 = arith.constant 0 : i32
    return %arg0, %c0_i32 : i32, i32
  }
  func.func @transform_1(%arg0: i32) -> (i32, i32) {
    %c0_i32 = arith.constant 0 : i32
    %c0_i32_0 = arith.constant 0 : i32
    %c0_i32_1 = arith.constant 0 : i32
    return %c0_i32, %c0_i32_0 : i32, i32
  }
  func.func @transform_2(%arg0: i32) -> (i32, i32) {
    %c0_i32 = arith.constant 0 : i32
    %c0_i32_0 = arith.constant 0 : i32
    %c0_i32_1 = arith.constant 0 : i32
    return %c0_i32, %c0_i32_0 : i32, i32
  }
  func.func @transform_3(%arg0: i32) -> (i32, i32) {
    %c0_i32 = arith.constant 0 : i32
    %c0_i32_0 = arith.constant 0 : i32
    %c0_i32_1 = arith.constant 0 : i32
    return %c0_i32, %c0_i32_0 : i32, i32
  }
  func.func @transform_4(%arg0: i32) -> (i32, i32) {
    %c0_i32 = arith.constant 0 : i32
    %c0_i32_0 = arith.constant 0 : i32
    %c0_i32_1 = arith.constant 0 : i32
    return %c0_i32, %c0_i32_0 : i32, i32
  }
  func.func @transform_5(%arg0: i32) -> (i32, i32) {
    %c0_i32 = arith.constant 0 : i32
    %c0_i32_0 = arith.constant 0 : i32
    return %arg0, %c0_i32 : i32, i32
  }
  func.func @transform_6(%arg0: i32) -> (i32, i32) {
    %c0_i32 = arith.constant 0 : i32
    %c0_i32_0 = arith.constant 0 : i32
    return %arg0, %c0_i32 : i32, i32
  }
}

</mosaic_0001>

<llo_original>
// kernel: maskrcnn_forward.3
$region0: #{maskrcnn_forward.3}
  #allocation0 [shape = 'u32[]', space=smem, size = 0x4, offset = 0x4, fixed_abs, tag = 'smem constant byte address 0x4 - core index']
  #allocation1 [shape = 'u32[144,128]{1,0:T(1,128)}', space=vmem, size = 0x12000, scoped, tag = 'internal scratch']
  %s0 = inlined_call_operand.hbm [shape: bf16[2,17,17,12], index: 0, kind: input, shape index: {}]
  %s1 = inlined_call_operand.hbm [shape: bf16[48,128], index: 1, kind: input, shape index: {}]
  %s2 = inlined_call_operand.hbm [shape: f32[1,128], index: 2, kind: input, shape index: {}]
  %s3 = inlined_call_operand.hbm [shape: bf16[512,128], index: 3, kind: output, shape index: {}]
  %s4 = sld [smem:[#allocation0]]
  $region57: #{maskrcnn_forward.3} parent=0
    _
  %s6 = ssub.s32 1, %s4
  %s7 = scalar_select 0, %s6, %s4
  $region1: #{maskrcnn_forward.3} parent=0
    #allocation2 [shape = 'u8[208896]{0}', space=vmem, size = 0x33000, scoped, tag = 'input window, operand 0']
    #allocation3 [shape = 's32[2]{0}', space=sflag, size = 0x8, scoped, tag = 'scoped memory for maskrcnn_forward.3']
    #allocation4 [shape = 's32[2]{0}', space=sflag, size = 0x8, scoped, tag = 'scoped memory for maskrcnn_forward.3']
    #allocation5 [shape = 'u8[12288]{0}', space=vmem, size = 0x3000, scoped, tag = 'input window, operand 1, single buffered']
    #allocation6 [shape = 's32[1]{0}', space=sflag, size = 0x4, scoped, tag = 'scoped memory for maskrcnn_forward.3']
    #allocation7 [shape = 'u8[512]{0}', space=vmem, size = 0x400, scoped, tag = 'input window, operand 2, single buffered']
    #allocation8 [shape = 'u8[131072]{0}', space=vmem, size = 0x20000, scoped, tag = 'output window, operand 0']
    %8 = vsyncpa [#allocation3], 0
    %s9 = scalar_lea.sflag [#allocation3], 1
    %10 = vsyncpa %s9, 0
    %11 = vsyncpa [#allocation6], 0
    %12 = vsyncpa [#allocation4], 0
    %s13 = scalar_lea.sflag [#allocation4], 1
    %14 = vsyncpa %s13, 0
    loop: start=0, step=1, limit=4
    $region2: #{maskrcnn_forward.3} parent=1 // loop_pre_header
      _
    $region3: #{maskrcnn_forward.3} parent=1 // loop_header
      %s16 = sphi 0, %s20
      %p17 = scmp.ge.s32.totalorder %s16, 4
      %s26 = sphi 0, %s28
      %s29 = sphi 0, %s26
      %s30 = sphi 0, %s29
      %s46 = sphi 0, %s30
      %s50 = sphi 0, %s50
      %s52 = sphi 0, %s50
      %s53 = sphi 0, %s52
      %s67 = sphi 0, %s53
      %s71 = sphi 0, %s71
      %s73 = sphi 0, %s71
      %s74 = sphi 0, %s73
      %s88 = sphi 0, %s74
      %s94 = sphi 0, %s96
      %s97 = sphi 0, %s94
      %s98 = sphi 0, %s97
      %s114 = sphi 0, %s98
    $region4: #{maskrcnn_forward.3} parent=1 // loop_header_branch
      %19 = sbr.rel (%p17) target = $region8
    $region5: #{maskrcnn_forward.3} parent=1 // loop_body
      %s21 = ssub.s32 %s16, 1
      %s22 = ssub.s32 %s16, 2
      %s23 = sadd.s32 %s16, 1
      %s24 = ssub.s32 %s16, %s23
      %p25 = scmp.eq.s32.totalorder %s24, 0
      %s27 = sadd.s32 %s26, 1
      %s28 = scalar_select %p25, %s26, %s27
      %p31 = pneg %p25
      %p32 = scmp.eq.s32.totalorder %s16, 1
      %p33 = por %p31, %p32
      %p34 = scmp.ne.s32.totalorder %s26, %s29
      %p35 = scmp.eq.s32.totalorder %s16, 0
      %p36 = por %p34, %p35
      %p37 = scmp.ne.s32.totalorder %s26, %s29
      %p38 = scmp.eq.s32.totalorder %s21, 1
      %p39 = por %p37, %p38
      %p40 = scmp.ne.s32.totalorder %s29, %s30
      %p41 = scmp.eq.s32.totalorder %s21, 0
      %p42 = por %p40, %p41
      %p43 = scmp.ne.s32.totalorder %s29, %s30
      %p44 = scmp.eq.s32.totalorder %s22, 1
      %p45 = por %p43, %p44
      %p47 = scmp.ne.s32.totalorder %s30, %s46
      %p48 = scmp.eq.s32.totalorder %s22, 0
      %p49 = por %p47, %p48
      %s51 = sadd.s32 %s50, 1
      %p54 = scmp.eq.s32.totalorder %s16, 1
      %p55 = scmp.ne.s32.totalorder %s50, %s52
      %p56 = scmp.eq.s32.totalorder %s16, 0
      %p57 = por %p55, %p56
      %p58 = scmp.ne.s32.totalorder %s50, %s52
      %p59 = scmp.eq.s32.totalorder %s21, 1
      %p60 = por %p58, %p59
      %p61 = scmp.ne.s32.totalorder %s52, %s53
      %p62 = scmp.eq.s32.totalorder %s21, 0
      %p63 = por %p61, %p62
      %p64 = scmp.ne.s32.totalorder %s52, %s53
      %p65 = scmp.eq.s32.totalorder %s22, 1
      %p66 = por %p64, %p65
      %p68 = scmp.ne.s32.totalorder %s53, %s67
      %p69 = scmp.eq.s32.totalorder %s22, 0
      %p70 = por %p68, %p69
      %s72 = sadd.s32 %s71, 1
      %p75 = scmp.eq.s32.totalorder %s16, 1
      %p76 = scmp.ne.s32.totalorder %s71, %s73
      %p77 = scmp.eq.s32.totalorder %s16, 0
      %p78 = por %p76, %p77
      %p79 = scmp.ne.s32.totalorder %s71, %s73
      %p80 = scmp.eq.s32.totalorder %s21, 1
      %p81 = por %p79, %p80
      %p82 = scmp.ne.s32.totalorder %s73, %s74
      %p83 = scmp.eq.s32.totalorder %s21, 0
      %p84 = por %p82, %p83
      %p85 = scmp.ne.s32.totalorder %s73, %s74
      %p86 = scmp.eq.s32.totalorder %s22, 1
      %p87 = por %p85, %p86
      %p89 = scmp.ne.s32.totalorder %s74, %s88
      %p90 = scmp.eq.s32.totalorder %s22, 0
      %p91 = por %p89, %p90
      %s92 = ssub.s32 %s16, %s23
      %p93 = scmp.eq.s32.totalorder %s92, 0
      %s95 = sadd.s32 %s94, 1
      %s96 = scalar_select %p93, %s94, %s95
      %p99 = pneg %p93
      %p100 = scmp.eq.s32.totalorder %s16, 1
      %p101 = por %p99, %p100
      %p102 = scmp.ne.s32.totalorder %s94, %s97
      %p103 = scmp.eq.s32.totalorder %s16, 0
      %p104 = por %p102, %p103
      %p105 = scmp.ne.s32.totalorder %s94, %s97
      %p106 = scmp.eq.s32.totalorder %s21, 1
      %p107 = por %p105, %p106
      %p108 = scmp.ne.s32.totalorder %s97, %s98
      %p109 = scmp.eq.s32.totalorder %s21, 0
      %p110 = por %p108, %p109
      %p111 = scmp.ne.s32.totalorder %s97, %s98
      %p112 = scmp.eq.s32.totalorder %s22, 1
      %p113 = por %p111, %p112
      %p115 = scmp.ne.s32.totalorder %s98, %s114
      %p116 = scmp.eq.s32.totalorder %s22, 0
      %p117 = por %p115, %p116
      %p118 = scmp.le.s32.totalorder 1, %s16
      %p119 = scmp.lt.s32.totalorder %s16, 3
      %p120 = pnand %p118, %p119
      %p121 = pneg %p120
      // Predicated region
      $region9: #{maskrcnn_forward.3} parent=5 // pred_check
        _
      $region10: #{maskrcnn_forward.3} parent=5 // pred_check_branch
        %123 = sbr.rel (%p120) target = $region12
      $region11: #{maskrcnn_forward.3} parent=5 // pred_region
        %s124 = ssub.s32 %s16, 1
        // Predicated region
        $region13: #{maskrcnn_forward.3} parent=11 // pred_check
          %p125 = pneg %p63
        $region14: #{maskrcnn_forward.3} parent=11 // pred_check_branch
          %127 = sbr.rel (%p125) target = $region16
        $region15: #{maskrcnn_forward.3} parent=11 // pred_region
          %s129 = ssub.s32 384, 384
          %130 = vsyncadd [#allocation6], %s129
          %s131 = sshll.u32 [#allocation5], 4
          %s132 = int_to_ptr.vmem [resolvable:$true] %s131
          %137 = dma.hbm_to_vmem [thread:$0]  %s1, 384, %s132, [#allocation6], 64, 64, 4
        $region16: #{maskrcnn_forward.3} parent=11 // pred_fallthru
          _
        // Predicated region
        $region17: #{maskrcnn_forward.3} parent=11 // pred_check
          %p138 = pneg %p84
        $region18: #{maskrcnn_forward.3} parent=11 // pred_check_branch
          %140 = sbr.rel (%p138) target = $region20
        $region19: #{maskrcnn_forward.3} parent=11 // pred_region
          %s142 = ssub.s32 16, 16
          %143 = vsyncadd [#allocation6], %s142
          %s145 = sshll.u32 [#allocation7], 4
          %s146 = int_to_ptr.vmem [resolvable:$true] %s145
          %148 = dma.hbm_to_vmem [thread:$0]  %s2, 16, %s146, [#allocation6]
        $region20: #{maskrcnn_forward.3} parent=11 // pred_fallthru
          _
      $region12: #{maskrcnn_forward.3} parent=5 // pred_fallthru
        _
      %p149 = scmp.lt.s32.totalorder %s16, 2
      // Predicated region
      $region21: #{maskrcnn_forward.3} parent=5 // pred_check
        %p150 = pneg %p149
      $region22: #{maskrcnn_forward.3} parent=5 // pred_check_branch
        %152 = sbr.rel (%p150) target = $region24
      $region23: #{maskrcnn_forward.3} parent=5 // pred_region
        // Predicated region
        $region25: #{maskrcnn_forward.3} parent=23 // pred_check
          %p153 = pneg %p36
        $region26: #{maskrcnn_forward.3} parent=23 // pred_check_branch
          %155 = sbr.rel (%p153) target = $region28
        $region27: #{maskrcnn_forward.3} parent=23 // pred_region
          %s156 = sand.u32 %s26, 1
          %s157 = scalar_lea.sflag [#allocation3], %s156
          %s158 = sand.u32 %s26, 1
          %s159 = smul.addr %s158, 204
          %s160 = scalar_lea.vmem [#allocation2], %s159
          %s162 = ssub.s32 3264, 3264
          %163 = vsyncadd %s157, %s162
          %s164 = smul.addr %s16, 51
          %s165 = smul.addr %s164, 64
          %s166 = scalar_lea.hbm %s0, %s165
          %s167 = sshll.u32 %s160, 4
          %s168 = int_to_ptr.vmem [resolvable:$true] %s167
          %173 = dma.hbm_to_vmem [thread:$0]  %s166, 3264, %s168, %s157, 64, 64, 4
        $region28: #{maskrcnn_forward.3} parent=23 // pred_fallthru
          _
      $region24: #{maskrcnn_forward.3} parent=5 // pred_fallthru
        _
      %p174 = scmp.le.s32.totalorder 1, %s16
      %p175 = scmp.lt.s32.totalorder %s16, 3
      %p176 = pnand %p174, %p175
      %p177 = pneg %p176
      // Predicated region
      $region29: #{maskrcnn_forward.3} parent=5 // pred_check
        _
      $region30: #{maskrcnn_forward.3} parent=5 // pred_check_branch
        %179 = sbr.rel (%p176) target = $region32
      $region31: #{maskrcnn_forward.3} parent=5 // pred_region
        %s180 = ssub.s32 %s16, 1
        %s181 = sand.u32 %s29, 1
        %s182 = scalar_lea.sflag [#allocation3], %s181
        %s183 = sand.u32 %s29, 1
        %s184 = smul.addr %s183, 204
        %s185 = scalar_lea.vmem [#allocation2], %s184
        // Predicated region
        $region33: #{maskrcnn_forward.3} parent=31 // pred_check
          %p186 = pneg %p42
        $region34: #{maskrcnn_forward.3} parent=31 // pred_check_branch
          %188 = sbr.rel (%p186) target = $region36
        $region35: #{maskrcnn_forward.3} parent=31 // pred_region
          %189 = dma.done %s182, 3264
        $region36: #{maskrcnn_forward.3} parent=31 // pred_fallthru
          _
        // Predicated region
        $region37: #{maskrcnn_forward.3} parent=31 // pred_check
          %p190 = pneg %p63
        $region38: #{maskrcnn_forward.3} parent=31 // pred_check_branch
          %192 = sbr.rel (%p190) target = $region40
        $region39: #{maskrcnn_forward.3} parent=31 // pred_region
          %193 = dma.done [#allocation6], 384
        $region40: #{maskrcnn_forward.3} parent=31 // pred_fallthru
          _
        // Predicated region
        $region41: #{maskrcnn_forward.3} parent=31 // pred_check
          %p194 = pneg %p84
        $region42: #{maskrcnn_forward.3} parent=31 // pred_check_branch
          %196 = sbr.rel (%p194) target = $region44
        $region43: #{maskrcnn_forward.3} parent=31 // pred_region
          %197 = dma.done [#allocation6], 16
        $region44: #{maskrcnn_forward.3} parent=31 // pred_fallthru
          _
        %s198 = sand.u32 %s29, 1
        %s199 = scalar_lea.sflag [#allocation3], %s198
        %s200 = sand.u32 %s29, 1
        %s201 = smul.addr %s200, 204
        %s202 = scalar_lea.vmem [#allocation2], %s201
        %p203 = pneg %p42
        %p204 = pneg %p39
        %p205 = pneg %p63
        %p206 = pneg %p60
        %p207 = pneg %p84
        %p208 = pneg %p81
        %p209 = pneg %p110
        %p210 = pneg %p107
        %s211 = sand.u32 %s97, 1
        %s212 = scalar_lea.sflag [#allocation4], %s211
        %s213 = sand.u32 %s97, 1
        %s214 = smul.addr %s213, 128
        %s215 = scalar_lea.vmem [#allocation8], %s214
        %s216 = smul.u32 32, %s21
        %v218 = vld [vmem:[%s185] sm:$0xf]
        %v219 = vld [vmem:[%s185 + $0x4] sm:$0xf]
        %v220 = vld [vmem:[%s185 + $0x8] sm:$0x1]
        %v221 = vld [vmem:[%s185 + $0xc] sm:$0xf]
        %v222 = vld [vmem:[%s185 + $0x10] sm:$0xf]
        %v223 = vld [vmem:[%s185 + $0x14] sm:$0x1]
        %v224 = vld [vmem:[%s185 + $0x18] sm:$0xf]
        %v225 = vld [vmem:[%s185 + $0x1c] sm:$0xf]
        %v226 = vld [vmem:[%s185 + $0x20] sm:$0x1]
        %v227 = vld [vmem:[%s185 + $0x24] sm:$0xf]
        %v228 = vld [vmem:[%s185 + $0x28] sm:$0xf]
        %v229 = vld [vmem:[%s185 + $0x2c] sm:$0x1]
        %v230 = vld [vmem:[%s185 + $0x30] sm:$0xf]
        %v231 = vld [vmem:[%s185 + $0x34] sm:$0xf]
        %v232 = vld [vmem:[%s185 + $0x38] sm:$0x1]
        %v233 = vld [vmem:[%s185 + $0x3c] sm:$0xf]
        %v234 = vld [vmem:[%s185 + $0x40] sm:$0xf]
        %v235 = vld [vmem:[%s185 + $0x44] sm:$0x1]
        %v236 = vld [vmem:[%s185 + $0x48] sm:$0xf]
        %v237 = vld [vmem:[%s185 + $0x4c] sm:$0xf]
        %v238 = vld [vmem:[%s185 + $0x50] sm:$0x1]
        %v239 = vld [vmem:[%s185 + $0x54] sm:$0xf]
        %v240 = vld [vmem:[%s185 + $0x58] sm:$0xf]
        %v241 = vld [vmem:[%s185 + $0x5c] sm:$0x1]
        %v242 = vld [vmem:[%s185 + $0x60] sm:$0xf]
        %v243 = vld [vmem:[%s185 + $0x64] sm:$0xf]
        %v244 = vld [vmem:[%s185 + $0x68] sm:$0x1]
        %v245 = vld [vmem:[%s185 + $0x6c] sm:$0xf]
        %v246 = vld [vmem:[%s185 + $0x70] sm:$0xf]
        %v247 = vld [vmem:[%s185 + $0x74] sm:$0x1]
        %v248 = vld [vmem:[%s185 + $0x78] sm:$0xf]
        %v249 = vld [vmem:[%s185 + $0x7c] sm:$0xf]
        %v250 = vld [vmem:[%s185 + $0x80] sm:$0x1]
        %v251 = vld [vmem:[%s185 + $0x84] sm:$0xf]
        %v252 = vld [vmem:[%s185 + $0x88] sm:$0xf]
        %v253 = vld [vmem:[%s185 + $0x8c] sm:$0x1]
        %v254 = vld [vmem:[%s185 + $0x90] sm:$0xf]
        %v255 = vld [vmem:[%s185 + $0x94] sm:$0xf]
        %v256 = vld [vmem:[%s185 + $0x98] sm:$0x1]
        %v257 = vld [vmem:[%s185 + $0x9c] sm:$0xf]
        %v258 = vld [vmem:[%s185 + $0xa0] sm:$0xf]
        %v259 = vld [vmem:[%s185 + $0xa4] sm:$0x1]
        %v260 = vld [vmem:[%s185 + $0xa8] sm:$0xf]
        %v261 = vld [vmem:[%s185 + $0xac] sm:$0xf]
        %v262 = vld [vmem:[%s185 + $0xb0] sm:$0x1]
        %v263 = vld [vmem:[%s185 + $0xb4] sm:$0xf]
        %v264 = vld [vmem:[%s185 + $0xb8] sm:$0xf]
        %v265 = vld [vmem:[%s185 + $0xbc] sm:$0x1]
        %v266 = vld [vmem:[%s185 + $0xc0] sm:$0xf]
        %v267 = vld [vmem:[%s185 + $0xc4] sm:$0xf]
        %v268 = vld [vmem:[%s185 + $0xc8] sm:$0x1]
        %v269 = vld [vmem:[#allocation7] sm:$0x1]
        %vm270 = vsmask.f32 3328
        %vm271 = vsmask.f32 7440
        %vm272 = vmor %vm270, %vm271
        %v274 = vshrl.u32 %v218, 16
        %v276 = vrot.slane %v274, 4
        %v277 = vshll.u32 %v218, 16
        %v279 = vrot.slane %v277, 5
        %v280 = vor.u32 %v276, %v279
        %v281 = vrot.slane %v280, 4
        %v283 = vshll.u32 %v219, 16
        %v285 = vrot.slane %v283, 5
        %v286 = vsel %vm272, %v281, %v285
        %v287 = vshrl.u32 %v219, 16
        %v289 = vrot.slane %v287, 4
        %v290 = vor.u32 %v289, %v285
        %v291 = vrot.slane %v290, 4
        %v293 = vshll.u32 %v220, 16
        %v295 = vrot.slane %v293, 5
        %v296 = vsel %vm272, %v291, %v295
        %v298 = vshrl.u32 %v221, 16
        %v300 = vrot.slane %v298, 4
        %v301 = vshll.u32 %v221, 16
        %v303 = vrot.slane %v301, 5
        %v304 = vor.u32 %v300, %v303
        %v305 = vrot.slane %v304, 4
        %v307 = vshll.u32 %v222, 16
        %v309 = vrot.slane %v307, 5
        %v310 = vsel %vm272, %v305, %v309
        %v311 = vshrl.u32 %v222, 16
        %v313 = vrot.slane %v311, 4
        %v314 = vor.u32 %v313, %v309
        %v315 = vrot.slane %v314, 4
        %v317 = vshll.u32 %v223, 16
        %v319 = vrot.slane %v317, 5
        %v320 = vsel %vm272, %v315, %v319
        %v322 = vshrl.u32 %v224, 16
        %v324 = vrot.slane %v322, 4
        %v325 = vshll.u32 %v224, 16
        %v327 = vrot.slane %v325, 5
        %v328 = vor.u32 %v324, %v327
        %v329 = vrot.slane %v328, 4
        %v331 = vshll.u32 %v225, 16
        %v333 = vrot.slane %v331, 5
        %v334 = vsel %vm272, %v329, %v333
        %v335 = vshrl.u32 %v225, 16
        %v337 = vrot.slane %v335, 4
        %v338 = vor.u32 %v337, %v333
        %v339 = vrot.slane %v338, 4
        %v341 = vshll.u32 %v226, 16
        %v343 = vrot.slane %v341, 5
        %v344 = vsel %vm272, %v339, %v343
        %v346 = vshrl.u32 %v227, 16
        %v348 = vrot.slane %v346, 4
        %v349 = vshll.u32 %v227, 16
        %v351 = vrot.slane %v349, 5
        %v352 = vor.u32 %v348, %v351
        %v353 = vrot.slane %v352, 4
        %v355 = vshll.u32 %v228, 16
        %v357 = vrot.slane %v355, 5
        %v358 = vsel %vm272, %v353, %v357
        %v359 = vshrl.u32 %v228, 16
        %v361 = vrot.slane %v359, 4
        %v362 = vor.u32 %v361, %v357
        %v363 = vrot.slane %v362, 4
        %v365 = vshll.u32 %v229, 16
        %v367 = vrot.slane %v365, 5
        %v368 = vsel %vm272, %v363, %v367
        %v370 = vshrl.u32 %v230, 16
        %v372 = vrot.slane %v370, 4
        %v373 = vshll.u32 %v230, 16
        %v375 = vrot.slane %v373, 5
        %v376 = vor.u32 %v372, %v375
        %v377 = vrot.slane %v376, 4
        %v379 = vshll.u32 %v231, 16
        %v381 = vrot.slane %v379, 5
        %v382 = vsel %vm272, %v377, %v381
        %v383 = vshrl.u32 %v231, 16
        %v385 = vrot.slane %v383, 4
        %v386 = vor.u32 %v385, %v381
        %v387 = vrot.slane %v386, 4
        %v389 = vshll.u32 %v232, 16
        %v391 = vrot.slane %v389, 5
        %v392 = vsel %vm272, %v387, %v391
        %v394 = vshrl.u32 %v233, 16
        %v396 = vrot.slane %v394, 4
        %v397 = vshll.u32 %v233, 16
        %v399 = vrot.slane %v397, 5
        %v400 = vor.u32 %v396, %v399
        %v401 = vrot.slane %v400, 4
        %v403 = vshll.u32 %v234, 16
        %v405 = vrot.slane %v403, 5
        %v406 = vsel %vm272, %v401, %v405
        %v407 = vshrl.u32 %v234, 16
        %v409 = vrot.slane %v407, 4
        %v410 = vor.u32 %v409, %v405
        %v411 = vrot.slane %v410, 4
        %v413 = vshll.u32 %v235, 16
        %v415 = vrot.slane %v413, 5
        %v416 = vsel %vm272, %v411, %v415
        %v418 = vshrl.u32 %v236, 16
        %v420 = vrot.slane %v418, 4
        %v421 = vshll.u32 %v236, 16
        %v423 = vrot.slane %v421, 5
        %v424 = vor.u32 %v420, %v423
        %v425 = vrot.slane %v424, 4
        %v427 = vshll.u32 %v237, 16
        %v429 = vrot.slane %v427, 5
        %v430 = vsel %vm272, %v425, %v429
        %v431 = vshrl.u32 %v237, 16
        %v433 = vrot.slane %v431, 4
        %v434 = vor.u32 %v433, %v429
        %v435 = vrot.slane %v434, 4
        %v437 = vshll.u32 %v238, 16
        %v439 = vrot.slane %v437, 5
        %v440 = vsel %vm272, %v435, %v439
        %v442 = vshrl.u32 %v239, 16
        %v444 = vrot.slane %v442, 4
        %v445 = vshll.u32 %v239, 16
        %v447 = vrot.slane %v445, 5
        %v448 = vor.u32 %v444, %v447
        %v449 = vrot.slane %v448, 4
        %v451 = vshll.u32 %v240, 16
        %v453 = vrot.slane %v451, 5
        %v454 = vsel %vm272, %v449, %v453
        %v455 = vshrl.u32 %v240, 16
        %v457 = vrot.slane %v455, 4
        %v458 = vor.u32 %v457, %v453
        %v459 = vrot.slane %v458, 4
        %v461 = vshll.u32 %v241, 16
        %v463 = vrot.slane %v461, 5
        %v464 = vsel %vm272, %v459, %v463
        %v466 = vshrl.u32 %v242, 16
        %v468 = vrot.slane %v466, 4
        %v469 = vshll.u32 %v242, 16
        %v471 = vrot.slane %v469, 5
        %v472 = vor.u32 %v468, %v471
        %v473 = vrot.slane %v472, 4
        %v475 = vshll.u32 %v243, 16
        %v477 = vrot.slane %v475, 5
        %v478 = vsel %vm272, %v473, %v477
        %v479 = vshrl.u32 %v243, 16
        %v481 = vrot.slane %v479, 4
        %v482 = vor.u32 %v481, %v477
        %v483 = vrot.slane %v482, 4
        %v485 = vshll.u32 %v244, 16
        %v487 = vrot.slane %v485, 5
        %v488 = vsel %vm272, %v483, %v487
        %v490 = vshrl.u32 %v245, 16
        %v492 = vrot.slane %v490, 4
        %v493 = vshll.u32 %v245, 16
        %v495 = vrot.slane %v493, 5
        %v496 = vor.u32 %v492, %v495
        %v497 = vrot.slane %v496, 4
        %v499 = vshll.u32 %v246, 16
        %v501 = vrot.slane %v499, 5
        %v502 = vsel %vm272, %v497, %v501
        %v503 = vshrl.u32 %v246, 16
        %v505 = vrot.slane %v503, 4
        %v506 = vor.u32 %v505, %v501
        %v507 = vrot.slane %v506, 4
        %v509 = vshll.u32 %v247, 16
        %v511 = vrot.slane %v509, 5
        %v512 = vsel %vm272, %v507, %v511
        %v514 = vshrl.u32 %v248, 16
        %v516 = vrot.slane %v514, 4
        %v517 = vshll.u32 %v248, 16
        %v519 = vrot.slane %v517, 5
        %v520 = vor.u32 %v516, %v519
        %v521 = vrot.slane %v520, 4
        %v523 = vshll.u32 %v249, 16
        %v525 = vrot.slane %v523, 5
        %v526 = vsel %vm272, %v521, %v525
        %v527 = vshrl.u32 %v249, 16
        %v529 = vrot.slane %v527, 4
        %v530 = vor.u32 %v529, %v525
        %v531 = vrot.slane %v530, 4
        %v533 = vshll.u32 %v250, 16
        %v535 = vrot.slane %v533, 5
        %v536 = vsel %vm272, %v531, %v535
        %v538 = vshrl.u32 %v251, 16
        %v540 = vrot.slane %v538, 4
        %v541 = vshll.u32 %v251, 16
        %v543 = vrot.slane %v541, 5
        %v544 = vor.u32 %v540, %v543
        %v545 = vrot.slane %v544, 4
        %v547 = vshll.u32 %v252, 16
        %v549 = vrot.slane %v547, 5
        %v550 = vsel %vm272, %v545, %v549
        %v551 = vshrl.u32 %v252, 16
        %v553 = vrot.slane %v551, 4
        %v554 = vor.u32 %v553, %v549
        %v555 = vrot.slane %v554, 4
        %v557 = vshll.u32 %v253, 16
        %v559 = vrot.slane %v557, 5
        %v560 = vsel %vm272, %v555, %v559
        %v562 = vshrl.u32 %v254, 16
        %v564 = vrot.slane %v562, 4
        %v565 = vshll.u32 %v254, 16
        %v567 = vrot.slane %v565, 5
        %v568 = vor.u32 %v564, %v567
        %v569 = vrot.slane %v568, 4
        %v571 = vshll.u32 %v255, 16
        %v573 = vrot.slane %v571, 5
        %v574 = vsel %vm272, %v569, %v573
        %v575 = vshrl.u32 %v255, 16
        %v577 = vrot.slane %v575, 4
        %v578 = vor.u32 %v577, %v573
        %v579 = vrot.slane %v578, 4
        %v581 = vshll.u32 %v256, 16
        %v583 = vrot.slane %v581, 5
        %v584 = vsel %vm272, %v579, %v583
        %v586 = vshrl.u32 %v257, 16
        %v588 = vrot.slane %v586, 4
        %v589 = vshll.u32 %v257, 16
        %v591 = vrot.slane %v589, 5
        %v592 = vor.u32 %v588, %v591
        %v593 = vrot.slane %v592, 4
        %v595 = vshll.u32 %v258, 16
        %v597 = vrot.slane %v595, 5
        %v598 = vsel %vm272, %v593, %v597
        %v599 = vshrl.u32 %v258, 16
        %v601 = vrot.slane %v599, 4
        %v602 = vor.u32 %v601, %v597
        %v603 = vrot.slane %v602, 4
        %v605 = vshll.u32 %v259, 16
        %v607 = vrot.slane %v605, 5
        %v608 = vsel %vm272, %v603, %v607
        %v610 = vshrl.u32 %v260, 16
        %v612 = vrot.slane %v610, 4
        %v613 = vshll.u32 %v260, 16
        %v615 = vrot.slane %v613, 5
        %v616 = vor.u32 %v612, %v615
        %v617 = vrot.slane %v616, 4
        %v619 = vshll.u32 %v261, 16
        %v621 = vrot.slane %v619, 5
        %v622 = vsel %vm272, %v617, %v621
        %v623 = vshrl.u32 %v261, 16
        %v625 = vrot.slane %v623, 4
        %v626 = vor.u32 %v625, %v621
        %v627 = vrot.slane %v626, 4
        %v629 = vshll.u32 %v262, 16
        %v631 = vrot.slane %v629, 5
        %v632 = vsel %vm272, %v627, %v631
        %v634 = vshrl.u32 %v263, 16
        %v636 = vrot.slane %v634, 4
        %v637 = vshll.u32 %v263, 16
        %v639 = vrot.slane %v637, 5
        %v640 = vor.u32 %v636, %v639
        %v641 = vrot.slane %v640, 4
        %v643 = vshll.u32 %v264, 16
        %v645 = vrot.slane %v643, 5
        %v646 = vsel %vm272, %v641, %v645
        %v647 = vshrl.u32 %v264, 16
        %v649 = vrot.slane %v647, 4
        %v650 = vor.u32 %v649, %v645
        %v651 = vrot.slane %v650, 4
        %v653 = vshll.u32 %v265, 16
        %v655 = vrot.slane %v653, 5
        %v656 = vsel %vm272, %v651, %v655
        %v658 = vshrl.u32 %v266, 16
        %v660 = vrot.slane %v658, 4
        %v661 = vshll.u32 %v266, 16
        %v663 = vrot.slane %v661, 5
        %v664 = vor.u32 %v660, %v663
        %v665 = vrot.slane %v664, 4
        %v667 = vshll.u32 %v267, 16
        %v669 = vrot.slane %v667, 5
        %v670 = vsel %vm272, %v665, %v669
        %v671 = vshrl.u32 %v267, 16
        %v673 = vrot.slane %v671, 4
        %v674 = vor.u32 %v673, %v669
        %v675 = vrot.slane %v674, 4
        %v677 = vshll.u32 %v268, 16
        %v679 = vrot.slane %v677, 5
        %v680 = vsel %vm272, %v675, %v679
        %v713 = vunpack.c.l.b16 %v218
        %v714 = vunpack.c.l.b16 %v219
        %v715 = vunpack.c.l.b16 %v221
        %v716 = vunpack.c.l.b16 %v222
        %v717 = vunpack.c.l.b16 %v224
        %v718 = vunpack.c.l.b16 %v225
        %v719 = vunpack.c.l.b16 %v227
        %v720 = vunpack.c.l.b16 %v228
        %v721 = vunpack.c.l.b16 %v230
        %v722 = vunpack.c.l.b16 %v231
        %v723 = vunpack.c.l.b16 %v233
        %v724 = vunpack.c.l.b16 %v234
        %v725 = vunpack.c.l.b16 %v236
        %v726 = vunpack.c.l.b16 %v237
        %v727 = vunpack.c.l.b16 %v239
        %v728 = vunpack.c.l.b16 %v240
        %v729 = vunpack.c.l.b16 %v242
        %v730 = vunpack.c.l.b16 %v243
        %v731 = vunpack.c.l.b16 %v245
        %v732 = vunpack.c.l.b16 %v246
        %v733 = vunpack.c.l.b16 %v248
        %v734 = vunpack.c.l.b16 %v249
        %v735 = vunpack.c.l.b16 %v251
        %v736 = vunpack.c.l.b16 %v252
        %v737 = vunpack.c.l.b16 %v254
        %v738 = vunpack.c.l.b16 %v255
        %v739 = vunpack.c.l.b16 %v257
        %v740 = vunpack.c.l.b16 %v258
        %v741 = vunpack.c.l.b16 %v260
        %v742 = vunpack.c.l.b16 %v261
        %v743 = vunpack.c.l.b16 %v263
        %v744 = vunpack.c.l.b16 %v264
        %v745 = vpack.c.b16 %v714, %v713
        %v746 = vpack.c.b16 %v716, %v715
        %v747 = vpack.c.b16 %v718, %v717
        %v748 = vpack.c.b16 %v720, %v719
        %v749 = vpack.c.b16 %v722, %v721
        %v750 = vpack.c.b16 %v724, %v723
        %v751 = vpack.c.b16 %v726, %v725
        %v752 = vpack.c.b16 %v728, %v727
        %v753 = vpack.c.b16 %v730, %v729
        %v754 = vpack.c.b16 %v732, %v731
        %v755 = vpack.c.b16 %v734, %v733
        %v756 = vpack.c.b16 %v736, %v735
        %v757 = vpack.c.b16 %v738, %v737
        %v758 = vpack.c.b16 %v740, %v739
        %v759 = vpack.c.b16 %v742, %v741
        %v760 = vpack.c.b16 %v744, %v743
        %v761 = vunpack.c.l.b16 %v286
        %v762 = vunpack.c.l.b16 %v296
        %v763 = vunpack.c.l.b16 %v310
        %v764 = vunpack.c.l.b16 %v320
        %v765 = vunpack.c.l.b16 %v334
        %v766 = vunpack.c.l.b16 %v344
        %v767 = vunpack.c.l.b16 %v358
        %v768 = vunpack.c.l.b16 %v368
        %v769 = vunpack.c.l.b16 %v382
        %v770 = vunpack.c.l.b16 %v392
        %v771 = vunpack.c.l.b16 %v406
        %v772 = vunpack.c.l.b16 %v416
        %v773 = vunpack.c.l.b16 %v430
        %v774 = vunpack.c.l.b16 %v440
        %v775 = vunpack.c.l.b16 %v454
        %v776 = vunpack.c.l.b16 %v464
        %v777 = vunpack.c.l.b16 %v478
        %v778 = vunpack.c.l.b16 %v488
        %v779 = vunpack.c.l.b16 %v502
        %v780 = vunpack.c.l.b16 %v512
        %v781 = vunpack.c.l.b16 %v526
        %v782 = vunpack.c.l.b16 %v536
        %v783 = vunpack.c.l.b16 %v550
        %v784 = vunpack.c.l.b16 %v560
        %v785 = vunpack.c.l.b16 %v574
        %v786 = vunpack.c.l.b16 %v584
        %v787 = vunpack.c.l.b16 %v598
        %v788 = vunpack.c.l.b16 %v608
        %v789 = vunpack.c.l.b16 %v622
        %v790 = vunpack.c.l.b16 %v632
        %v791 = vunpack.c.l.b16 %v646
        %v792 = vunpack.c.l.b16 %v656
        %v793 = vpack.c.b16 %v762, %v761
        %v794 = vpack.c.b16 %v764, %v763
        %v795 = vpack.c.b16 %v766, %v765
        %v796 = vpack.c.b16 %v768, %v767
        %v797 = vpack.c.b16 %v770, %v769
        %v798 = vpack.c.b16 %v772, %v771
        %v799 = vpack.c.b16 %v774, %v773
        %v800 = vpack.c.b16 %v776, %v775
        %v801 = vpack.c.b16 %v778, %v777
        %v802 = vpack.c.b16 %v780, %v779
        %v803 = vpack.c.b16 %v782, %v781
        %v804 = vpack.c.b16 %v784, %v783
        %v805 = vpack.c.b16 %v786, %v785
        %v806 = vpack.c.b16 %v788, %v787
        %v807 = vpack.c.b16 %v790, %v789
        %v808 = vpack.c.b16 %v792, %v791
        %809 = vrot.lane.b32.xlu0 %v793, 12
        %v810 = vpop.permute.xlu0 %809
        %811 = vrot.lane.b32.xlu0 %v794, 12
        %v812 = vpop.permute.xlu0 %811
        %813 = vrot.lane.b32.xlu0 %v795, 12
        %v814 = vpop.permute.xlu0 %813
        %815 = vrot.lane.b32.xlu0 %v796, 12
        %v816 = vpop.permute.xlu0 %815
        %817 = vrot.lane.b32.xlu0 %v797, 12
        %v818 = vpop.permute.xlu0 %817
        %819 = vrot.lane.b32.xlu0 %v798, 12
        %v820 = vpop.permute.xlu0 %819
        %821 = vrot.lane.b32.xlu0 %v799, 12
        %v822 = vpop.permute.xlu0 %821
        %823 = vrot.lane.b32.xlu0 %v800, 12
        %v824 = vpop.permute.xlu0 %823
        %825 = vrot.lane.b32.xlu0 %v801, 12
        %v826 = vpop.permute.xlu0 %825
        %827 = vrot.lane.b32.xlu0 %v802, 12
        %v828 = vpop.permute.xlu0 %827
        %829 = vrot.lane.b32.xlu0 %v803, 12
        %v830 = vpop.permute.xlu0 %829
        %831 = vrot.lane.b32.xlu0 %v804, 12
        %v832 = vpop.permute.xlu0 %831
        %833 = vrot.lane.b32.xlu0 %v805, 12
        %v834 = vpop.permute.xlu0 %833
        %835 = vrot.lane.b32.xlu0 %v806, 12
        %v836 = vpop.permute.xlu0 %835
        %837 = vrot.lane.b32.xlu0 %v807, 12
        %v838 = vpop.permute.xlu0 %837
        %839 = vrot.lane.b32.xlu0 %v808, 12
        %v840 = vpop.permute.xlu0 %839
        %v843 = vunpack.c.l.b16 %v266
        %v844 = vunpack.c.l.b16 %v267
        %v845 = vpack.c.b16 %v844, %v843
        %846 = vrot.lane.b32.xlu0 %v746, 24
        %v847 = vpop.permute.xlu0 %846
        %848 = vrot.lane.b32.xlu0 %v747, 24
        %v849 = vpop.permute.xlu0 %848
        %850 = vrot.lane.b32.xlu0 %v748, 24
        %v851 = vpop.permute.xlu0 %850
        %852 = vrot.lane.b32.xlu0 %v749, 24
        %v853 = vpop.permute.xlu0 %852
        %854 = vrot.lane.b32.xlu0 %v750, 24
        %v855 = vpop.permute.xlu0 %854
        %856 = vrot.lane.b32.xlu0 %v751, 24
        %v857 = vpop.permute.xlu0 %856
        %858 = vrot.lane.b32.xlu0 %v752, 24
        %v859 = vpop.permute.xlu0 %858
        %860 = vrot.lane.b32.xlu0 %v753, 24
        %v861 = vpop.permute.xlu0 %860
        %862 = vrot.lane.b32.xlu0 %v754, 24
        %v863 = vpop.permute.xlu0 %862
        %864 = vrot.lane.b32.xlu0 %v755, 24
        %v865 = vpop.permute.xlu0 %864
        %866 = vrot.lane.b32.xlu0 %v756, 24
        %v867 = vpop.permute.xlu0 %866
        %868 = vrot.lane.b32.xlu0 %v757, 24
        %v869 = vpop.permute.xlu0 %868
        %870 = vrot.lane.b32.xlu0 %v758, 24
        %v871 = vpop.permute.xlu0 %870
        %872 = vrot.lane.b32.xlu0 %v759, 24
        %v873 = vpop.permute.xlu0 %872
        %874 = vrot.lane.b32.xlu0 %v760, 24
        %v875 = vpop.permute.xlu0 %874
        %876 = vrot.lane.b32.xlu0 %v845, 24
        %v877 = vpop.permute.xlu0 %876
        %v878 = vunpack.c.l.b16 %v670
        %v879 = vunpack.c.l.b16 %v680
        %v880 = vpack.c.b16 %v879, %v878
        %881 = vrot.lane.b32.xlu0 %v794, 36
        %v882 = vpop.permute.xlu0 %881
        %883 = vrot.lane.b32.xlu0 %v795, 36
        %v884 = vpop.permute.xlu0 %883
        %885 = vrot.lane.b32.xlu0 %v796, 36
        %v886 = vpop.permute.xlu0 %885
        %887 = vrot.lane.b32.xlu0 %v797, 36
        %v888 = vpop.permute.xlu0 %887
        %889 = vrot.lane.b32.xlu0 %v798, 36
        %v890 = vpop.permute.xlu0 %889
        %891 = vrot.lane.b32.xlu0 %v799, 36
        %v892 = vpop.permute.xlu0 %891
        %893 = vrot.lane.b32.xlu0 %v800, 36
        %v894 = vpop.permute.xlu0 %893
        %895 = vrot.lane.b32.xlu0 %v801, 36
        %v896 = vpop.permute.xlu0 %895
        %897 = vrot.lane.b32.xlu0 %v802, 36
        %v898 = vpop.permute.xlu0 %897
        %899 = vrot.lane.b32.xlu0 %v803, 36
        %v900 = vpop.permute.xlu0 %899
        %901 = vrot.lane.b32.xlu0 %v804, 36
        %v902 = vpop.permute.xlu0 %901
        %903 = vrot.lane.b32.xlu0 %v805, 36
        %v904 = vpop.permute.xlu0 %903
        %905 = vrot.lane.b32.xlu0 %v806, 36
        %v906 = vpop.permute.xlu0 %905
        %907 = vrot.lane.b32.xlu0 %v807, 36
        %v908 = vpop.permute.xlu0 %907
        %909 = vrot.lane.b32.xlu0 %v808, 36
        %v910 = vpop.permute.xlu0 %909
        %911 = vrot.lane.b32.xlu0 %v880, 36
        %v912 = vpop.permute.xlu0 %911
        %vm913 = vcmask 97280
        %v916 = vsel %vm913, %v745, %v810
        %v919 = vsel %vm913, %v746, %v812
        %v922 = vsel %vm913, %v747, %v814
        %v925 = vsel %vm913, %v748, %v816
        %v928 = vsel %vm913, %v749, %v818
        %v931 = vsel %vm913, %v750, %v820
        %v934 = vsel %vm913, %v751, %v822
        %v937 = vsel %vm913, %v752, %v824
        %v940 = vsel %vm913, %v753, %v826
        %v943 = vsel %vm913, %v754, %v828
        %v946 = vsel %vm913, %v755, %v830
        %v949 = vsel %vm913, %v756, %v832
        %v952 = vsel %vm913, %v757, %v834
        %v955 = vsel %vm913, %v758, %v836
        %v958 = vsel %vm913, %v759, %v838
        %v961 = vsel %vm913, %v760, %v840
        %vm962 = vcmask 195584
        %v964 = vsel %vm962, %v916, %v847
        %v966 = vsel %vm962, %v919, %v849
        %v968 = vsel %vm962, %v922, %v851
        %v970 = vsel %vm962, %v925, %v853
        %v972 = vsel %vm962, %v928, %v855
        %v974 = vsel %vm962, %v931, %v857
        %v976 = vsel %vm962, %v934, %v859
        %v978 = vsel %vm962, %v937, %v861
        %v980 = vsel %vm962, %v940, %v863
        %v982 = vsel %vm962, %v943, %v865
        %v984 = vsel %vm962, %v946, %v867
        %v986 = vsel %vm962, %v949, %v869
        %v988 = vsel %vm962, %v952, %v871
        %v990 = vsel %vm962, %v955, %v873
        %v992 = vsel %vm962, %v958, %v875
        %v994 = vsel %vm962, %v961, %v877
        %vm995 = vcmask 293888
        %v997 = vsel %vm995, %v964, %v882
        %v999 = vsel %vm995, %v966, %v884
        %v1001 = vsel %vm995, %v968, %v886
        %v1003 = vsel %vm995, %v970, %v888
        %v1005 = vsel %vm995, %v972, %v890
        %v1007 = vsel %vm995, %v974, %v892
        %v1009 = vsel %vm995, %v976, %v894
        %v1011 = vsel %vm995, %v978, %v896
        %v1013 = vsel %vm995, %v980, %v898
        %v1015 = vsel %vm995, %v982, %v900
        %v1017 = vsel %vm995, %v984, %v902
        %v1019 = vsel %vm995, %v986, %v904
        %v1021 = vsel %vm995, %v988, %v906
        %v1023 = vsel %vm995, %v990, %v908
        %v1025 = vsel %vm995, %v992, %v910
        %v1027 = vsel %vm995, %v994, %v912
        %v1028 = vld [vmem:[#allocation5] sm:$0xf]
        %v1029 = vld [vmem:[#allocation5 + $0x4] sm:$0xf]
        %v1030 = vld [vmem:[#allocation5 + $0x8] sm:$0xf]
        %v1031 = vld [vmem:[#allocation5 + $0xc] sm:$0xf]
        %v1032 = vld [vmem:[#allocation5 + $0x10] sm:$0xf]
        %v1033 = vld [vmem:[#allocation5 + $0x14] sm:$0xf]
        %v1035 = vlaneseq
        %v1036 = vshrl.u32 %v1035, 7
        %v1037 = vsub.s32 0, %v1036
        %v1038 = vrot.slane %v269, %v1037
        %v1046 = vunpack.c.l.b16 %v1028
        %v1047 = vunpack.c.l.b16 %v1029
        %v1048 = vunpack.c.l.b16 %v1030
        %v1049 = vunpack.c.l.b16 %v1031
        %v1050 = vunpack.c.l.b16 %v1032
        %v1051 = vunpack.c.l.b16 %v1033
        %v1052 = vpack.c.b16 %v1047, %v1046
        %v1053 = vpack.c.b16 %v1049, %v1048
        %v1054 = vpack.c.b16 %v1051, %v1050
        %vm1058 = vcmask 392192
        %v1059 = vsel %vm1058, %v997, 0
        %v1061 = vsel %vm1058, %v999, 0
        %v1063 = vsel %vm1058, %v1001, 0
        %v1065 = vsel %vm1058, %v1003, 0
        %v1067 = vsel %vm1058, %v1005, 0
        %v1069 = vsel %vm1058, %v1007, 0
        %v1071 = vsel %vm1058, %v1009, 0
        %v1073 = vsel %vm1058, %v1011, 0
        %v1075 = vsel %vm1058, %v1013, 0
        %v1077 = vsel %vm1058, %v1015, 0
        %v1079 = vsel %vm1058, %v1017, 0
        %v1081 = vsel %vm1058, %v1019, 0
        %v1083 = vsel %vm1058, %v1021, 0
        %v1085 = vsel %vm1058, %v1023, 0
        %v1087 = vsel %vm1058, %v1025, 0
        %v1089 = vsel %vm1058, %v1027, 0
        %1091 = vmatprep.subr.bf16.mxu0 0
        %1092 = vmatpush1.bf16.msra.mxu0 %v1052
        %1093 = vmatprep.subr.bf16.mxu0 0
        %1094 = vmatpush1.bf16.msra.mxu0 %v1053
        %1095 = vmatprep.subr.bf16.mxu0 0
        %1096 = vmatpush1.bf16.msra.mxu0 %v1054
        %1097 = vmatprep.subr.bf16.mxu0 0
        %1098 = vmatpush1.bf16.msra.mxu0 0
        %1099 = vmatprep.subr.bf16.mxu0 0
        %1100 = vmatpush1.bf16.msra.mxu0 0
        %1101 = vmatprep.subr.bf16.mxu0 0
        %1102 = vmatpush1.bf16.msra.mxu0 0
        %1103 = vmatprep.subr.bf16.mxu0 0
        %1104 = vmatpush1.bf16.msra.mxu0 0
        %1105 = vmatprep.subr.bf16.mxu0 0
        %1106 = vmatpush1.bf16.msra.mxu0 0
        %1107 = vmatprep.subr.bf16.mxu0 0
        %1108 = vmatpush1.bf16.msra.mxu0 0
        %1109 = vmatprep.subr.bf16.mxu0 0
        %1110 = vmatpush1.bf16.msra.mxu0 0
        %1111 = vmatprep.subr.bf16.mxu0 0
        %1112 = vmatpush1.bf16.msra.mxu0 0
        %1113 = vmatprep.subr.bf16.mxu0 0
        %1114 = vmatpush1.bf16.msra.mxu0 0
        %1115 = vmatprep.subr.bf16.mxu0 0
        %1116 = vmatpush1.bf16.msra.mxu0 0
        %1117 = vmatprep.subr.bf16.mxu0 0
        %1118 = vmatpush1.bf16.msra.mxu0 0
        %1119 = vmatprep.subr.bf16.mxu0 0
        %1120 = vmatpush1.bf16.msra.mxu0 0
        %1121 = vmatprep.subr.bf16.mxu0 0
        %1122 = vmatpush1.bf16.msra.mxu0 0
        %1123 = vmatprep.mubr.bf16.mxu0 0
        %1124 = vmatmul.mubr.bf16.gmra.mrb[0].mxu0 %v1059
        %v1125 = vpop.f32.mrb[0].mxu0
        %v1126 = vadd.f32 %v1038, %v1125
        %v1127 = vpop.f32.mrb[0].mxu0
        %v1128 = vpop.f32.mrb[0].mxu0
        %v1129 = vadd.f32 %v1038, %v1128
        %v1130 = vpop.f32.mrb[0].mxu0
        %1131 = vmatprep.mubr.bf16.mxu0 0
        %1132 = vmatmul.mubr.bf16.gmra.mrb[0].mxu0 %v1061
        %v1133 = vpop.f32.mrb[0].mxu0
        %v1134 = vadd.f32 %v1038, %v1133
        %v1135 = vpop.f32.mrb[0].mxu0
        %v1136 = vpop.f32.mrb[0].mxu0
        %v1137 = vadd.f32 %v1038, %v1136
        %v1138 = vpop.f32.mrb[0].mxu0
        %1139 = vmatprep.mubr.bf16.mxu0 0
        %1140 = vmatmul.mubr.bf16.gmra.mrb[0].mxu0 %v1063
        %v1141 = vpop.f32.mrb[0].mxu0
        %v1142 = vadd.f32 %v1038, %v1141
        %v1143 = vpop.f32.mrb[0].mxu0
        %v1144 = vpop.f32.mrb[0].mxu0
        %v1145 = vadd.f32 %v1038, %v1144
        %v1146 = vpop.f32.mrb[0].mxu0
        %1147 = vmatprep.mubr.bf16.mxu0 0
        %1148 = vmatmul.mubr.bf16.gmra.mrb[0].mxu0 %v1065
        %v1149 = vpop.f32.mrb[0].mxu0
        %v1150 = vadd.f32 %v1038, %v1149
        %v1151 = vpop.f32.mrb[0].mxu0
        %v1152 = vpop.f32.mrb[0].mxu0
        %v1153 = vadd.f32 %v1038, %v1152
        %v1154 = vpop.f32.mrb[0].mxu0
        %1155 = vmatprep.mubr.bf16.mxu0 0
        %1156 = vmatmul.mubr.bf16.gmra.mrb[0].mxu0 %v1067
        %v1157 = vpop.f32.mrb[0].mxu0
        %v1158 = vadd.f32 %v1038, %v1157
        %v1159 = vpop.f32.mrb[0].mxu0
        %v1160 = vpop.f32.mrb[0].mxu0
        %v1161 = vadd.f32 %v1038, %v1160
        %v1162 = vpop.f32.mrb[0].mxu0
        %1163 = vmatprep.mubr.bf16.mxu0 0
        %1164 = vmatmul.mubr.bf16.gmra.mrb[0].mxu0 %v1069
        %v1165 = vpop.f32.mrb[0].mxu0
        %v1166 = vadd.f32 %v1038, %v1165
        %v1167 = vpop.f32.mrb[0].mxu0
        %v1168 = vpop.f32.mrb[0].mxu0
        %v1169 = vadd.f32 %v1038, %v1168
        %v1170 = vpop.f32.mrb[0].mxu0
        %1171 = vmatprep.mubr.bf16.mxu0 0
        %1172 = vmatmul.mubr.bf16.gmra.mrb[0].mxu0 %v1071
        %v1173 = vpop.f32.mrb[0].mxu0
        %v1174 = vadd.f32 %v1038, %v1173
        %v1175 = vpop.f32.mrb[0].mxu0
        %v1176 = vpop.f32.mrb[0].mxu0
        %v1177 = vadd.f32 %v1038, %v1176
        %v1178 = vpop.f32.mrb[0].mxu0
        %1179 = vmatprep.mubr.bf16.mxu0 0
        %1180 = vmatmul.mubr.bf16.gmra.mrb[0].mxu0 %v1073
        %v1181 = vpop.f32.mrb[0].mxu0
        %v1182 = vadd.f32 %v1038, %v1181
        %v1183 = vpop.f32.mrb[0].mxu0
        %v1184 = vpop.f32.mrb[0].mxu0
        %v1185 = vadd.f32 %v1038, %v1184
        %v1186 = vpop.f32.mrb[0].mxu0
        %1187 = vmatprep.mubr.bf16.mxu0 0
        %1188 = vmatmul.mubr.bf16.gmra.mrb[0].mxu0 %v1075
        %v1189 = vpop.f32.mrb[0].mxu0
        %v1190 = vadd.f32 %v1038, %v1189
        %v1191 = vpop.f32.mrb[0].mxu0
        %v1192 = vpop.f32.mrb[0].mxu0
        %v1193 = vadd.f32 %v1038, %v1192
        %v1194 = vpop.f32.mrb[0].mxu0
        %1195 = vmatprep.mubr.bf16.mxu0 0
        %1196 = vmatmul.mubr.bf16.gmra.mrb[0].mxu0 %v1077
        %v1197 = vpop.f32.mrb[0].mxu0
        %v1198 = vadd.f32 %v1038, %v1197
        %v1199 = vpop.f32.mrb[0].mxu0
        %v1200 = vpop.f32.mrb[0].mxu0
        %v1201 = vadd.f32 %v1038, %v1200
        %v1202 = vpop.f32.mrb[0].mxu0
        %1203 = vmatprep.mubr.bf16.mxu0 0
        %1204 = vmatmul.mubr.bf16.gmra.mrb[0].mxu0 %v1079
        %v1205 = vpop.f32.mrb[0].mxu0
        %v1206 = vadd.f32 %v1038, %v1205
        %v1207 = vpop.f32.mrb[0].mxu0
        %v1208 = vpop.f32.mrb[0].mxu0
        %v1209 = vadd.f32 %v1038, %v1208
        %v1210 = vpop.f32.mrb[0].mxu0
        %1211 = vmatprep.mubr.bf16.mxu0 0
        %1212 = vmatmul.mubr.bf16.gmra.mrb[0].mxu0 %v1081
        %v1213 = vpop.f32.mrb[0].mxu0
        %v1214 = vadd.f32 %v1038, %v1213
        %v1215 = vpop.f32.mrb[0].mxu0
        %v1216 = vpop.f32.mrb[0].mxu0
        %v1217 = vadd.f32 %v1038, %v1216
        %v1218 = vpop.f32.mrb[0].mxu0
        %1219 = vmatprep.mubr.bf16.mxu0 0
        %1220 = vmatmul.mubr.bf16.gmra.mrb[0].mxu0 %v1083
        %v1221 = vpop.f32.mrb[0].mxu0
        %v1222 = vadd.f32 %v1038, %v1221
        %v1223 = vpop.f32.mrb[0].mxu0
        %v1224 = vpop.f32.mrb[0].mxu0
        %v1225 = vadd.f32 %v1038, %v1224
        %v1226 = vpop.f32.mrb[0].mxu0
        %1227 = vmatprep.mubr.bf16.mxu0 0
        %1228 = vmatmul.mubr.bf16.gmra.mrb[0].mxu0 %v1085
        %v1229 = vpop.f32.mrb[0].mxu0
        %v1230 = vadd.f32 %v1038, %v1229
        %v1231 = vpop.f32.mrb[0].mxu0
        %v1232 = vpop.f32.mrb[0].mxu0
        %v1233 = vadd.f32 %v1038, %v1232
        %v1234 = vpop.f32.mrb[0].mxu0
        %1235 = vmatprep.mubr.bf16.mxu0 0
        %1236 = vmatmul.mubr.bf16.gmra.mrb[0].mxu0 %v1087
        %v1237 = vpop.f32.mrb[0].mxu0
        %v1238 = vadd.f32 %v1038, %v1237
        %v1239 = vpop.f32.mrb[0].mxu0
        %v1240 = vpop.f32.mrb[0].mxu0
        %v1241 = vadd.f32 %v1038, %v1240
        %v1242 = vpop.f32.mrb[0].mxu0
        %1243 = vmatprep.mubr.bf16.mxu0 0
        %1244 = vmatmul.mubr.bf16.gmra.mrb[0].mxu0 %v1089
        %v1245 = vpop.f32.mrb[0].mxu0
        %v1246 = vadd.f32 %v1038, %v1245
        %v1247 = vpop.f32.mrb[0].mxu0
        %v1248 = vpop.f32.mrb[0].mxu0
        %v1249 = vadd.f32 %v1038, %v1248
        %v1250 = vpop.f32.mrb[0].mxu0
        %1251 = vdwg.mxu0
        %v1252 = vmax.f32 %v1126, 0.0
        %v1253 = vmax.f32 %v1129, 0.0
        %v1254 = vmax.f32 %v1134, 0.0
        %v1255 = vmax.f32 %v1137, 0.0
        %v1256 = vmax.f32 %v1142, 0.0
        %v1257 = vmax.f32 %v1145, 0.0
        %v1258 = vmax.f32 %v1150, 0.0
        %v1259 = vmax.f32 %v1153, 0.0
        %v1260 = vmax.f32 %v1158, 0.0
        %v1261 = vmax.f32 %v1161, 0.0
        %v1262 = vmax.f32 %v1166, 0.0
        %v1263 = vmax.f32 %v1169, 0.0
        %v1264 = vmax.f32 %v1174, 0.0
        %v1265 = vmax.f32 %v1177, 0.0
        %v1266 = vmax.f32 %v1182, 0.0
        %v1267 = vmax.f32 %v1185, 0.0
        %v1268 = vmax.f32 %v1190, 0.0
        %v1269 = vmax.f32 %v1193, 0.0
        %v1270 = vmax.f32 %v1198, 0.0
        %v1271 = vmax.f32 %v1201, 0.0
        %v1272 = vmax.f32 %v1206, 0.0
        %v1273 = vmax.f32 %v1209, 0.0
        %v1274 = vmax.f32 %v1214, 0.0
        %v1275 = vmax.f32 %v1217, 0.0
        %v1276 = vmax.f32 %v1222, 0.0
        %v1277 = vmax.f32 %v1225, 0.0
        %v1278 = vmax.f32 %v1230, 0.0
        %v1279 = vmax.f32 %v1233, 0.0
        %v1280 = vmax.f32 %v1238, 0.0
        %v1281 = vmax.f32 %v1241, 0.0
        %v1282 = vmax.f32 %v1246, 0.0
        %v1283 = vmax.f32 %v1249, 0.0
        %v1284 = vpack.c.bf16 %v1253, %v1252
        %v1285 = vpack.c.bf16 %v1255, %v1254
        %v1286 = vpack.c.bf16 %v1257, %v1256
        %v1287 = vpack.c.bf16 %v1259, %v1258
        %v1288 = vpack.c.bf16 %v1261, %v1260
        %v1289 = vpack.c.bf16 %v1263, %v1262
        %v1290 = vpack.c.bf16 %v1265, %v1264
        %v1291 = vpack.c.bf16 %v1267, %v1266
        %v1292 = vpack.c.bf16 %v1269, %v1268
        %v1293 = vpack.c.bf16 %v1271, %v1270
        %v1294 = vpack.c.bf16 %v1273, %v1272
        %v1295 = vpack.c.bf16 %v1275, %v1274
        %v1296 = vpack.c.bf16 %v1277, %v1276
        %v1297 = vpack.c.bf16 %v1279, %v1278
        %v1298 = vpack.c.bf16 %v1281, %v1280
        %v1299 = vpack.c.bf16 %v1283, %v1282
        %v1316 = vunpack.c.l.b16 %v1284
        %v1317 = vunpack.c.h.b16 %v1284
        %v1318 = vunpack.c.l.b16 %v1285
        %v1319 = vunpack.c.h.b16 %v1285
        %v1320 = vunpack.c.l.b16 %v1286
        %v1321 = vunpack.c.h.b16 %v1286
        %v1322 = vunpack.c.l.b16 %v1287
        %v1323 = vunpack.c.h.b16 %v1287
        %v1324 = vunpack.c.l.b16 %v1288
        %v1325 = vunpack.c.h.b16 %v1288
        %v1326 = vunpack.c.l.b16 %v1289
        %v1327 = vunpack.c.h.b16 %v1289
        %v1328 = vunpack.c.l.b16 %v1290
        %v1329 = vunpack.c.h.b16 %v1290
        %v1330 = vunpack.c.l.b16 %v1291
        %v1331 = vunpack.c.h.b16 %v1291
        %v1332 = vunpack.c.l.b16 %v1292
        %v1333 = vunpack.c.h.b16 %v1292
        %v1334 = vunpack.c.l.b16 %v1293
        %v1335 = vunpack.c.h.b16 %v1293
        %v1336 = vunpack.c.l.b16 %v1294
        %v1337 = vunpack.c.h.b16 %v1294
        %v1338 = vunpack.c.l.b16 %v1295
        %v1339 = vunpack.c.h.b16 %v1295
        %v1340 = vunpack.c.l.b16 %v1296
        %v1341 = vunpack.c.h.b16 %v1296
        %v1342 = vunpack.c.l.b16 %v1297
        %v1343 = vunpack.c.h.b16 %v1297
        %v1344 = vunpack.c.l.b16 %v1298
        %v1345 = vunpack.c.h.b16 %v1298
        %v1346 = vunpack.c.l.b16 %v1299
        %v1347 = vunpack.c.h.b16 %v1299
        %v1348 = vpack.c.b16 %v1316, %v1316
        %v1349 = vpack.c.b16 %v1317, %v1317
        %v1350 = vpack.c.b16 %v1318, %v1318
        %v1351 = vpack.c.b16 %v1319, %v1319
        %v1352 = vpack.c.b16 %v1320, %v1320
        %v1353 = vpack.c.b16 %v1321, %v1321
        %v1354 = vpack.c.b16 %v1322, %v1322
        %v1355 = vpack.c.b16 %v1323, %v1323
        %v1356 = vpack.c.b16 %v1324, %v1324
        %v1357 = vpack.c.b16 %v1325, %v1325
        %v1358 = vpack.c.b16 %v1326, %v1326
        %v1359 = vpack.c.b16 %v1327, %v1327
        %v1360 = vpack.c.b16 %v1328, %v1328
        %v1361 = vpack.c.b16 %v1329, %v1329
        %v1362 = vpack.c.b16 %v1330, %v1330
        %v1363 = vpack.c.b16 %v1331, %v1331
        %v1364 = vpack.c.b16 %v1332, %v1332
        %v1365 = vpack.c.b16 %v1333, %v1333
        %v1366 = vpack.c.b16 %v1334, %v1334
        %v1367 = vpack.c.b16 %v1335, %v1335
        %v1368 = vpack.c.b16 %v1336, %v1336
        %v1369 = vpack.c.b16 %v1337, %v1337
        %v1370 = vpack.c.b16 %v1338, %v1338
        %v1371 = vpack.c.b16 %v1339, %v1339
        %v1372 = vpack.c.b16 %v1340, %v1340
        %v1373 = vpack.c.b16 %v1341, %v1341
        %v1374 = vpack.c.b16 %v1342, %v1342
        %v1375 = vpack.c.b16 %v1343, %v1343
        %v1376 = vpack.c.b16 %v1344, %v1344
        %v1377 = vpack.c.b16 %v1345, %v1345
        %v1378 = vpack.c.b16 %v1346, %v1346
        %v1379 = vpack.c.b16 %v1347, %v1347
        %1412 = vst [vmem:[%s215] sm:$0xf] %v1348
        %1413 = vst [vmem:[%s215 + $0x4] sm:$0xf] %v1349
        %1414 = vst [vmem:[%s215 + $0x8] sm:$0xf] %v1350
        %1415 = vst [vmem:[%s215 + $0xc] sm:$0xf] %v1351
        %1416 = vst [vmem:[%s215 + $0x10] sm:$0xf] %v1352
        %1417 = vst [vmem:[%s215 + $0x14] sm:$0xf] %v1353
        %1418 = vst [vmem:[%s215 + $0x18] sm:$0xf] %v1354
        %1419 = vst [vmem:[%s215 + $0x1c] sm:$0xf] %v1355
        %1420 = vst [vmem:[%s215 + $0x20] sm:$0xf] %v1356
        %1421 = vst [vmem:[%s215 + $0x24] sm:$0xf] %v1357
        %1422 = vst [vmem:[%s215 + $0x28] sm:$0xf] %v1358
        %1423 = vst [vmem:[%s215 + $0x2c] sm:$0xf] %v1359
        %1424 = vst [vmem:[%s215 + $0x30] sm:$0xf] %v1360
        %1425 = vst [vmem:[%s215 + $0x34] sm:$0xf] %v1361
        %1426 = vst [vmem:[%s215 + $0x38] sm:$0xf] %v1362
        %1427 = vst [vmem:[%s215 + $0x3c] sm:$0xf] %v1363
        %1428 = vst [vmem:[%s215 + $0x40] sm:$0xf] %v1364
        %1429 = vst [vmem:[%s215 + $0x44] sm:$0xf] %v1365
        %1430 = vst [vmem:[%s215 + $0x48] sm:$0xf] %v1366
        %1431 = vst [vmem:[%s215 + $0x4c] sm:$0xf] %v1367
        %1432 = vst [vmem:[%s215 + $0x50] sm:$0xf] %v1368
        %1433 = vst [vmem:[%s215 + $0x54] sm:$0xf] %v1369
        %1434 = vst [vmem:[%s215 + $0x58] sm:$0xf] %v1370
        %1435 = vst [vmem:[%s215 + $0x5c] sm:$0xf] %v1371
        %1436 = vst [vmem:[%s215 + $0x60] sm:$0xf] %v1372
        %1437 = vst [vmem:[%s215 + $0x64] sm:$0xf] %v1373
        %1438 = vst [vmem:[%s215 + $0x68] sm:$0xf] %v1374
        %1439 = vst [vmem:[%s215 + $0x6c] sm:$0xf] %v1375
        %1440 = vst [vmem:[%s215 + $0x70] sm:$0xf] %v1376
        %1441 = vst [vmem:[%s215 + $0x74] sm:$0xf] %v1377
        %1442 = vst [vmem:[%s215 + $0x78] sm:$0xf] %v1378
        %1443 = vst [vmem:[%s215 + $0x7c] sm:$0xf] %v1379
        %s1444 = sand.u32 %s97, 1
        %s1445 = scalar_lea.sflag [#allocation4], %s1444
        %s1446 = sand.u32 %s97, 1
        %s1447 = smul.addr %s1446, 128
        %s1448 = scalar_lea.vmem [#allocation8], %s1447
        // Predicated region
        $region45: #{maskrcnn_forward.3} parent=31 // pred_check
          %p1449 = pneg %p107
        $region46: #{maskrcnn_forward.3} parent=31 // pred_check_branch
          %1451 = sbr.rel (%p1449) target = $region48
        $region47: #{maskrcnn_forward.3} parent=31 // pred_region
          %s1452 = smul.u32 32, %s21
          %s1454 = ssub.s32 2048, 2048
          %1455 = vsyncadd %s1445, %s1454
          %s1456 = smul.addr %s1452, 64
          %s1457 = scalar_lea.hbm %s3, %s1456
          %s1458 = sshll.u32 %s1448, 4
          %s1459 = int_to_ptr.vmem [resolvable:$true] %s1458
          %1464 = dma.vmem_to_hbm [thread:$0]  %s1459, 2048, %s1457, %s1445, 64, 64, 4
        $region48: #{maskrcnn_forward.3} parent=31 // pred_fallthru
          _
      $region32: #{maskrcnn_forward.3} parent=5 // pred_fallthru
        _
      %p1465 = scmp.le.s32.totalorder 2, %s16
      // Predicated region
      $region49: #{maskrcnn_forward.3} parent=5 // pred_check
        %p1466 = pneg %p1465
      $region50: #{maskrcnn_forward.3} parent=5 // pred_check_branch
        %1468 = sbr.rel (%p1466) target = $region52
      $region51: #{maskrcnn_forward.3} parent=5 // pred_region
        %s1469 = ssub.s32 %s16, 2
        // Predicated region
        $region53: #{maskrcnn_forward.3} parent=51 // pred_check
          %p1470 = pneg %p113
        $region54: #{maskrcnn_forward.3} parent=51 // pred_check_branch
          %1472 = sbr.rel (%p1470) target = $region56
        $region55: #{maskrcnn_forward.3} parent=51 // pred_region
          %s1473 = sand.u32 %s98, 1
          %s1474 = scalar_lea.sflag [#allocation4], %s1473
          %s1475 = sand.u32 %s98, 1
          %s1476 = smul.addr %s1475, 128
          %s1477 = scalar_lea.vmem [#allocation8], %s1476
          %1478 = dma.done %s1474, 2048
        $region56: #{maskrcnn_forward.3} parent=51 // pred_fallthru
          _
      $region52: #{maskrcnn_forward.3} parent=5 // pred_fallthru
        _
    $region6: #{maskrcnn_forward.3} parent=1 // loop_footer
      %s20 = sadd.s32 1, %s16
    $region7: #{maskrcnn_forward.3} parent=1 // loop_footer_branch
      %15 = sbr.rel target = $region3
    $region8: #{maskrcnn_forward.3} parent=1 // loop_exit
      _
    %1479 = vsyncpa [#allocation3], 1
    %s1480 = scalar_lea.sflag [#allocation3], 1
    %1481 = vsyncpa %s1480, 1
    %1482 = vsyncpa [#allocation6], 1
    %1483 = vsyncpa [#allocation4], 1
    %s1484 = scalar_lea.sflag [#allocation4], 1
    %1485 = vsyncpa %s1484, 1

// kernel: maskrcnn_forward.4
$region0: #{maskrcnn_forward.4}
  #allocation0 [shape = 'u32[]', space=smem, size = 0x4, offset = 0x4, fixed_abs, tag = 'smem constant byte address 0x4 - core index']
  #allocation1 [shape = 'u32[144,128]{1,0:T(1,128)}', space=vmem, size = 0x12000, scoped, tag = 'internal scratch']
  #allocation2 [shape = 'bf16[10,12,128]{2,1,0:T(8,128)(2,1)}', space=vmem, size = 0xa000, scoped, tag = 'scratch operand']
  %s0 = inlined_call_operand.hbm [shape: bf16[2,9,9,512], index: 0, kind: input, shape index: {}]
  %s1 = inlined_call_operand.hbm [shape: bf16[2048,128], index: 1, kind: input, shape index: {}]
  %s2 = inlined_call_operand.hbm [shape: f32[1,128], index: 2, kind: input, shape index: {}]
  %s3 = inlined_call_operand.hbm [shape: bf16[1152,128], index: 3, kind: input, shape index: {}]
  %s4 = inlined_call_operand.hbm [shape: f32[1,128], index: 4, kind: input, shape index: {}]
  %s5 = inlined_call_operand.hbm [shape: bf16[128,128], index: 5, kind: input, shape index: {}]
  %s6 = inlined_call_operand.hbm [shape: f32[1,128], index: 6, kind: input, shape index: {}]
  %s7 = inlined_call_operand.hbm [shape: bf16[2,8,8,128], index: 7, kind: output, shape index: {0}]
  %s8 = inlined_call_operand.hbm [shape: bf16[128,128], index: 8, kind: output, shape index: {1}]
  %9 = xla_tuple %s7, %s8
  %s10 = sld [smem:[#allocation0]]
  $region97: #{maskrcnn_forward.4} parent=0
    _
  %s12 = ssub.s32 1, %s10
  %s13 = scalar_select 0, %s12, %s10
  $region1: #{maskrcnn_forward.4} parent=0
    #allocation3 [shape = 'u8[294912]{0}', space=vmem, size = 0x48000, scoped, tag = 'input window, operand 0']
    #allocation4 [shape = 's32[2]{0}', space=sflag, size = 0x8, scoped, tag = 'scoped memory for maskrcnn_forward.4']
    #allocation5 [shape = 's32[2]{0}', space=sflag, size = 0x8, scoped, tag = 'scoped memory for maskrcnn_forward.4']
    #allocation6 [shape = 'u8[524288]{0}', space=vmem, size = 0x80000, scoped, tag = 'input window, operand 1, single buffered']
    #allocation7 [shape = 's32[1]{0}', space=sflag, size = 0x4, scoped, tag = 'scoped memory for maskrcnn_forward.4']
    #allocation8 [shape = 'u8[512]{0}', space=vmem, size = 0x400, scoped, tag = 'input window, operand 2, single buffered']
    #allocation9 [shape = 'u8[294912]{0}', space=vmem, size = 0x48000, scoped, tag = 'input window, operand 3, single buffered']
    #allocation10 [shape = 's32[1]{0}', space=sflag, size = 0x4, scoped, tag = 'scoped memory for maskrcnn_forward.4']
    #allocation11 [shape = 'u8[512]{0}', space=vmem, size = 0x400, scoped, tag = 'input window, operand 4, single buffered']
    #allocation12 [shape = 'u8[32768]{0}', space=vmem, size = 0x8000, scoped, tag = 'input window, operand 5, single buffered']
    #allocation13 [shape = 's32[1]{0}', space=sflag, size = 0x4, scoped, tag = 'scoped memory for maskrcnn_forward.4']
    #allocation14 [shape = 'u8[512]{0}', space=vmem, size = 0x400, scoped, tag = 'input window, operand 6, single buffered']
    #allocation15 [shape = 'u8[32768]{0}', space=vmem, size = 0x8000, scoped, tag = 'output window, operand 0']
    #allocation16 [shape = 'u8[32768]{0}', space=vmem, size = 0x8000, scoped, tag = 'output window, operand 1']
    #allocation17 [shape = 's32[2]{0}', space=sflag, size = 0x8, scoped, tag = 'scoped memory for maskrcnn_forward.4']
    %14 = vsyncpa [#allocation4], 0
    %s15 = scalar_lea.sflag [#allocation4], 1
    %16 = vsyncpa %s15, 0
    %17 = vsyncpa [#allocation7], 0
    %18 = vsyncpa [#allocation10], 0
    %19 = vsyncpa [#allocation13], 0
    %20 = vsyncpa [#allocation5], 0
    %s21 = scalar_lea.sflag [#allocation5], 1
    %22 = vsyncpa %s21, 0
    %23 = vsyncpa [#allocation17], 0
    %s24 = scalar_lea.sflag [#allocation17], 1
    %25 = vsyncpa %s24, 0
    loop: start=0, step=1, limit=4
    $region2: #{maskrcnn_forward.4} parent=1 // loop_pre_header
      _
    $region3: #{maskrcnn_forward.4} parent=1 // loop_header
      %s27 = sphi 0, %s31
      %p28 = scmp.ge.s32.totalorder %s27, 4
      %s37 = sphi 0, %s39
      %s40 = sphi 0, %s37
      %s41 = sphi 0, %s40
      %s57 = sphi 0, %s41
      %s61 = sphi 0, %s61
      %s63 = sphi 0, %s61
      %s64 = sphi 0, %s63
      %s78 = sphi 0, %s64
      %s82 = sphi 0, %s82
      %s84 = sphi 0, %s82
      %s85 = sphi 0, %s84
      %s99 = sphi 0, %s85
      %s103 = sphi 0, %s103
      %s105 = sphi 0, %s103
      %s106 = sphi 0, %s105
      %s120 = sphi 0, %s106
      %s124 = sphi 0, %s124
      %s126 = sphi 0, %s124
      %s127 = sphi 0, %s126
      %s141 = sphi 0, %s127
      %s145 = sphi 0, %s145
      %s147 = sphi 0, %s145
      %s148 = sphi 0, %s147
      %s162 = sphi 0, %s148
      %s166 = sphi 0, %s166
      %s168 = sphi 0, %s166
      %s169 = sphi 0, %s168
      %s183 = sphi 0, %s169
      %s189 = sphi 0, %s191
      %s192 = sphi 0, %s189
      %s193 = sphi 0, %s192
      %s209 = sphi 0, %s193
      %s215 = sphi 0, %s217
      %s218 = sphi 0, %s215
      %s219 = sphi 0, %s218
      %s235 = sphi 0, %s219
    $region4: #{maskrcnn_forward.4} parent=1 // loop_header_branch
      %30 = sbr.rel (%p28) target = $region8
    $region5: #{maskrcnn_forward.4} parent=1 // loop_body
      %s32 = ssub.s32 %s27, 1
      %s33 = ssub.s32 %s27, 2
      %s34 = sadd.s32 %s27, 1
      %s35 = ssub.s32 %s27, %s34
      %p36 = scmp.eq.s32.totalorder %s35, 0
      %s38 = sadd.s32 %s37, 1
      %s39 = scalar_select %p36, %s37, %s38
      %p42 = pneg %p36
      %p43 = scmp.eq.s32.totalorder %s27, 1
      %p44 = por %p42, %p43
      %p45 = scmp.ne.s32.totalorder %s37, %s40
      %p46 = scmp.eq.s32.totalorder %s27, 0
      %p47 = por %p45, %p46
      %p48 = scmp.ne.s32.totalorder %s37, %s40
      %p49 = scmp.eq.s32.totalorder %s32, 1
      %p50 = por %p48, %p49
      %p51 = scmp.ne.s32.totalorder %s40, %s41
      %p52 = scmp.eq.s32.totalorder %s32, 0
      %p53 = por %p51, %p52
      %p54 = scmp.ne.s32.totalorder %s40, %s41
      %p55 = scmp.eq.s32.totalorder %s33, 1
      %p56 = por %p54, %p55
      %p58 = scmp.ne.s32.totalorder %s41, %s57
      %p59 = scmp.eq.s32.totalorder %s33, 0
      %p60 = por %p58, %p59
      %s62 = sadd.s32 %s61, 1
      %p65 = scmp.eq.s32.totalorder %s27, 1
      %p66 = scmp.ne.s32.totalorder %s61, %s63
      %p67 = scmp.eq.s32.totalorder %s27, 0
      %p68 = por %p66, %p67
      %p69 = scmp.ne.s32.totalorder %s61, %s63
      %p70 = scmp.eq.s32.totalorder %s32, 1
      %p71 = por %p69, %p70
      %p72 = scmp.ne.s32.totalorder %s63, %s64
      %p73 = scmp.eq.s32.totalorder %s32, 0
      %p74 = por %p72, %p73
      %p75 = scmp.ne.s32.totalorder %s63, %s64
      %p76 = scmp.eq.s32.totalorder %s33, 1
      %p77 = por %p75, %p76
      %p79 = scmp.ne.s32.totalorder %s64, %s78
      %p80 = scmp.eq.s32.totalorder %s33, 0
      %p81 = por %p79, %p80
      %s83 = sadd.s32 %s82, 1
      %p86 = scmp.eq.s32.totalorder %s27, 1
      %p87 = scmp.ne.s32.totalorder %s82, %s84
      %p88 = scmp.eq.s32.totalorder %s27, 0
      %p89 = por %p87, %p88
      %p90 = scmp.ne.s32.totalorder %s82, %s84
      %p91 = scmp.eq.s32.totalorder %s32, 1
      %p92 = por %p90, %p91
      %p93 = scmp.ne.s32.totalorder %s84, %s85
      %p94 = scmp.eq.s32.totalorder %s32, 0
      %p95 = por %p93, %p94
      %p96 = scmp.ne.s32.totalorder %s84, %s85
      %p97 = scmp.eq.s32.totalorder %s33, 1
      %p98 = por %p96, %p97
      %p100 = scmp.ne.s32.totalorder %s85, %s99
      %p101 = scmp.eq.s32.totalorder %s33, 0
      %p102 = por %p100, %p101
      %s104 = sadd.s32 %s103, 1
      %p107 = scmp.eq.s32.totalorder %s27, 1
      %p108 = scmp.ne.s32.totalorder %s103, %s105
      %p109 = scmp.eq.s32.totalorder %s27, 0
      %p110 = por %p108, %p109
      %p111 = scmp.ne.s32.totalorder %s103, %s105
      %p112 = scmp.eq.s32.totalorder %s32, 1
      %p113 = por %p111, %p112
      %p114 = scmp.ne.s32.totalorder %s105, %s106
      %p115 = scmp.eq.s32.totalorder %s32, 0
      %p116 = por %p114, %p115
      %p117 = scmp.ne.s32.totalorder %s105, %s106
      %p118 = scmp.eq.s32.totalorder %s33, 1
      %p119 = por %p117, %p118
      %p121 = scmp.ne.s32.totalorder %s106, %s120
      %p122 = scmp.eq.s32.totalorder %s33, 0
      %p123 = por %p121, %p122
      %s125 = sadd.s32 %s124, 1
      %p128 = scmp.eq.s32.totalorder %s27, 1
      %p129 = scmp.ne.s32.totalorder %s124, %s126
      %p130 = scmp.eq.s32.totalorder %s27, 0
      %p131 = por %p129, %p130
      %p132 = scmp.ne.s32.totalorder %s124, %s126
      %p133 = scmp.eq.s32.totalorder %s32, 1
      %p134 = por %p132, %p133
      %p135 = scmp.ne.s32.totalorder %s126, %s127
      %p136 = scmp.eq.s32.totalorder %s32, 0
      %p137 = por %p135, %p136
      %p138 = scmp.ne.s32.totalorder %s126, %s127
      %p139 = scmp.eq.s32.totalorder %s33, 1
      %p140 = por %p138, %p139
      %p142 = scmp.ne.s32.totalorder %s127, %s141
      %p143 = scmp.eq.s32.totalorder %s33, 0
      %p144 = por %p142, %p143
      %s146 = sadd.s32 %s145, 1
      %p149 = scmp.eq.s32.totalorder %s27, 1
      %p150 = scmp.ne.s32.totalorder %s145, %s147
      %p151 = scmp.eq.s32.totalorder %s27, 0
      %p152 = por %p150, %p151
      %p153 = scmp.ne.s32.totalorder %s145, %s147
      %p154 = scmp.eq.s32.totalorder %s32, 1
      %p155 = por %p153, %p154
      %p156 = scmp.ne.s32.totalorder %s147, %s148
      %p157 = scmp.eq.s32.totalorder %s32, 0
      %p158 = por %p156, %p157
      %p159 = scmp.ne.s32.totalorder %s147, %s148
      %p160 = scmp.eq.s32.totalorder %s33, 1
      %p161 = por %p159, %p160
      %p163 = scmp.ne.s32.totalorder %s148, %s162
      %p164 = scmp.eq.s32.totalorder %s33, 0
      %p165 = por %p163, %p164
      %s167 = sadd.s32 %s166, 1
      %p170 = scmp.eq.s32.totalorder %s27, 1
      %p171 = scmp.ne.s32.totalorder %s166, %s168
      %p172 = scmp.eq.s32.totalorder %s27, 0
      %p173 = por %p171, %p172
      %p174 = scmp.ne.s32.totalorder %s166, %s168
      %p175 = scmp.eq.s32.totalorder %s32, 1
      %p176 = por %p174, %p175
      %p177 = scmp.ne.s32.totalorder %s168, %s169
      %p178 = scmp.eq.s32.totalorder %s32, 0
      %p179 = por %p177, %p178
      %p180 = scmp.ne.s32.totalorder %s168, %s169
      %p181 = scmp.eq.s32.totalorder %s33, 1
      %p182 = por %p180, %p181
      %p184 = scmp.ne.s32.totalorder %s169, %s183
      %p185 = scmp.eq.s32.totalorder %s33, 0
      %p186 = por %p184, %p185
      %s187 = ssub.s32 %s27, %s34
      %p188 = scmp.eq.s32.totalorder %s187, 0
      %s190 = sadd.s32 %s189, 1
      %s191 = scalar_select %p188, %s189, %s190
      %p194 = pneg %p188
      %p195 = scmp.eq.s32.totalorder %s27, 1
      %p196 = por %p194, %p195
      %p197 = scmp.ne.s32.totalorder %s189, %s192
      %p198 = scmp.eq.s32.totalorder %s27, 0
      %p199 = por %p197, %p198
      %p200 = scmp.ne.s32.totalorder %s189, %s192
      %p201 = scmp.eq.s32.totalorder %s32, 1
      %p202 = por %p200, %p201
      %p203 = scmp.ne.s32.totalorder %s192, %s193
      %p204 = scmp.eq.s32.totalorder %s32, 0
      %p205 = por %p203, %p204
      %p206 = scmp.ne.s32.totalorder %s192, %s193
      %p207 = scmp.eq.s32.totalorder %s33, 1
      %p208 = por %p206, %p207
      %p210 = scmp.ne.s32.totalorder %s193, %s209
      %p211 = scmp.eq.s32.totalorder %s33, 0
      %p212 = por %p210, %p211
      %s213 = ssub.s32 %s27, %s34
      %p214 = scmp.eq.s32.totalorder %s213, 0
      %s216 = sadd.s32 %s215, 1
      %s217 = scalar_select %p214, %s215, %s216
      %p220 = pneg %p214
      %p221 = scmp.eq.s32.totalorder %s27, 1
      %p222 = por %p220, %p221
      %p223 = scmp.ne.s32.totalorder %s215, %s218
      %p224 = scmp.eq.s32.totalorder %s27, 0
      %p225 = por %p223, %p224
      %p226 = scmp.ne.s32.totalorder %s215, %s218
      %p227 = scmp.eq.s32.totalorder %s32, 1
      %p228 = por %p226, %p227
      %p229 = scmp.ne.s32.totalorder %s218, %s219
      %p230 = scmp.eq.s32.totalorder %s32, 0
      %p231 = por %p229, %p230
      %p232 = scmp.ne.s32.totalorder %s218, %s219
      %p233 = scmp.eq.s32.totalorder %s33, 1
      %p234 = por %p232, %p233
      %p236 = scmp.ne.s32.totalorder %s219, %s235
      %p237 = scmp.eq.s32.totalorder %s33, 0
      %p238 = por %p236, %p237
      %p239 = scmp.le.s32.totalorder 1, %s27
      %p240 = scmp.lt.s32.totalorder %s27, 3
      %p241 = pnand %p239, %p240
      %p242 = pneg %p241
      // Predicated region
      $region9: #{maskrcnn_forward.4} parent=5 // pred_check
        _
      $region10: #{maskrcnn_forward.4} parent=5 // pred_check_branch
        %244 = sbr.rel (%p241) target = $region12
      $region11: #{maskrcnn_forward.4} parent=5 // pred_region
        %s245 = ssub.s32 %s27, 1
        // Predicated region
        $region13: #{maskrcnn_forward.4} parent=11 // pred_check
          %p246 = pneg %p74
        $region14: #{maskrcnn_forward.4} parent=11 // pred_check_branch
          %248 = sbr.rel (%p246) target = $region16
        $region15: #{maskrcnn_forward.4} parent=11 // pred_region
          %s250 = ssub.s32 16384, 16384
          %251 = vsyncadd [#allocation7], %s250
          %s252 = sshll.u32 [#allocation6], 4
          %s253 = int_to_ptr.vmem [resolvable:$true] %s252
          %258 = dma.hbm_to_vmem [thread:$0]  %s1, 16384, %s253, [#allocation7], 64, 64, 4
        $region16: #{maskrcnn_forward.4} parent=11 // pred_fallthru
          _
        // Predicated region
        $region17: #{maskrcnn_forward.4} parent=11 // pred_check
          %p259 = pneg %p95
        $region18: #{maskrcnn_forward.4} parent=11 // pred_check_branch
          %261 = sbr.rel (%p259) target = $region20
        $region19: #{maskrcnn_forward.4} parent=11 // pred_region
          %s263 = ssub.s32 16, 16
          %264 = vsyncadd [#allocation7], %s263
          %s266 = sshll.u32 [#allocation8], 4
          %s267 = int_to_ptr.vmem [resolvable:$true] %s266
          %269 = dma.hbm_to_vmem [thread:$0]  %s2, 16, %s267, [#allocation7]
        $region20: #{maskrcnn_forward.4} parent=11 // pred_fallthru
          _
        // Predicated region
        $region21: #{maskrcnn_forward.4} parent=11 // pred_check
          %p270 = pneg %p116
        $region22: #{maskrcnn_forward.4} parent=11 // pred_check_branch
          %272 = sbr.rel (%p270) target = $region24
        $region23: #{maskrcnn_forward.4} parent=11 // pred_region
          %s274 = ssub.s32 9216, 9216
          %275 = vsyncadd [#allocation10], %s274
          %s276 = sshll.u32 [#allocation9], 4
          %s277 = int_to_ptr.vmem [resolvable:$true] %s276
          %282 = dma.hbm_to_vmem [thread:$0]  %s3, 9216, %s277, [#allocation10], 64, 64, 4
        $region24: #{maskrcnn_forward.4} parent=11 // pred_fallthru
          _
        // Predicated region
        $region25: #{maskrcnn_forward.4} parent=11 // pred_check
          %p283 = pneg %p137
        $region26: #{maskrcnn_forward.4} parent=11 // pred_check_branch
          %285 = sbr.rel (%p283) target = $region28
        $region27: #{maskrcnn_forward.4} parent=11 // pred_region
          %s287 = ssub.s32 16, 16
          %288 = vsyncadd [#allocation10], %s287
          %s290 = sshll.u32 [#allocation11], 4
          %s291 = int_to_ptr.vmem [resolvable:$true] %s290
          %293 = dma.hbm_to_vmem [thread:$0]  %s4, 16, %s291, [#allocation10]
        $region28: #{maskrcnn_forward.4} parent=11 // pred_fallthru
          _
        // Predicated region
        $region29: #{maskrcnn_forward.4} parent=11 // pred_check
          %p294 = pneg %p158
        $region30: #{maskrcnn_forward.4} parent=11 // pred_check_branch
          %296 = sbr.rel (%p294) target = $region32
        $region31: #{maskrcnn_forward.4} parent=11 // pred_region
          %s298 = ssub.s32 1024, 1024
          %299 = vsyncadd [#allocation13], %s298
          %s300 = sshll.u32 [#allocation12], 4
          %s301 = int_to_ptr.vmem [resolvable:$true] %s300
          %306 = dma.hbm_to_vmem [thread:$0]  %s5, 1024, %s301, [#allocation13], 64, 64, 4
        $region32: #{maskrcnn_forward.4} parent=11 // pred_fallthru
          _
        // Predicated region
        $region33: #{maskrcnn_forward.4} parent=11 // pred_check
          %p307 = pneg %p179
        $region34: #{maskrcnn_forward.4} parent=11 // pred_check_branch
          %309 = sbr.rel (%p307) target = $region36
        $region35: #{maskrcnn_forward.4} parent=11 // pred_region
          %s311 = ssub.s32 16, 16
          %312 = vsyncadd [#allocation13], %s311
          %s314 = sshll.u32 [#allocation14], 4
          %s315 = int_to_ptr.vmem [resolvable:$true] %s314
          %317 = dma.hbm_to_vmem [thread:$0]  %s6, 16, %s315, [#allocation13]
        $region36: #{maskrcnn_forward.4} parent=11 // pred_fallthru
          _
      $region12: #{maskrcnn_forward.4} parent=5 // pred_fallthru
        _
      %p318 = scmp.lt.s32.totalorder %s27, 2
      // Predicated region
      $region37: #{maskrcnn_forward.4} parent=5 // pred_check
        %p319 = pneg %p318
      $region38: #{maskrcnn_forward.4} parent=5 // pred_check_branch
        %321 = sbr.rel (%p319) target = $region40
      $region39: #{maskrcnn_forward.4} parent=5 // pred_region
        // Predicated region
        $region41: #{maskrcnn_forward.4} parent=39 // pred_check
          %p322 = pneg %p47
        $region42: #{maskrcnn_forward.4} parent=39 // pred_check_branch
          %324 = sbr.rel (%p322) target = $region44
        $region43: #{maskrcnn_forward.4} parent=39 // pred_region
          %s325 = sand.u32 %s37, 1
          %s326 = scalar_lea.sflag [#allocation4], %s325
          %s327 = sand.u32 %s37, 1
          %s328 = smul.addr %s327, 288
          %s329 = scalar_lea.vmem [#allocation3], %s328
          %s331 = ssub.s32 4608, 4608
          %332 = vsyncadd %s326, %s331
          %s333 = smul.addr %s27, 72
          %s334 = smul.addr %s333, 64
          %s335 = scalar_lea.hbm %s0, %s334
          %s336 = sshll.u32 %s329, 4
          %s337 = int_to_ptr.vmem [resolvable:$true] %s336
          %342 = dma.hbm_to_vmem [thread:$0]  %s335, 4608, %s337, %s326, 256, 256, 16
        $region44: #{maskrcnn_forward.4} parent=39 // pred_fallthru
          _
      $region40: #{maskrcnn_forward.4} parent=5 // pred_fallthru
        _
      %p343 = scmp.le.s32.totalorder 1, %s27
      %p344 = scmp.lt.s32.totalorder %s27, 3
      %p345 = pnand %p343, %p344
      %p346 = pneg %p345
      // Predicated region
      $region45: #{maskrcnn_forward.4} parent=5 // pred_check
        _
      $region46: #{maskrcnn_forward.4} parent=5 // pred_check_branch
        %348 = sbr.rel (%p345) target = $region48
      $region47: #{maskrcnn_forward.4} parent=5 // pred_region
        %s349 = ssub.s32 %s27, 1
        %s350 = sand.u32 %s40, 1
        %s351 = scalar_lea.sflag [#allocation4], %s350
        %s352 = sand.u32 %s40, 1
        %s353 = smul.addr %s352, 288
        %s354 = scalar_lea.vmem [#allocation3], %s353
        // Predicated region
        $region49: #{maskrcnn_forward.4} parent=47 // pred_check
          %p355 = pneg %p53
        $region50: #{maskrcnn_forward.4} parent=47 // pred_check_branch
          %357 = sbr.rel (%p355) target = $region52
        $region51: #{maskrcnn_forward.4} parent=47 // pred_region
          %358 = dma.done %s351, 4608
        $region52: #{maskrcnn_forward.4} parent=47 // pred_fallthru
          _
        // Predicated region
        $region53: #{maskrcnn_forward.4} parent=47 // pred_check
          %p359 = pneg %p74
        $region54: #{maskrcnn_forward.4} parent=47 // pred_check_branch
          %361 = sbr.rel (%p359) target = $region56
        $region55: #{maskrcnn_forward.4} parent=47 // pred_region
          %362 = dma.done [#allocation7], 16384
        $region56: #{maskrcnn_forward.4} parent=47 // pred_fallthru
          _
        // Predicated region
        $region57: #{maskrcnn_forward.4} parent=47 // pred_check
          %p363 = pneg %p95
        $region58: #{maskrcnn_forward.4} parent=47 // pred_check_branch
          %365 = sbr.rel (%p363) target = $region60
        $region59: #{maskrcnn_forward.4} parent=47 // pred_region
          %366 = dma.done [#allocation7], 16
        $region60: #{maskrcnn_forward.4} parent=47 // pred_fallthru
          _
        // Predicated region
        $region61: #{maskrcnn_forward.4} parent=47 // pred_check
          %p367 = pneg %p116
        $region62: #{maskrcnn_forward.4} parent=47 // pred_check_branch
          %369 = sbr.rel (%p367) target = $region64
        $region63: #{maskrcnn_forward.4} parent=47 // pred_region
          %370 = dma.done [#allocation10], 9216
        $region64: #{maskrcnn_forward.4} parent=47 // pred_fallthru
          _
        // Predicated region
        $region65: #{maskrcnn_forward.4} parent=47 // pred_check
          %p371 = pneg %p137
        $region66: #{maskrcnn_forward.4} parent=47 // pred_check_branch
          %373 = sbr.rel (%p371) target = $region68
        $region67: #{maskrcnn_forward.4} parent=47 // pred_region
          %374 = dma.done [#allocation10], 16
        $region68: #{maskrcnn_forward.4} parent=47 // pred_fallthru
          _
        // Predicated region
        $region69: #{maskrcnn_forward.4} parent=47 // pred_check
          %p375 = pneg %p158
        $region70: #{maskrcnn_forward.4} parent=47 // pred_check_branch
          %377 = sbr.rel (%p375) target = $region72
        $region71: #{maskrcnn_forward.4} parent=47 // pred_region
          %378 = dma.done [#allocation13], 1024
        $region72: #{maskrcnn_forward.4} parent=47 // pred_fallthru
          _
        // Predicated region
        $region73: #{maskrcnn_forward.4} parent=47 // pred_check
          %p379 = pneg %p179
        $region74: #{maskrcnn_forward.4} parent=47 // pred_check_branch
          %381 = sbr.rel (%p379) target = $region76
        $region75: #{maskrcnn_forward.4} parent=47 // pred_region
          %382 = dma.done [#allocation13], 16
        $region76: #{maskrcnn_forward.4} parent=47 // pred_fallthru
          _
        %s383 = sand.u32 %s40, 1
        %s384 = scalar_lea.sflag [#allocation4], %s383
        %s385 = sand.u32 %s40, 1
        %s386 = smul.addr %s385, 288
        %s387 = scalar_lea.vmem [#allocation3], %s386
        %p388 = pneg %p53
        %p389 = pneg %p50
        %p390 = pneg %p74
        %p391 = pneg %p71
        %p392 = pneg %p95
        %p393 = pneg %p92
        %p394 = pneg %p116
        %p395 = pneg %p113
        %p396 = pneg %p137
        %p397 = pneg %p134
        %p398 = pneg %p158
        %p399 = pneg %p155
        %p400 = pneg %p179
        %p401 = pneg %p176
        %p402 = pneg %p205
        %p403 = pneg %p202
        %s404 = sand.u32 %s192, 1
        %s405 = scalar_lea.sflag [#allocation5], %s404
        %s406 = sand.u32 %s192, 1
        %s407 = smul.addr %s406, 32
        %s408 = scalar_lea.vmem [#allocation15], %s407
        %p409 = pneg %p231
        %p410 = pneg %p228
        %s411 = sand.u32 %s218, 1
        %s412 = scalar_lea.sflag [#allocation17], %s411
        %s413 = sand.u32 %s218, 1
        %s414 = smul.addr %s413, 32
        %s415 = scalar_lea.vmem [#allocation16], %s414
        %s416 = smul.u32 8, %s32
        %v418 = vld [vmem:[%s354] sm:$0xff]
        %v419 = vld [vmem:[%s354 + $0x8] sm:$0xff]
        %v420 = vld [vmem:[%s354 + $0x10] sm:$0x11]
        %v421 = vld [vmem:[%s354 + $0x18] sm:$0x11]
        %v422 = vld [vmem:[%s354 + $0x20] sm:$0xff]
        %v423 = vld [vmem:[%s354 + $0x28] sm:$0xff]
        %v424 = vld [vmem:[%s354 + $0x30] sm:$0x11]
        %v425 = vld [vmem:[%s354 + $0x38] sm:$0x11]
        %v426 = vld [vmem:[%s354 + $0x40] sm:$0xff]
        %v427 = vld [vmem:[%s354 + $0x48] sm:$0xff]
        %v428 = vld [vmem:[%s354 + $0x50] sm:$0x11]
        %v429 = vld [vmem:[%s354 + $0x58] sm:$0x11]
        %v430 = vld [vmem:[%s354 + $0x60] sm:$0xff]
        %v431 = vld [vmem:[%s354 + $0x68] sm:$0xff]
        %v432 = vld [vmem:[%s354 + $0x70] sm:$0x11]
        %v433 = vld [vmem:[%s354 + $0x78] sm:$0x11]
        %v434 = vld [vmem:[%s354 + $0x80] sm:$0xff]
        %v435 = vld [vmem:[%s354 + $0x88] sm:$0xff]
        %v436 = vld [vmem:[%s354 + $0x90] sm:$0x11]
        %v437 = vld [vmem:[%s354 + $0x98] sm:$0x11]
        %v438 = vld [vmem:[%s354 + $0xa0] sm:$0xff]
        %v439 = vld [vmem:[%s354 + $0xa8] sm:$0xff]
        %v440 = vld [vmem:[%s354 + $0xb0] sm:$0x11]
        %v441 = vld [vmem:[%s354 + $0xb8] sm:$0x11]
        %v442 = vld [vmem:[%s354 + $0xc0] sm:$0xff]
        %v443 = vld [vmem:[%s354 + $0xc8] sm:$0xff]
        %v444 = vld [vmem:[%s354 + $0xd0] sm:$0x11]
        %v445 = vld [vmem:[%s354 + $0xd8] sm:$0x11]
        %v446 = vld [vmem:[%s354 + $0xe0] sm:$0xff]
        %v447 = vld [vmem:[%s354 + $0xe8] sm:$0xff]
        %v448 = vld [vmem:[%s354 + $0xf0] sm:$0x11]
        %v449 = vld [vmem:[%s354 + $0xf8] sm:$0x11]
        %v450 = vld [vmem:[%s354 + $0x100] sm:$0xff]
        %v451 = vld [vmem:[%s354 + $0x108] sm:$0xff]
        %v452 = vld [vmem:[%s354 + $0x110] sm:$0x11]
        %v453 = vld [vmem:[%s354 + $0x118] sm:$0x11]
        %v454 = vld [vmem:[#allocation8] sm:$0x1]
        %vm455 = vsmask.f32 3328
        %vm456 = vsmask.f32 7440
        %vm457 = vmor %vm455, %vm456
        %v459 = vshrl.u32 %v418, 16
        %v461 = vrot.slane %v459, 4
        %v462 = vshll.u32 %v418, 16
        %v464 = vrot.slane %v462, 5
        %v465 = vor.u32 %v461, %v464
        %v466 = vrot.slane %v465, 4
        %v468 = vshll.u32 %v420, 16
        %v470 = vrot.slane %v468, 5
        %v471 = vsel %vm457, %v466, %v470
        %v473 = vshrl.u32 %v419, 16
        %v475 = vrot.slane %v473, 4
        %v476 = vshll.u32 %v419, 16
        %v478 = vrot.slane %v476, 5
        %v479 = vor.u32 %v475, %v478
        %v480 = vrot.slane %v479, 4
        %v482 = vshll.u32 %v421, 16
        %v484 = vrot.slane %v482, 5
        %v485 = vsel %vm457, %v480, %v484
        %v487 = vshrl.u32 %v422, 16
        %v489 = vrot.slane %v487, 4
        %v490 = vshll.u32 %v422, 16
        %v492 = vrot.slane %v490, 5
        %v493 = vor.u32 %v489, %v492
        %v494 = vrot.slane %v493, 4
        %v496 = vshll.u32 %v424, 16
        %v498 = vrot.slane %v496, 5
        %v499 = vsel %vm457, %v494, %v498
        %v501 = vshrl.u32 %v423, 16
        %v503 = vrot.slane %v501, 4
        %v504 = vshll.u32 %v423, 16
        %v506 = vrot.slane %v504, 5
        %v507 = vor.u32 %v503, %v506
        %v508 = vrot.slane %v507, 4
        %v510 = vshll.u32 %v425, 16
        %v512 = vrot.slane %v510, 5
        %v513 = vsel %vm457, %v508, %v512
        %v515 = vshrl.u32 %v426, 16
        %v517 = vrot.slane %v515, 4
        %v518 = vshll.u32 %v426, 16
        %v520 = vrot.slane %v518, 5
        %v521 = vor.u32 %v517, %v520
        %v522 = vrot.slane %v521, 4
        %v524 = vshll.u32 %v428, 16
        %v526 = vrot.slane %v524, 5
        %v527 = vsel %vm457, %v522, %v526
        %v529 = vshrl.u32 %v427, 16
        %v531 = vrot.slane %v529, 4
        %v532 = vshll.u32 %v427, 16
        %v534 = vrot.slane %v532, 5
        %v535 = vor.u32 %v531, %v534
        %v536 = vrot.slane %v535, 4
        %v538 = vshll.u32 %v429, 16
        %v540 = vrot.slane %v538, 5
        %v541 = vsel %vm457, %v536, %v540
        %v543 = vshrl.u32 %v430, 16
        %v545 = vrot.slane %v543, 4
        %v546 = vshll.u32 %v430, 16
        %v548 = vrot.slane %v546, 5
        %v549 = vor.u32 %v545, %v548
        %v550 = vrot.slane %v549, 4
        %v552 = vshll.u32 %v432, 16
        %v554 = vrot.slane %v552, 5
        %v555 = vsel %vm457, %v550, %v554
        %v557 = vshrl.u32 %v431, 16
        %v559 = vrot.slane %v557, 4
        %v560 = vshll.u32 %v431, 16
        %v562 = vrot.slane %v560, 5
        %v563 = vor.u32 %v559, %v562
        %v564 = vrot.slane %v563, 4
        %v566 = vshll.u32 %v433, 16
        %v568 = vrot.slane %v566, 5
        %v569 = vsel %vm457, %v564, %v568
        %v571 = vshrl.u32 %v434, 16
        %v573 = vrot.slane %v571, 4
        %v574 = vshll.u32 %v434, 16
        %v576 = vrot.slane %v574, 5
        %v577 = vor.u32 %v573, %v576
        %v578 = vrot.slane %v577, 4
        %v580 = vshll.u32 %v436, 16
        %v582 = vrot.slane %v580, 5
        %v583 = vsel %vm457, %v578, %v582
        %v585 = vshrl.u32 %v435, 16
        %v587 = vrot.slane %v585, 4
        %v588 = vshll.u32 %v435, 16
        %v590 = vrot.slane %v588, 5
        %v591 = vor.u32 %v587, %v590
        %v592 = vrot.slane %v591, 4
        %v594 = vshll.u32 %v437, 16
        %v596 = vrot.slane %v594, 5
        %v597 = vsel %vm457, %v592, %v596
        %v599 = vshrl.u32 %v438, 16
        %v601 = vrot.slane %v599, 4
        %v602 = vshll.u32 %v438, 16
        %v604 = vrot.slane %v602, 5
        %v605 = vor.u32 %v601, %v604
        %v606 = vrot.slane %v605, 4
        %v608 = vshll.u32 %v440, 16
        %v610 = vrot.slane %v608, 5
        %v611 = vsel %vm457, %v606, %v610
        %v613 = vshrl.u32 %v439, 16
        %v615 = vrot.slane %v613, 4
        %v616 = vshll.u32 %v439, 16
        %v618 = vrot.slane %v616, 5
        %v619 = vor.u32 %v615, %v618
        %v620 = vrot.slane %v619, 4
        %v622 = vshll.u32 %v441, 16
        %v624 = vrot.slane %v622, 5
        %v625 = vsel %vm457, %v620, %v624
        %v627 = vshrl.u32 %v442, 16
        %v629 = vrot.slane %v627, 4
        %v630 = vshll.u32 %v442, 16
        %v632 = vrot.slane %v630, 5
        %v633 = vor.u32 %v629, %v632
        %v634 = vrot.slane %v633, 4
        %v636 = vshll.u32 %v444, 16
        %v638 = vrot.slane %v636, 5
        %v639 = vsel %vm457, %v634, %v638
        %v641 = vshrl.u32 %v443, 16
        %v643 = vrot.slane %v641, 4
        %v644 = vshll.u32 %v443, 16
        %v646 = vrot.slane %v644, 5
        %v647 = vor.u32 %v643, %v646
        %v648 = vrot.slane %v647, 4
        %v650 = vshll.u32 %v445, 16
        %v652 = vrot.slane %v650, 5
        %v653 = vsel %vm457, %v648, %v652
        %v655 = vshrl.u32 %v446, 16
        %v657 = vrot.slane %v655, 4
        %v658 = vshll.u32 %v446, 16
        %v660 = vrot.slane %v658, 5
        %v661 = vor.u32 %v657, %v660
        %v662 = vrot.slane %v661, 4
        %v664 = vshll.u32 %v448, 16
        %v666 = vrot.slane %v664, 5
        %v667 = vsel %vm457, %v662, %v666
        %v669 = vshrl.u32 %v447, 16
        %v671 = vrot.slane %v669, 4
        %v672 = vshll.u32 %v447, 16
        %v674 = vrot.slane %v672, 5
        %v675 = vor.u32 %v671, %v674
        %v676 = vrot.slane %v675, 4
        %v678 = vshll.u32 %v449, 16
        %v680 = vrot.slane %v678, 5
        %v681 = vsel %vm457, %v676, %v680
        %v683 = vshrl.u32 %v450, 16
        %v685 = vrot.slane %v683, 4
        %v686 = vshll.u32 %v450, 16
        %v688 = vrot.slane %v686, 5
        %v689 = vor.u32 %v685, %v688
        %v690 = vrot.slane %v689, 4
        %v692 = vshll.u32 %v452, 16
        %v694 = vrot.slane %v692, 5
        %v695 = vsel %vm457, %v690, %v694
        %v697 = vshrl.u32 %v451, 16
        %v699 = vrot.slane %v697, 4
        %v700 = vshll.u32 %v451, 16
        %v702 = vrot.slane %v700, 5
        %v703 = vor.u32 %v699, %v702
        %v704 = vrot.slane %v703, 4
        %v706 = vshll.u32 %v453, 16
        %v708 = vrot.slane %v706, 5
        %v709 = vsel %vm457, %v704, %v708
        %v726 = vunpack.c.l.b16 %v418
        %v727 = vunpack.c.h.b16 %v418
        %v728 = vunpack.c.l.b16 %v419
        %v729 = vunpack.c.h.b16 %v419
        %v730 = vunpack.c.l.b16 %v422
        %v731 = vunpack.c.h.b16 %v422
        %v732 = vunpack.c.l.b16 %v423
        %v733 = vunpack.c.h.b16 %v423
        %v734 = vunpack.c.l.b16 %v426
        %v735 = vunpack.c.h.b16 %v426
        %v736 = vunpack.c.l.b16 %v427
        %v737 = vunpack.c.h.b16 %v427
        %v738 = vunpack.c.l.b16 %v430
        %v739 = vunpack.c.h.b16 %v430
        %v740 = vunpack.c.l.b16 %v431
        %v741 = vunpack.c.h.b16 %v431
        %v742 = vunpack.c.l.b16 %v434
        %v743 = vunpack.c.h.b16 %v434
        %v744 = vunpack.c.l.b16 %v435
        %v745 = vunpack.c.h.b16 %v435
        %v746 = vunpack.c.l.b16 %v438
        %v747 = vunpack.c.h.b16 %v438
        %v748 = vunpack.c.l.b16 %v439
        %v749 = vunpack.c.h.b16 %v439
        %v750 = vunpack.c.l.b16 %v442
        %v751 = vunpack.c.h.b16 %v442
        %v752 = vunpack.c.l.b16 %v443
        %v753 = vunpack.c.h.b16 %v443
        %v754 = vunpack.c.l.b16 %v446
        %v755 = vunpack.c.h.b16 %v446
        %v756 = vunpack.c.l.b16 %v447
        %v757 = vunpack.c.h.b16 %v447
        %v758 = vpack.c.b16 %v730, %v726
        %v759 = vpack.c.b16 %v731, %v727
        %v760 = vpack.c.b16 %v732, %v728
        %v761 = vpack.c.b16 %v733, %v729
        %v762 = vpack.c.b16 %v738, %v734
        %v763 = vpack.c.b16 %v739, %v735
        %v764 = vpack.c.b16 %v740, %v736
        %v765 = vpack.c.b16 %v741, %v737
        %v766 = vpack.c.b16 %v746, %v742
        %v767 = vpack.c.b16 %v747, %v743
        %v768 = vpack.c.b16 %v748, %v744
        %v769 = vpack.c.b16 %v749, %v745
        %v770 = vpack.c.b16 %v754, %v750
        %v771 = vpack.c.b16 %v755, %v751
        %v772 = vpack.c.b16 %v756, %v752
        %v773 = vpack.c.b16 %v757, %v753
        %v790 = vunpack.c.l.b16 %v471
        %v791 = vunpack.c.h.b16 %v471
        %v792 = vunpack.c.l.b16 %v485
        %v793 = vunpack.c.h.b16 %v485
        %v794 = vunpack.c.l.b16 %v499
        %v795 = vunpack.c.h.b16 %v499
        %v796 = vunpack.c.l.b16 %v513
        %v797 = vunpack.c.h.b16 %v513
        %v798 = vunpack.c.l.b16 %v527
        %v799 = vunpack.c.h.b16 %v527
        %v800 = vunpack.c.l.b16 %v541
        %v801 = vunpack.c.h.b16 %v541
        %v802 = vunpack.c.l.b16 %v555
        %v803 = vunpack.c.h.b16 %v555
        %v804 = vunpack.c.l.b16 %v569
        %v805 = vunpack.c.h.b16 %v569
        %v806 = vunpack.c.l.b16 %v583
        %v807 = vunpack.c.h.b16 %v583
        %v808 = vunpack.c.l.b16 %v597
        %v809 = vunpack.c.h.b16 %v597
        %v810 = vunpack.c.l.b16 %v611
        %v811 = vunpack.c.h.b16 %v611
        %v812 = vunpack.c.l.b16 %v625
        %v813 = vunpack.c.h.b16 %v625
        %v814 = vunpack.c.l.b16 %v639
        %v815 = vunpack.c.h.b16 %v639
        %v816 = vunpack.c.l.b16 %v653
        %v817 = vunpack.c.h.b16 %v653
        %v818 = vunpack.c.l.b16 %v667
        %v819 = vunpack.c.h.b16 %v667
        %v820 = vunpack.c.l.b16 %v681
        %v821 = vunpack.c.h.b16 %v681
        %v822 = vpack.c.b16 %v794, %v790
        %v823 = vpack.c.b16 %v795, %v791
        %v824 = vpack.c.b16 %v796, %v792
        %v825 = vpack.c.b16 %v797, %v793
        %v826 = vpack.c.b16 %v802, %v798
        %v827 = vpack.c.b16 %v803, %v799
        %v828 = vpack.c.b16 %v804, %v800
        %v829 = vpack.c.b16 %v805, %v801
        %v830 = vpack.c.b16 %v810, %v806
        %v831 = vpack.c.b16 %v811, %v807
        %v832 = vpack.c.b16 %v812, %v808
        %v833 = vpack.c.b16 %v813, %v809
        %v834 = vpack.c.b16 %v818, %v814
        %v835 = vpack.c.b16 %v819, %v815
        %v836 = vpack.c.b16 %v820, %v816
        %v837 = vpack.c.b16 %v821, %v817
        %v856 = vunpack.c.l.b16 %v450
        %v857 = vunpack.c.h.b16 %v450
        %v858 = vunpack.c.l.b16 %v451
        %v859 = vunpack.c.h.b16 %v451
        %v860 = vpack.c.b16 %v734, %v730
        %v861 = vpack.c.b16 %v735, %v731
        %v862 = vpack.c.b16 %v736, %v732
        %v863 = vpack.c.b16 %v737, %v733
        %v864 = vpack.c.b16 %v742, %v738
        %v865 = vpack.c.b16 %v743, %v739
        %v866 = vpack.c.b16 %v744, %v740
        %v867 = vpack.c.b16 %v745, %v741
        %v868 = vpack.c.b16 %v750, %v746
        %v869 = vpack.c.b16 %v751, %v747
        %v870 = vpack.c.b16 %v752, %v748
        %v871 = vpack.c.b16 %v753, %v749
        %v872 = vpack.c.b16 %v856, %v754
        %v873 = vpack.c.b16 %v857, %v755
        %v874 = vpack.c.b16 %v858, %v756
        %v875 = vpack.c.b16 %v859, %v757
        %v892 = vunpack.c.l.b16 %v695
        %v893 = vunpack.c.h.b16 %v695
        %v894 = vunpack.c.l.b16 %v709
        %v895 = vunpack.c.h.b16 %v709
        %v896 = vpack.c.b16 %v798, %v794
        %v897 = vpack.c.b16 %v799, %v795
        %v898 = vpack.c.b16 %v800, %v796
        %v899 = vpack.c.b16 %v801, %v797
        %v900 = vpack.c.b16 %v806, %v802
        %v901 = vpack.c.b16 %v807, %v803
        %v902 = vpack.c.b16 %v808, %v804
        %v903 = vpack.c.b16 %v809, %v805
        %v904 = vpack.c.b16 %v814, %v810
        %v905 = vpack.c.b16 %v815, %v811
        %v906 = vpack.c.b16 %v816, %v812
        %v907 = vpack.c.b16 %v817, %v813
        %v908 = vpack.c.b16 %v892, %v818
        %v909 = vpack.c.b16 %v893, %v819
        %v910 = vpack.c.b16 %v894, %v820
        %v911 = vpack.c.b16 %v895, %v821
        %v928 = vld [vmem:[#allocation6] sm:$0xf]
        %v929 = vld [vmem:[#allocation6 + $0x4] sm:$0xf]
        %v930 = vld [vmem:[#allocation6 + $0x8] sm:$0xf]
        %v931 = vld [vmem:[#allocation6 + $0xc] sm:$0xf]
        %v932 = vld [vmem:[#allocation6 + $0x10] sm:$0xf]
        %v933 = vld [vmem:[#allocation6 + $0x14] sm:$0xf]
        %v934 = vld [vmem:[#allocation6 + $0x18] sm:$0xf]
        %v935 = vld [vmem:[#allocation6 + $0x1c] sm:$0xf]
        %v936 = vld [vmem:[#allocation6 + $0x20] sm:$0xf]
        %v937 = vld [vmem:[#allocation6 + $0x24] sm:$0xf]
        %v938 = vld [vmem:[#allocation6 + $0x28] sm:$0xf]
        %v939 = vld [vmem:[#allocation6 + $0x2c] sm:$0xf]
        %v940 = vld [vmem:[#allocation6 + $0x30] sm:$0xf]
        %v941 = vld [vmem:[#allocation6 + $0x34] sm:$0xf]
        %v942 = vld [vmem:[#allocation6 + $0x38] sm:$0xf]
        %v943 = vld [vmem:[#allocation6 + $0x3c] sm:$0xf]
        %v944 = vld [vmem:[#allocation6 + $0x40] sm:$0xf]
        %v945 = vld [vmem:[#allocation6 + $0x44] sm:$0xf]
        %v946 = vld [vmem:[#allocation6 + $0x48] sm:$0xf]
        %v947 = vld [vmem:[#allocation6 + $0x4c] sm:$0xf]
        %v948 = vld [vmem:[#allocation6 + $0x50] sm:$0xf]
        %v949 = vld [vmem:[#allocation6 + $0x54] sm:$0xf]
        %v950 = vld [vmem:[#allocation6 + $0x58] sm:$0xf]
        %v951 = vld [vmem:[#allocation6 + $0x5c] sm:$0xf]
        %v952 = vld [vmem:[#allocation6 + $0x60] sm:$0xf]
        %v953 = vld [vmem:[#allocation6 + $0x64] sm:$0xf]
        %v954 = vld [vmem:[#allocation6 + $0x68] sm:$0xf]
        %v955 = vld [vmem:[#allocation6 + $0x6c] sm:$0xf]
        %v956 = vld [vmem:[#allocation6 + $0x70] sm:$0xf]
        %v957 = vld [vmem:[#allocation6 + $0x74] sm:$0xf]
        %v958 = vld [vmem:[#allocation6 + $0x78] sm:$0xf]
        %v959 = vld [vmem:[#allocation6 + $0x7c] sm:$0xf]
        %v960 = vld [vmem:[#allocation6 + $0x80] sm:$0xf]
        %v961 = vld [vmem:[#allocation6 + $0x84] sm:$0xf]
        %v962 = vld [vmem:[#allocation6 + $0x88] sm:$0xf]
        %v963 = vld [vmem:[#allocation6 + $0x8c] sm:$0xf]
        %v964 = vld [vmem:[#allocation6 + $0x90] sm:$0xf]
        %v965 = vld [vmem:[#allocation6 + $0x94] sm:$0xf]
        %v966 = vld [vmem:[#allocation6 + $0x98] sm:$0xf]
        %v967 = vld [vmem:[#allocation6 + $0x9c] sm:$0xf]
        %v968 = vld [vmem:[#allocation6 + $0xa0] sm:$0xf]
        %v969 = vld [vmem:[#allocation6 + $0xa4] sm:$0xf]
        %v970 = vld [vmem:[#allocation6 + $0xa8] sm:$0xf]
        %v971 = vld [vmem:[#allocation6 + $0xac] sm:$0xf]
        %v972 = vld [vmem:[#allocation6 + $0xb0] sm:$0xf]
        %v973 = vld [vmem:[#allocation6 + $0xb4] sm:$0xf]
        %v974 = vld [vmem:[#allocation6 + $0xb8] sm:$0xf]
        %v975 = vld [vmem:[#allocation6 + $0xbc] sm:$0xf]
        %v976 = vld [vmem:[#allocation6 + $0xc0] sm:$0xf]
        %v977 = vld [vmem:[#allocation6 + $0xc4] sm:$0xf]
        %v978 = vld [vmem:[#allocation6 + $0xc8] sm:$0xf]
        %v979 = vld [vmem:[#allocation6 + $0xcc] sm:$0xf]
        %v980 = vld [vmem:[#allocation6 + $0xd0] sm:$0xf]
        %v981 = vld [vmem:[#allocation6 + $0xd4] sm:$0xf]
        %v982 = vld [vmem:[#allocation6 + $0xd8] sm:$0xf]
        %v983 = vld [vmem:[#allocation6 + $0xdc] sm:$0xf]
        %v984 = vld [vmem:[#allocation6 + $0xe0] sm:$0xf]
        %v985 = vld [vmem:[#allocation6 + $0xe4] sm:$0xf]
        %v986 = vld [vmem:[#allocation6 + $0xe8] sm:$0xf]
        %v987 = vld [vmem:[#allocation6 + $0xec] sm:$0xf]
        %v988 = vld [vmem:[#allocation6 + $0xf0] sm:$0xf]
        %v989 = vld [vmem:[#allocation6 + $0xf4] sm:$0xf]
        %v990 = vld [vmem:[#allocation6 + $0xf8] sm:$0xf]
        %v991 = vld [vmem:[#allocation6 + $0xfc] sm:$0xf]
        %v992 = vld [vmem:[#allocation6 + $0x100] sm:$0xf]
        %v993 = vld [vmem:[#allocation6 + $0x104] sm:$0xf]
        %v994 = vld [vmem:[#allocation6 + $0x108] sm:$0xf]
        %v995 = vld [vmem:[#allocation6 + $0x10c] sm:$0xf]
        %v996 = vld [vmem:[#allocation6 + $0x110] sm:$0xf]
        %v997 = vld [vmem:[#allocation6 + $0x114] sm:$0xf]
        %v998 = vld [vmem:[#allocation6 + $0x118] sm:$0xf]
        %v999 = vld [vmem:[#allocation6 + $0x11c] sm:$0xf]
        %v1000 = vld [vmem:[#allocation6 + $0x120] sm:$0xf]
        %v1001 = vld [vmem:[#allocation6 + $0x124] sm:$0xf]
        %v1002 = vld [vmem:[#allocation6 + $0x128] sm:$0xf]
        %v1003 = vld [vmem:[#allocation6 + $0x12c] sm:$0xf]
        %v1004 = vld [vmem:[#allocation6 + $0x130] sm:$0xf]
        %v1005 = vld [vmem:[#allocation6 + $0x134] sm:$0xf]
        %v1006 = vld [vmem:[#allocation6 + $0x138] sm:$0xf]
        %v1007 = vld [vmem:[#allocation6 + $0x13c] sm:$0xf]
        %v1008 = vld [vmem:[#allocation6 + $0x140] sm:$0xf]
        %v1009 = vld [vmem:[#allocation6 + $0x144] sm:$0xf]
        %v1010 = vld [vmem:[#allocation6 + $0x148] sm:$0xf]
        %v1011 = vld [vmem:[#allocation6 + $0x14c] sm:$0xf]
        %v1012 = vld [vmem:[#allocation6 + $0x150] sm:$0xf]
        %v1013 = vld [vmem:[#allocation6 + $0x154] sm:$0xf]
        %v1014 = vld [vmem:[#allocation6 + $0x158] sm:$0xf]
        %v1015 = vld [vmem:[#allocation6 + $0x15c] sm:$0xf]
        %v1016 = vld [vmem:[#allocation6 + $0x160] sm:$0xf]
        %v1017 = vld [vmem:[#allocation6 + $0x164] sm:$0xf]
        %v1018 = vld [vmem:[#allocation6 + $0x168] sm:$0xf]
        %v1019 = vld [vmem:[#allocation6 + $0x16c] sm:$0xf]
        %v1020 = vld [vmem:[#allocation6 + $0x170] sm:$0xf]
        %v1021 = vld [vmem:[#allocation6 + $0x174] sm:$0xf]
        %v1022 = vld [vmem:[#allocation6 + $0x178] sm:$0xf]
        %v1023 = vld [vmem:[#allocation6 + $0x17c] sm:$0xf]
        %v1024 = vld [vmem:[#allocation6 + $0x180] sm:$0xf]
        %v1025 = vld [vmem:[#allocation6 + $0x184] sm:$0xf]
        %v1026 = vld [vmem:[#allocation6 + $0x188] sm:$0xf]
        %v1027 = vld [vmem:[#allocation6 + $0x18c] sm:$0xf]
        %v1028 = vld [vmem:[#allocation6 + $0x190] sm:$0xf]
        %v1029 = vld [vmem:[#allocation6 + $0x194] sm:$0xf]
        %v1030 = vld [vmem:[#allocation6 + $0x198] sm:$0xf]
        %v1031 = vld [vmem:[#allocation6 + $0x19c] sm:$0xf]
        %v1032 = vld [vmem:[#allocation6 + $0x1a0] sm:$0xf]
        %v1033 = vld [vmem:[#allocation6 + $0x1a4] sm:$0xf]
        %v1034 = vld [vmem:[#allocation6 + $0x1a8] sm:$0xf]
        %v1035 = vld [vmem:[#allocation6 + $0x1ac] sm:$0xf]
        %v1036 = vld [vmem:[#allocation6 + $0x1b0] sm:$0xf]
        %v1037 = vld [vmem:[#allocation6 + $0x1b4] sm:$0xf]
        %v1038 = vld [vmem:[#allocation6 + $0x1b8] sm:$0xf]
        %v1039 = vld [vmem:[#allocation6 + $0x1bc] sm:$0xf]
        %v1040 = vld [vmem:[#allocation6 + $0x1c0] sm:$0xf]
        %v1041 = vld [vmem:[#allocation6 + $0x1c4] sm:$0xf]
        %v1042 = vld [vmem:[#allocation6 + $0x1c8] sm:$0xf]
        %v1043 = vld [vmem:[#allocation6 + $0x1cc] sm:$0xf]
        %v1044 = vld [vmem:[#allocation6 + $0x1d0] sm:$0xf]
        %v1045 = vld [vmem:[#allocation6 + $0x1d4] sm:$0xf]
        %v1046 = vld [vmem:[#allocation6 + $0x1d8] sm:$0xf]
        %v1047 = vld [vmem:[#allocation6 + $0x1dc] sm:$0xf]
        %v1048 = vld [vmem:[#allocation6 + $0x1e0] sm:$0xf]
        %v1049 = vld [vmem:[#allocation6 + $0x1e4] sm:$0xf]
        %v1050 = vld [vmem:[#allocation6 + $0x1e8] sm:$0xf]
        %v1051 = vld [vmem:[#allocation6 + $0x1ec] sm:$0xf]
        %v1052 = vld [vmem:[#allocation6 + $0x1f0] sm:$0xf]
        %v1053 = vld [vmem:[#allocation6 + $0x1f4] sm:$0xf]
        %v1054 = vld [vmem:[#allocation6 + $0x1f8] sm:$0xf]
        %v1055 = vld [vmem:[#allocation6 + $0x1fc] sm:$0xf]
        %v1056 = vld [vmem:[#allocation6 + $0x200] sm:$0xf]
        %v1057 = vld [vmem:[#allocation6 + $0x204] sm:$0xf]
        %v1058 = vld [vmem:[#allocation6 + $0x208] sm:$0xf]
        %v1059 = vld [vmem:[#allocation6 + $0x20c] sm:$0xf]
        %v1060 = vld [vmem:[#allocation6 + $0x210] sm:$0xf]
        %v1061 = vld [vmem:[#allocation6 + $0x214] sm:$0xf]
        %v1062 = vld [vmem:[#allocation6 + $0x218] sm:$0xf]
        %v1063 = vld [vmem:[#allocation6 + $0x21c] sm:$0xf]
        %v1064 = vld [vmem:[#allocation6 + $0x220] sm:$0xf]
        %v1065 = vld [vmem:[#allocation6 + $0x224] sm:$0xf]
        %v1066 = vld [vmem:[#allocation6 + $0x228] sm:$0xf]
        %v1067 = vld [vmem:[#allocation6 + $0x22c] sm:$0xf]
        %v1068 = vld [vmem:[#allocation6 + $0x230] sm:$0xf]
        %v1069 = vld [vmem:[#allocation6 + $0x234] sm:$0xf]
        %v1070 = vld [vmem:[#allocation6 + $0x238] sm:$0xf]
        %v1071 = vld [vmem:[#allocation6 + $0x23c] sm:$0xf]
        %v1072 = vld [vmem:[#allocation6 + $0x240] sm:$0xf]
        %v1073 = vld [vmem:[#allocation6 + $0x244] sm:$0xf]
        %v1074 = vld [vmem:[#allocation6 + $0x248] sm:$0xf]
        %v1075 = vld [vmem:[#allocation6 + $0x24c] sm:$0xf]
        %v1076 = vld [vmem:[#allocation6 + $0x250] sm:$0xf]
        %v1077 = vld [vmem:[#allocation6 + $0x254] sm:$0xf]
        %v1078 = vld [vmem:[#allocation6 + $0x258] sm:$0xf]
        %v1079 = vld [vmem:[#allocation6 + $0x25c] sm:$0xf]
        %v1080 = vld [vmem:[#allocation6 + $0x260] sm:$0xf]
        %v1081 = vld [vmem:[#allocation6 + $0x264] sm:$0xf]
        %v1082 = vld [vmem:[#allocation6 + $0x268] sm:$0xf]
        %v1083 = vld [vmem:[#allocation6 + $0x26c] sm:$0xf]
        %v1084 = vld [vmem:[#allocation6 + $0x270] sm:$0xf]
        %v1085 = vld [vmem:[#allocation6 + $0x274] sm:$0xf]
        %v1086 = vld [vmem:[#allocation6 + $0x278] sm:$0xf]
        %v1087 = vld [vmem:[#allocation6 + $0x27c] sm:$0xf]
        %v1088 = vld [vmem:[#allocation6 + $0x280] sm:$0xf]
        %v1089 = vld [vmem:[#allocation6 + $0x284] sm:$0xf]
        %v1090 = vld [vmem:[#allocation6 + $0x288] sm:$0xf]
        %v1091 = vld [vmem:[#allocation6 + $0x28c] sm:$0xf]
        %v1092 = vld [vmem:[#allocation6 + $0x290] sm:$0xf]
        %v1093 = vld [vmem:[#allocation6 + $0x294] sm:$0xf]
        %v1094 = vld [vmem:[#allocation6 + $0x298] sm:$0xf]
        %v1095 = vld [vmem:[#allocation6 + $0x29c] sm:$0xf]
        %v1096 = vld [vmem:[#allocation6 + $0x2a0] sm:$0xf]
        %v1097 = vld [vmem:[#allocation6 + $0x2a4] sm:$0xf]
        %v1098 = vld [vmem:[#allocation6 + $0x2a8] sm:$0xf]
        %v1099 = vld [vmem:[#allocation6 + $0x2ac] sm:$0xf]
        %v1100 = vld [vmem:[#allocation6 + $0x2b0] sm:$0xf]
        %v1101 = vld [vmem:[#allocation6 + $0x2b4] sm:$0xf]
        %v1102 = vld [vmem:[#allocation6 + $0x2b8] sm:$0xf]
        %v1103 = vld [vmem:[#allocation6 + $0x2bc] sm:$0xf]
        %v1104 = vld [vmem:[#allocation6 + $0x2c0] sm:$0xf]
        %v1105 = vld [vmem:[#allocation6 + $0x2c4] sm:$0xf]
        %v1106 = vld [vmem:[#allocation6 + $0x2c8] sm:$0xf]
        %v1107 = vld [vmem:[#allocation6 + $0x2cc] sm:$0xf]
        %v1108 = vld [vmem:[#allocation6 + $0x2d0] sm:$0xf]
        %v1109 = vld [vmem:[#allocation6 + $0x2d4] sm:$0xf]
        %v1110 = vld [vmem:[#allocation6 + $0x2d8] sm:$0xf]
        %v1111 = vld [vmem:[#allocation6 + $0x2dc] sm:$0xf]
        %v1112 = vld [vmem:[#allocation6 + $0x2e0] sm:$0xf]
        %v1113 = vld [vmem:[#allocation6 + $0x2e4] sm:$0xf]
        %v1114 = vld [vmem:[#allocation6 + $0x2e8] sm:$0xf]
        %v1115 = vld [vmem:[#allocation6 + $0x2ec] sm:$0xf]
        %v1116 = vld [vmem:[#allocation6 + $0x2f0] sm:$0xf]
        %v1117 = vld [vmem:[#allocation6 + $0x2f4] sm:$0xf]
        %v1118 = vld [vmem:[#allocation6 + $0x2f8] sm:$0xf]
        %v1119 = vld [vmem:[#allocation6 + $0x2fc] sm:$0xf]
        %v1120 = vld [vmem:[#allocation6 + $0x300] sm:$0xf]
        %v1121 = vld [vmem:[#allocation6 + $0x304] sm:$0xf]
        %v1122 = vld [vmem:[#allocation6 + $0x308] sm:$0xf]
        %v1123 = vld [vmem:[#allocation6 + $0x30c] sm:$0xf]
        %v1124 = vld [vmem:[#allocation6 + $0x310] sm:$0xf]
        %v1125 = vld [vmem:[#allocation6 + $0x314] sm:$0xf]
        %v1126 = vld [vmem:[#allocation6 + $0x318] sm:$0xf]
        %v1127 = vld [vmem:[#allocation6 + $0x31c] sm:$0xf]
        %v1128 = vld [vmem:[#allocation6 + $0x320] sm:$0xf]
        %v1129 = vld [vmem:[#allocation6 + $0x324] sm:$0xf]
        %v1130 = vld [vmem:[#allocation6 + $0x328] sm:$0xf]
        %v1131 = vld [vmem:[#allocation6 + $0x32c] sm:$0xf]
        %v1132 = vld [vmem:[#allocation6 + $0x330] sm:$0xf]
        %v1133 = vld [vmem:[#allocation6 + $0x334] sm:$0xf]
        %v1134 = vld [vmem:[#allocation6 + $0x338] sm:$0xf]
        %v1135 = vld [vmem:[#allocation6 + $0x33c] sm:$0xf]
        %v1136 = vld [vmem:[#allocation6 + $0x340] sm:$0xf]
        %v1137 = vld [vmem:[#allocation6 + $0x344] sm:$0xf]
        %v1138 = vld [vmem:[#allocation6 + $0x348] sm:$0xf]
        %v1139 = vld [vmem:[#allocation6 + $0x34c] sm:$0xf]
        %v1140 = vld [vmem:[#allocation6 + $0x350] sm:$0xf]
        %v1141 = vld [vmem:[#allocation6 + $0x354] sm:$0xf]
        %v1142 = vld [vmem:[#allocation6 + $0x358] sm:$0xf]
        %v1143 = vld [vmem:[#allocation6 + $0x35c] sm:$0xf]
        %v1144 = vld [vmem:[#allocation6 + $0x360] sm:$0xf]
        %v1145 = vld [vmem:[#allocation6 + $0x364] sm:$0xf]
        %v1146 = vld [vmem:[#allocation6 + $0x368] sm:$0xf]
        %v1147 = vld [vmem:[#allocation6 + $0x36c] sm:$0xf]
        %v1148 = vld [vmem:[#allocation6 + $0x370] sm:$0xf]
        %v1149 = vld [vmem:[#allocation6 + $0x374] sm:$0xf]
        %v1150 = vld [vmem:[#allocation6 + $0x378] sm:$0xf]
        %v1151 = vld [vmem:[#allocation6 + $0x37c] sm:$0xf]
        %v1152 = vld [vmem:[#allocation6 + $0x380] sm:$0xf]
        %v1153 = vld [vmem:[#allocation6 + $0x384] sm:$0xf]
        %v1154 = vld [vmem:[#allocation6 + $0x388] sm:$0xf]
        %v1155 = vld [vmem:[#allocation6 + $0x38c] sm:$0xf]
        %v1156 = vld [vmem:[#allocation6 + $0x390] sm:$0xf]
        %v1157 = vld [vmem:[#allocation6 + $0x394] sm:$0xf]
        %v1158 = vld [vmem:[#allocation6 + $0x398] sm:$0xf]
        %v1159 = vld [vmem:[#allocation6 + $0x39c] sm:$0xf]
        %v1160 = vld [vmem:[#allocation6 + $0x3a0] sm:$0xf]
        %v1161 = vld [vmem:[#allocation6 + $0x3a4] sm:$0xf]
        %v1162 = vld [vmem:[#allocation6 + $0x3a8] sm:$0xf]
        %v1163 = vld [vmem:[#allocation6 + $0x3ac] sm:$0xf]
        %v1164 = vld [vmem:[#allocation6 + $0x3b0] sm:$0xf]
        %v1165 = vld [vmem:[#allocation6 + $0x3b4] sm:$0xf]
        %v1166 = vld [vmem:[#allocation6 + $0x3b8] sm:$0xf]
        %v1167 = vld [vmem:[#allocation6 + $0x3bc] sm:$0xf]
        %v1168 = vld [vmem:[#allocation6 + $0x3c0] sm:$0xf]
        %v1169 = vld [vmem:[#allocation6 + $0x3c4] sm:$0xf]
        %v1170 = vld [vmem:[#allocation6 + $0x3c8] sm:$0xf]
        %v1171 = vld [vmem:[#allocation6 + $0x3cc] sm:$0xf]
        %v1172 = vld [vmem:[#allocation6 + $0x3d0] sm:$0xf]
        %v1173 = vld [vmem:[#allocation6 + $0x3d4] sm:$0xf]
        %v1174 = vld [vmem:[#allocation6 + $0x3d8] sm:$0xf]
        %v1175 = vld [vmem:[#allocation6 + $0x3dc] sm:$0xf]
        %v1176 = vld [vmem:[#allocation6 + $0x3e0] sm:$0xf]
        %v1177 = vld [vmem:[#allocation6 + $0x3e4] sm:$0xf]
        %v1178 = vld [vmem:[#allocation6 + $0x3e8] sm:$0xf]
        %v1179 = vld [vmem:[#allocation6 + $0x3ec] sm:$0xf]
        %v1180 = vld [vmem:[#allocation6 + $0x3f0] sm:$0xf]
        %v1181 = vld [vmem:[#allocation6 + $0x3f4] sm:$0xf]
        %v1182 = vld [vmem:[#allocation6 + $0x3f8] sm:$0xf]
        %v1183 = vld [vmem:[#allocation6 + $0x3fc] sm:$0xf]
        %v1185 = vlaneseq
        %v1186 = vshrl.u32 %v1185, 7
        %v1187 = vsub.s32 0, %v1186
        %v1188 = vrot.slane %v454, %v1187
        %v1446 = vunpack.c.l.b16 %v928
        %v1447 = vunpack.c.l.b16 %v929
        %v1448 = vunpack.c.l.b16 %v930
        %v1449 = vunpack.c.l.b16 %v931
        %v1450 = vunpack.c.l.b16 %v932
        %v1451 = vunpack.c.l.b16 %v933
        %v1452 = vunpack.c.l.b16 %v934
        %v1453 = vunpack.c.l.b16 %v935
        %v1454 = vunpack.c.l.b16 %v936
        %v1455 = vunpack.c.l.b16 %v937
        %v1456 = vunpack.c.l.b16 %v938
        %v1457 = vunpack.c.l.b16 %v939
        %v1458 = vunpack.c.l.b16 %v940
        %v1459 = vunpack.c.l.b16 %v941
        %v1460 = vunpack.c.l.b16 %v942
        %v1461 = vunpack.c.l.b16 %v943
        %v1462 = vunpack.c.l.b16 %v944
        %v1463 = vunpack.c.l.b16 %v945
        %v1464 = vunpack.c.l.b16 %v946
        %v1465 = vunpack.c.l.b16 %v947
        %v1466 = vunpack.c.l.b16 %v948
        %v1467 = vunpack.c.l.b16 %v949
        %v1468 = vunpack.c.l.b16 %v950
        %v1469 = vunpack.c.l.b16 %v951
        %v1470 = vunpack.c.l.b16 %v952
        %v1471 = vunpack.c.l.b16 %v953
        %v1472 = vunpack.c.l.b16 %v954
        %v1473 = vunpack.c.l.b16 %v955
        %v1474 = vunpack.c.l.b16 %v956
        %v1475 = vunpack.c.l.b16 %v957
        %v1476 = vunpack.c.l.b16 %v958
        %v1477 = vunpack.c.l.b16 %v959
        %v1478 = vunpack.c.l.b16 %v960
        %v1479 = vunpack.c.l.b16 %v961
        %v1480 = vunpack.c.l.b16 %v962
        %v1481 = vunpack.c.l.b16 %v963
        %v1482 = vunpack.c.l.b16 %v964
        %v1483 = vunpack.c.l.b16 %v965
        %v1484 = vunpack.c.l.b16 %v966
        %v1485 = vunpack.c.l.b16 %v967
        %v1486 = vunpack.c.l.b16 %v968
        %v1487 = vunpack.c.l.b16 %v969
        %v1488 = vunpack.c.l.b16 %v970
        %v1489 = vunpack.c.l.b16 %v971
        %v1490 = vunpack.c.l.b16 %v972
        %v1491 = vunpack.c.l.b16 %v973
        %v1492 = vunpack.c.l.b16 %v974
        %v1493 = vunpack.c.l.b16 %v975
        %v1494 = vunpack.c.l.b16 %v976
        %v1495 = vunpack.c.l.b16 %v977
        %v1496 = vunpack.c.l.b16 %v978
        %v1497 = vunpack.c.l.b16 %v979
        %v1498 = vunpack.c.l.b16 %v980
        %v1499 = vunpack.c.l.b16 %v981
        %v1500 = vunpack.c.l.b16 %v982
        %v1501 = vunpack.c.l.b16 %v983
        %v1502 = vunpack.c.l.b16 %v984
        %v1503 = vunpack.c.l.b16 %v985
        %v1504 = vunpack.c.l.b16 %v986
        %v1505 = vunpack.c.l.b16 %v987
        %v1506 = vunpack.c.l.b16 %v988
        %v1507 = vunpack.c.l.b16 %v989
        %v1508 = vunpack.c.l.b16 %v990
        %v1509 = vunpack.c.l.b16 %v991
        %v1510 = vunpack.c.l.b16 %v992
        %v1511 = vunpack.c.l.b16 %v993
        %v1512 = vunpack.c.l.b16 %v994
        %v1513 = vunpack.c.l.b16 %v995
        %v1514 = vunpack.c.l.b16 %v996
        %v1515 = vunpack.c.l.b16 %v997
        %v1516 = vunpack.c.l.b16 %v998
        %v1517 = vunpack.c.l.b16 %v999
        %v1518 = vunpack.c.l.b16 %v1000
        %v1519 = vunpack.c.l.b16 %v1001
        %v1520 = vunpack.c.l.b16 %v1002
        %v1521 = vunpack.c.l.b16 %v1003
        %v1522 = vunpack.c.l.b16 %v1004
        %v1523 = vunpack.c.l.b16 %v1005
        %v1524 = vunpack.c.l.b16 %v1006
        %v1525 = vunpack.c.l.b16 %v1007
        %v1526 = vunpack.c.l.b16 %v1008
        %v1527 = vunpack.c.l.b16 %v1009
        %v1528 = vunpack.c.l.b16 %v1010
        %v1529 = vunpack.c.l.b16 %v1011
        %v1530 = vunpack.c.l.b16 %v1012
        %v1531 = vunpack.c.l.b16 %v1013
        %v1532 = vunpack.c.l.b16 %v1014
        %v1533 = vunpack.c.l.b16 %v1015
        %v1534 = vunpack.c.l.b16 %v1016
        %v1535 = vunpack.c.l.b16 %v1017
        %v1536 = vunpack.c.l.b16 %v1018
        %v1537 = vunpack.c.l.b16 %v1019
        %v1538 = vunpack.c.l.b16 %v1020
        %v1539 = vunpack.c.l.b16 %v1021
        %v1540 = vunpack.c.l.b16 %v1022
        %v1541 = vunpack.c.l.b16 %v1023
        %v1542 = vunpack.c.l.b16 %v1024
        %v1543 = vunpack.c.l.b16 %v1025
        %v1544 = vunpack.c.l.b16 %v1026
        %v1545 = vunpack.c.l.b16 %v1027
        %v1546 = vunpack.c.l.b16 %v1028
        %v1547 = vunpack.c.l.b16 %v1029
        %v1548 = vunpack.c.l.b16 %v1030
        %v1549 = vunpack.c.l.b16 %v1031
        %v1550 = vunpack.c.l.b16 %v1032
        %v1551 = vunpack.c.l.b16 %v1033
        %v1552 = vunpack.c.l.b16 %v1034
        %v1553 = vunpack.c.l.b16 %v1035
        %v1554 = vunpack.c.l.b16 %v1036
        %v1555 = vunpack.c.l.b16 %v1037
        %v1556 = vunpack.c.l.b16 %v1038
        %v1557 = vunpack.c.l.b16 %v1039
        %v1558 = vunpack.c.l.b16 %v1040
        %v1559 = vunpack.c.l.b16 %v1041
        %v1560 = vunpack.c.l.b16 %v1042
        %v1561 = vunpack.c.l.b16 %v1043
        %v1562 = vunpack.c.l.b16 %v1044
        %v1563 = vunpack.c.l.b16 %v1045
        %v1564 = vunpack.c.l.b16 %v1046
        %v1565 = vunpack.c.l.b16 %v1047
        %v1566 = vunpack.c.l.b16 %v1048
        %v1567 = vunpack.c.l.b16 %v1049
        %v1568 = vunpack.c.l.b16 %v1050
        %v1569 = vunpack.c.l.b16 %v1051
        %v1570 = vunpack.c.l.b16 %v1052
        %v1571 = vunpack.c.l.b16 %v1053
        %v1572 = vunpack.c.l.b16 %v1054
        %v1573 = vunpack.c.l.b16 %v1055
        %v1574 = vunpack.c.l.b16 %v1056
        %v1575 = vunpack.c.l.b16 %v1057
        %v1576 = vunpack.c.l.b16 %v1058
        %v1577 = vunpack.c.l.b16 %v1059
        %v1578 = vunpack.c.l.b16 %v1060
        %v1579 = vunpack.c.l.b16 %v1061
        %v1580 = vunpack.c.l.b16 %v1062
        %v1581 = vunpack.c.l.b16 %v1063
        %v1582 = vunpack.c.l.b16 %v1064
        %v1583 = vunpack.c.l.b16 %v1065
        %v1584 = vunpack.c.l.b16 %v1066
        %v1585 = vunpack.c.l.b16 %v1067
        %v1586 = vunpack.c.l.b16 %v1068
        %v1587 = vunpack.c.l.b16 %v1069
        %v1588 = vunpack.c.l.b16 %v1070
        %v1589 = vunpack.c.l.b16 %v1071
        %v1590 = vunpack.c.l.b16 %v1072
        %v1591 = vunpack.c.l.b16 %v1073
        %v1592 = vunpack.c.l.b16 %v1074
        %v1593 = vunpack.c.l.b16 %v1075
        %v1594 = vunpack.c.l.b16 %v1076
        %v1595 = vunpack.c.l.b16 %v1077
        %v1596 = vunpack.c.l.b16 %v1078
        %v1597 = vunpack.c.l.b16 %v1079
        %v1598 = vunpack.c.l.b16 %v1080
        %v1599 = vunpack.c.l.b16 %v1081
        %v1600 = vunpack.c.l.b16 %v1082
        %v1601 = vunpack.c.l.b16 %v1083
        %v1602 = vunpack.c.l.b16 %v1084
        %v1603 = vunpack.c.l.b16 %v1085
        %v1604 = vunpack.c.l.b16 %v1086
        %v1605 = vunpack.c.l.b16 %v1087
        %v1606 = vunpack.c.l.b16 %v1088
        %v1607 = vunpack.c.l.b16 %v1089
        %v1608 = vunpack.c.l.b16 %v1090
        %v1609 = vunpack.c.l.b16 %v1091
        %v1610 = vunpack.c.l.b16 %v1092
        %v1611 = vunpack.c.l.b16 %v1093
        %v1612 = vunpack.c.l.b16 %v1094
        %v1613 = vunpack.c.l.b16 %v1095
        %v1614 = vunpack.c.l.b16 %v1096
        %v1615 = vunpack.c.l.b16 %v1097
        %v1616 = vunpack.c.l.b16 %v1098
        %v1617 = vunpack.c.l.b16 %v1099
        %v1618 = vunpack.c.l.b16 %v1100
        %v1619 = vunpack.c.l.b16 %v1101
        %v1620 = vunpack.c.l.b16 %v1102
        %v1621 = vunpack.c.l.b16 %v1103
        %v1622 = vunpack.c.l.b16 %v1104
        %v1623 = vunpack.c.l.b16 %v1105
        %v1624 = vunpack.c.l.b16 %v1106
        %v1625 = vunpack.c.l.b16 %v1107
        %v1626 = vunpack.c.l.b16 %v1108
        %v1627 = vunpack.c.l.b16 %v1109
        %v1628 = vunpack.c.l.b16 %v1110
        %v1629 = vunpack.c.l.b16 %v1111
        %v1630 = vunpack.c.l.b16 %v1112
        %v1631 = vunpack.c.l.b16 %v1113
        %v1632 = vunpack.c.l.b16 %v1114
        %v1633 = vunpack.c.l.b16 %v1115
        %v1634 = vunpack.c.l.b16 %v1116
        %v1635 = vunpack.c.l.b16 %v1117
        %v1636 = vunpack.c.l.b16 %v1118
        %v1637 = vunpack.c.l.b16 %v1119
        %v1638 = vunpack.c.l.b16 %v1120
        %v1639 = vunpack.c.l.b16 %v1121
        %v1640 = vunpack.c.l.b16 %v1122
        %v1641 = vunpack.c.l.b16 %v1123
        %v1642 = vunpack.c.l.b16 %v1124
        %v1643 = vunpack.c.l.b16 %v1125
        %v1644 = vunpack.c.l.b16 %v1126
        %v1645 = vunpack.c.l.b16 %v1127
        %v1646 = vunpack.c.l.b16 %v1128
        %v1647 = vunpack.c.l.b16 %v1129
        %v1648 = vunpack.c.l.b16 %v1130
        %v1649 = vunpack.c.l.b16 %v1131
        %v1650 = vunpack.c.l.b16 %v1132
        %v1651 = vunpack.c.l.b16 %v1133
        %v1652 = vunpack.c.l.b16 %v1134
        %v1653 = vunpack.c.l.b16 %v1135
        %v1654 = vunpack.c.l.b16 %v1136
        %v1655 = vunpack.c.l.b16 %v1137
        %v1656 = vunpack.c.l.b16 %v1138
        %v1657 = vunpack.c.l.b16 %v1139
        %v1658 = vunpack.c.l.b16 %v1140
        %v1659 = vunpack.c.l.b16 %v1141
        %v1660 = vunpack.c.l.b16 %v1142
        %v1661 = vunpack.c.l.b16 %v1143
        %v1662 = vunpack.c.l.b16 %v1144
        %v1663 = vunpack.c.l.b16 %v1145
        %v1664 = vunpack.c.l.b16 %v1146
        %v1665 = vunpack.c.l.b16 %v1147
        %v1666 = vunpack.c.l.b16 %v1148
        %v1667 = vunpack.c.l.b16 %v1149
        %v1668 = vunpack.c.l.b16 %v1150
        %v1669 = vunpack.c.l.b16 %v1151
        %v1670 = vunpack.c.l.b16 %v1152
        %v1671 = vunpack.c.l.b16 %v1153
        %v1672 = vunpack.c.l.b16 %v1154
        %v1673 = vunpack.c.l.b16 %v1155
        %v1674 = vunpack.c.l.b16 %v1156
        %v1675 = vunpack.c.l.b16 %v1157
        %v1676 = vunpack.c.l.b16 %v1158
        %v1677 = vunpack.c.l.b16 %v1159
        %v1678 = vunpack.c.l.b16 %v1160
        %v1679 = vunpack.c.l.b16 %v1161
        %v1680 = vunpack.c.l.b16 %v1162
        %v1681 = vunpack.c.l.b16 %v1163
        %v1682 = vunpack.c.l.b16 %v1164
        %v1683 = vunpack.c.l.b16 %v1165
        %v1684 = vunpack.c.l.b16 %v1166
        %v1685 = vunpack.c.l.b16 %v1167
        %v1686 = vunpack.c.l.b16 %v1168
        %v1687 = vunpack.c.l.b16 %v1169
        %v1688 = vunpack.c.l.b16 %v1170
        %v1689 = vunpack.c.l.b16 %v1171
        %v1690 = vunpack.c.l.b16 %v1172
        %v1691 = vunpack.c.l.b16 %v1173
        %v1692 = vunpack.c.l.b16 %v1174
        %v1693 = vunpack.c.l.b16 %v1175
        %v1694 = vunpack.c.l.b16 %v1176
        %v1695 = vunpack.c.l.b16 %v1177
        %v1696 = vunpack.c.l.b16 %v1178
        %v1697 = vunpack.c.l.b16 %v1179
        %v1698 = vunpack.c.l.b16 %v1180
        %v1699 = vunpack.c.l.b16 %v1181
        %v1700 = vunpack.c.l.b16 %v1182
        %v1701 = vunpack.c.l.b16 %v1183
        %v1702 = vpack.c.b16 %v1447, %v1446
        %v1703 = vpack.c.b16 %v1449, %v1448
        %v1704 = vpack.c.b16 %v1451, %v1450
        %v1705 = vpack.c.b16 %v1453, %v1452
        %v1706 = vpack.c.b16 %v1455, %v1454
        %v1707 = vpack.c.b16 %v1457, %v1456
        %v1708 = vpack.c.b16 %v1459, %v1458
        %v1709 = vpack.c.b16 %v1461, %v1460
        %v1710 = vpack.c.b16 %v1463, %v1462
        %v1711 = vpack.c.b16 %v1465, %v1464
        %v1712 = vpack.c.b16 %v1467, %v1466
        %v1713 = vpack.c.b16 %v1469, %v1468
        %v1714 = vpack.c.b16 %v1471, %v1470
        %v1715 = vpack.c.b16 %v1473, %v1472
        %v1716 = vpack.c.b16 %v1475, %v1474
        %v1717 = vpack.c.b16 %v1477, %v1476
        %v1718 = vpack.c.b16 %v1479, %v1478
        %v1719 = vpack.c.b16 %v1481, %v1480
        %v1720 = vpack.c.b16 %v1483, %v1482
        %v1721 = vpack.c.b16 %v1485, %v1484
        %v1722 = vpack.c.b16 %v1487, %v1486
        %v1723 = vpack.c.b16 %v1489, %v1488
        %v1724 = vpack.c.b16 %v1491, %v1490
        %v1725 = vpack.c.b16 %v1493, %v1492
        %v1726 = vpack.c.b16 %v1495, %v1494
        %v1727 = vpack.c.b16 %v1497, %v1496
        %v1728 = vpack.c.b16 %v1499, %v1498
        %v1729 = vpack.c.b16 %v1501, %v1500
        %v1730 = vpack.c.b16 %v1503, %v1502
        %v1731 = vpack.c.b16 %v1505, %v1504
        %v1732 = vpack.c.b16 %v1507, %v1506
        %v1733 = vpack.c.b16 %v1509, %v1508
        %v1734 = vpack.c.b16 %v1511, %v1510
        %v1735 = vpack.c.b16 %v1513, %v1512
        %v1736 = vpack.c.b16 %v1515, %v1514
        %v1737 = vpack.c.b16 %v1517, %v1516
        %v1738 = vpack.c.b16 %v1519, %v1518
        %v1739 = vpack.c.b16 %v1521, %v1520
        %v1740 = vpack.c.b16 %v1523, %v1522
        %v1741 = vpack.c.b16 %v1525, %v1524
        %v1742 = vpack.c.b16 %v1527, %v1526
        %v1743 = vpack.c.b16 %v1529, %v1528
        %v1744 = vpack.c.b16 %v1531, %v1530
        %v1745 = vpack.c.b16 %v1533, %v1532
        %v1746 = vpack.c.b16 %v1535, %v1534
        %v1747 = vpack.c.b16 %v1537, %v1536
        %v1748 = vpack.c.b16 %v1539, %v1538
        %v1749 = vpack.c.b16 %v1541, %v1540
        %v1750 = vpack.c.b16 %v1543, %v1542
        %v1751 = vpack.c.b16 %v1545, %v1544
        %v1752 = vpack.c.b16 %v1547, %v1546
        %v1753 = vpack.c.b16 %v1549, %v1548
        %v1754 = vpack.c.b16 %v1551, %v1550
        %v1755 = vpack.c.b16 %v1553, %v1552
        %v1756 = vpack.c.b16 %v1555, %v1554
        %v1757 = vpack.c.b16 %v1557, %v1556
        %v1758 = vpack.c.b16 %v1559, %v1558
        %v1759 = vpack.c.b16 %v1561, %v1560
        %v1760 = vpack.c.b16 %v1563, %v1562
        %v1761 = vpack.c.b16 %v1565, %v1564
        %v1762 = vpack.c.b16 %v1567, %v1566
        %v1763 = vpack.c.b16 %v1569, %v1568
        %v1764 = vpack.c.b16 %v1571, %v1570
        %v1765 = vpack.c.b16 %v1573, %v1572
        %v1766 = vpack.c.b16 %v1575, %v1574
        %v1767 = vpack.c.b16 %v1577, %v1576
        %v1768 = vpack.c.b16 %v1579, %v1578
        %v1769 = vpack.c.b16 %v1581, %v1580
        %v1770 = vpack.c.b16 %v1583, %v1582
        %v1771 = vpack.c.b16 %v1585, %v1584
        %v1772 = vpack.c.b16 %v1587, %v1586
        %v1773 = vpack.c.b16 %v1589, %v1588
        %v1774 = vpack.c.b16 %v1591, %v1590
        %v1775 = vpack.c.b16 %v1593, %v1592
        %v1776 = vpack.c.b16 %v1595, %v1594
        %v1777 = vpack.c.b16 %v1597, %v1596
        %v1778 = vpack.c.b16 %v1599, %v1598
        %v1779 = vpack.c.b16 %v1601, %v1600
        %v1780 = vpack.c.b16 %v1603, %v1602
        %v1781 = vpack.c.b16 %v1605, %v1604
        %v1782 = vpack.c.b16 %v1607, %v1606
        %v1783 = vpack.c.b16 %v1609, %v1608
        %v1784 = vpack.c.b16 %v1611, %v1610
        %v1785 = vpack.c.b16 %v1613, %v1612
        %v1786 = vpack.c.b16 %v1615, %v1614
        %v1787 = vpack.c.b16 %v1617, %v1616
        %v1788 = vpack.c.b16 %v1619, %v1618
        %v1789 = vpack.c.b16 %v1621, %v1620
        %v1790 = vpack.c.b16 %v1623, %v1622
        %v1791 = vpack.c.b16 %v1625, %v1624
        %v1792 = vpack.c.b16 %v1627, %v1626
        %v1793 = vpack.c.b16 %v1629, %v1628
        %v1794 = vpack.c.b16 %v1631, %v1630
        %v1795 = vpack.c.b16 %v1633, %v1632
        %v1796 = vpack.c.b16 %v1635, %v1634
        %v1797 = vpack.c.b16 %v1637, %v1636
        %v1798 = vpack.c.b16 %v1639, %v1638
        %v1799 = vpack.c.b16 %v1641, %v1640
        %v1800 = vpack.c.b16 %v1643, %v1642
        %v1801 = vpack.c.b16 %v1645, %v1644
        %v1802 = vpack.c.b16 %v1647, %v1646
        %v1803 = vpack.c.b16 %v1649, %v1648
        %v1804 = vpack.c.b16 %v1651, %v1650
        %v1805 = vpack.c.b16 %v1653, %v1652
        %v1806 = vpack.c.b16 %v1655, %v1654
        %v1807 = vpack.c.b16 %v1657, %v1656
        %v1808 = vpack.c.b16 %v1659, %v1658
        %v1809 = vpack.c.b16 %v1661, %v1660
        %v1810 = vpack.c.b16 %v1663, %v1662
        %v1811 = vpack.c.b16 %v1665, %v1664
        %v1812 = vpack.c.b16 %v1667, %v1666
        %v1813 = vpack.c.b16 %v1669, %v1668
        %v1814 = vpack.c.b16 %v1671, %v1670
        %v1815 = vpack.c.b16 %v1673, %v1672
        %v1816 = vpack.c.b16 %v1675, %v1674
        %v1817 = vpack.c.b16 %v1677, %v1676
        %v1818 = vpack.c.b16 %v1679, %v1678
        %v1819 = vpack.c.b16 %v1681, %v1680
        %v1820 = vpack.c.b16 %v1683, %v1682
        %v1821 = vpack.c.b16 %v1685, %v1684
        %v1822 = vpack.c.b16 %v1687, %v1686
        %v1823 = vpack.c.b16 %v1689, %v1688
        %v1824 = vpack.c.b16 %v1691, %v1690
        %v1825 = vpack.c.b16 %v1693, %v1692
        %v1826 = vpack.c.b16 %v1695, %v1694
        %v1827 = vpack.c.b16 %v1697, %v1696
        %v1828 = vpack.c.b16 %v1699, %v1698
        %v1829 = vpack.c.b16 %v1701, %v1700
        %1958 = vmatprep.subr.bf16.mxu0 0
        %1959 = vmatpush1.bf16.msra.mxu0 %v1702
        %1960 = vmatprep.subr.bf16.mxu0 0
        %1961 = vmatpush1.bf16.msra.mxu0 %v1703
        %1962 = vmatprep.subr.bf16.mxu0 0
        %1963 = vmatpush1.bf16.msra.mxu0 %v1704
        %1964 = vmatprep.subr.bf16.mxu0 0
        %1965 = vmatpush1.bf16.msra.mxu0 %v1705
        %1966 = vmatprep.subr.bf16.mxu0 0
        %1967 = vmatpush1.bf16.msra.mxu0 %v1706
        %1968 = vmatprep.subr.bf16.mxu0 0
        %1969 = vmatpush1.bf16.msra.mxu0 %v1707
        %1970 = vmatprep.subr.bf16.mxu0 0
        %1971 = vmatpush1.bf16.msra.mxu0 %v1708
        %1972 = vmatprep.subr.bf16.mxu0 0
        %1973 = vmatpush1.bf16.msra.mxu0 %v1709
        %1974 = vmatprep.subr.bf16.mxu0 0
        %1975 = vmatpush1.bf16.msra.mxu0 %v1710
        %1976 = vmatprep.subr.bf16.mxu0 0
        %1977 = vmatpush1.bf16.msra.mxu0 %v1711
        %1978 = vmatprep.subr.bf16.mxu0 0
        %1979 = vmatpush1.bf16.msra.mxu0 %v1712
        %1980 = vmatprep.subr.bf16.mxu0 0
        %1981 = vmatpush1.bf16.msra.mxu0 %v1713
        %1982 = vmatprep.subr.bf16.mxu0 0
        %1983 = vmatpush1.bf16.msra.mxu0 %v1714
        %1984 = vmatprep.subr.bf16.mxu0 0
        %1985 = vmatpush1.bf16.msra.mxu0 %v1715
        %1986 = vmatprep.subr.bf16.mxu0 0
        %1987 = vmatpush1.bf16.msra.mxu0 %v1716
        %1988 = vmatprep.subr.bf16.mxu0 0
        %1989 = vmatpush1.bf16.msra.mxu0 %v1717
        %1990 = vmatprep.mubr.bf16.mxu0 %v759
        %1991 = vmatmul.mubr.bf16.gmra.mrb[0].mxu0 %v758
        %v1992 = vpop.f32.mrb[0].mxu0
        %v1993 = vadd.f32 %v1188, %v1992
        %v1994 = vpop.f32.mrb[0].mxu0
        %v1995 = vpop.f32.mrb[0].mxu0
        %v1996 = vadd.f32 %v1188, %v1995
        %v1997 = vpop.f32.mrb[0].mxu0
        %1998 = vmatprep.mubr.bf16.mxu0 %v763
        %1999 = vmatmul.mubr.bf16.gmra.mrb[0].mxu0 %v762
        %v2000 = vpop.f32.mrb[0].mxu0
        %v2001 = vadd.f32 %v1188, %v2000
        %v2002 = vpop.f32.mrb[0].mxu0
        %v2003 = vpop.f32.mrb[0].mxu0
        %v2004 = vadd.f32 %v1188, %v2003
        %v2005 = vpop.f32.mrb[0].mxu0
        %2006 = vmatprep.mubr.bf16.mxu0 %v767
        %2007 = vmatmul.mubr.bf16.gmra.mrb[0].mxu0 %v766
        %v2008 = vpop.f32.mrb[0].mxu0
        %v2009 = vadd.f32 %v1188, %v2008
        %v2010 = vpop.f32.mrb[0].mxu0
        %v2011 = vpop.f32.mrb[0].mxu0
        %v2012 = vadd.f32 %v1188, %v2011
        %v2013 = vpop.f32.mrb[0].mxu0
        %2014 = vmatprep.mubr.bf16.mxu0 %v771
        %2015 = vmatmul.mubr.bf16.gmra.mrb[0].mxu0 %v770
        %v2016 = vpop.f32.mrb[0].mxu0
        %v2017 = vadd.f32 %v1188, %v2016
        %v2018 = vpop.f32.mrb[0].mxu0
        %v2019 = vpop.f32.mrb[0].mxu0
        %v2020 = vadd.f32 %v1188, %v2019
        %v2021 = vpop.f32.mrb[0].mxu0
        %2022 = vdwg.mxu0
        %2023 = vmatprep.subr.bf16.mxu0 0
        %2024 = vmatpush1.bf16.msra.mxu0 %v1718
        %2025 = vmatprep.subr.bf16.mxu0 0
        %2026 = vmatpush1.bf16.msra.mxu0 %v1719
        %2027 = vmatprep.subr.bf16.mxu0 0
        %2028 = vmatpush1.bf16.msra.mxu0 %v1720
        %2029 = vmatprep.subr.bf16.mxu0 0
        %2030 = vmatpush1.bf16.msra.mxu0 %v1721
        %2031 = vmatprep.subr.bf16.mxu0 0
        %2032 = vmatpush1.bf16.msra.mxu0 %v1722
        %2033 = vmatprep.subr.bf16.mxu0 0
        %2034 = vmatpush1.bf16.msra.mxu0 %v1723
        %2035 = vmatprep.subr.bf16.mxu0 0
        %2036 = vmatpush1.bf16.msra.mxu0 %v1724
        %2037 = vmatprep.subr.bf16.mxu0 0
        %2038 = vmatpush1.bf16.msra.mxu0 %v1725
        %2039 = vmatprep.subr.bf16.mxu0 0
        %2040 = vmatpush1.bf16.msra.mxu0 %v1726
        %2041 = vmatprep.subr.bf16.mxu0 0
        %2042 = vmatpush1.bf16.msra.mxu0 %v1727
        %2043 = vmatprep.subr.bf16.mxu0 0
        %2044 = vmatpush1.bf16.msra.mxu0 %v1728
        %2045 = vmatprep.subr.bf16.mxu0 0
        %2046 = vmatpush1.bf16.msra.mxu0 %v1729
        %2047 = vmatprep.subr.bf16.mxu0 0
        %2048 = vmatpush1.bf16.msra.mxu0 %v1730
        %2049 = vmatprep.subr.bf16.mxu0 0
        %2050 = vmatpush1.bf16.msra.mxu0 %v1731
        %2051 = vmatprep.subr.bf16.mxu0 0
        %2052 = vmatpush1.bf16.msra.mxu0 %v1732
        %2053 = vmatprep.subr.bf16.mxu0 0
        %2054 = vmatpush1.bf16.msra.mxu0 %v1733
        %2055 = vmatprep.mubr.bf16.mxu0 %v761
        %2056 = vmatmul.mubr.bf16.gmra.mrb[0].mxu0 %v760
        %v2057 = vpop.f32.mrb[0].mxu0
        %v2058 = vadd.f32 %v1993, %v2057
        %v2059 = vpop.f32.mrb[0].mxu0
        %v2060 = vpop.f32.mrb[0].mxu0
        %v2061 = vadd.f32 %v1996, %v2060
        %v2062 = vpop.f32.mrb[0].mxu0
        %2063 = vmatprep.mubr.bf16.mxu0 %v765
        %2064 = vmatmul.mubr.bf16.gmra.mrb[0].mxu0 %v764
        %v2065 = vpop.f32.mrb[0].mxu0
        %v2066 = vadd.f32 %v2001, %v2065
        %v2067 = vpop.f32.mrb[0].mxu0
        %v2068 = vpop.f32.mrb[0].mxu0
        %v2069 = vadd.f32 %v2004, %v2068
        %v2070 = vpop.f32.mrb[0].mxu0
        %2071 = vmatprep.mubr.bf16.mxu0 %v769
        %2072 = vmatmul.mubr.bf16.gmra.mrb[0].mxu0 %v768
        %v2073 = vpop.f32.mrb[0].mxu0
        %v2074 = vadd.f32 %v2009, %v2073
        %v2075 = vpop.f32.mrb[0].mxu0
        %v2076 = vpop.f32.mrb[0].mxu0
        %v2077 = vadd.f32 %v2012, %v2076
        %v2078 = vpop.f32.mrb[0].mxu0
        %2079 = vmatprep.mubr.bf16.mxu0 %v773
        %2080 = vmatmul.mubr.bf16.gmra.mrb[0].mxu0 %v772
        %v2081 = vpop.f32.mrb[0].mxu0
        %v2082 = vadd.f32 %v2017, %v2081
        %v2083 = vpop.f32.mrb[0].mxu0
        %v2084 = vpop.f32.mrb[0].mxu0
        %v2085 = vadd.f32 %v2020, %v2084
        %v2086 = vpop.f32.mrb[0].mxu0
        %2087 = vdwg.mxu0
        %2088 = vmatprep.subr.bf16.mxu0 0
        %2089 = vmatpush1.bf16.msra.mxu0 %v1734
        %2090 = vmatprep.subr.bf16.mxu0 0
        %2091 = vmatpush1.bf16.msra.mxu0 %v1735
        %2092 = vmatprep.subr.bf16.mxu0 0
        %2093 = vmatpush1.bf16.msra.mxu0 %v1736
        %2094 = vmatprep.subr.bf16.mxu0 0
        %2095 = vmatpush1.bf16.msra.mxu0 %v1737
        %2096 = vmatprep.subr.bf16.mxu0 0
        %2097 = vmatpush1.bf16.msra.mxu0 %v1738
        %2098 = vmatprep.subr.bf16.mxu0 0
        %2099 = vmatpush1.bf16.msra.mxu0 %v1739
        %2100 = vmatprep.subr.bf16.mxu0 0
        %2101 = vmatpush1.bf16.msra.mxu0 %v1740
        %2102 = vmatprep.subr.bf16.mxu0 0
        %2103 = vmatpush1.bf16.msra.mxu0 %v1741
        %2104 = vmatprep.subr.bf16.mxu0 0
        %2105 = vmatpush1.bf16.msra.mxu0 %v1742
        %2106 = vmatprep.subr.bf16.mxu0 0
        %2107 = vmatpush1.bf16.msra.mxu0 %v1743
        %2108 = vmatprep.subr.bf16.mxu0 0
        %2109 = vmatpush1.bf16.msra.mxu0 %v1744
        %2110 = vmatprep.subr.bf16.mxu0 0
        %2111 = vmatpush1.bf16.msra.mxu0 %v1745
        %2112 = vmatprep.subr.bf16.mxu0 0
        %2113 = vmatpush1.bf16.msra.mxu0 %v1746
        %2114 = vmatprep.subr.bf16.mxu0 0
        %2115 = vmatpush1.bf16.msra.mxu0 %v1747
        %2116 = vmatprep.subr.bf16.mxu0 0
        %2117 = vmatpush1.bf16.msra.mxu0 %v1748
        %2118 = vmatprep.subr.bf16.mxu0 0
        %2119 = vmatpush1.bf16.msra.mxu0 %v1749
        %2120 = vmatprep.mubr.bf16.mxu0 %v823
        %2121 = vmatmul.mubr.bf16.gmra.mrb[0].mxu0 %v822
        %v2122 = vpop.f32.mrb[0].mxu0
        %v2123 = vadd.f32 %v2058, %v2122
        %v2124 = vpop.f32.mrb[0].mxu0
        %v2125 = vpop.f32.mrb[0].mxu0
        %v2126 = vadd.f32 %v2061, %v2125
        %v2127 = vpop.f32.mrb[0].mxu0
        %2128 = vmatprep.mubr.bf16.mxu0 %v827
        %2129 = vmatmul.mubr.bf16.gmra.mrb[0].mxu0 %v826
        %v2130 = vpop.f32.mrb[0].mxu0
        %v2131 = vadd.f32 %v2066, %v2130
        %v2132 = vpop.f32.mrb[0].mxu0
        %v2133 = vpop.f32.mrb[0].mxu0
        %v2134 = vadd.f32 %v2069, %v2133
        %v2135 = vpop.f32.mrb[0].mxu0
        %2136 = vmatprep.mubr.bf16.mxu0 %v831
        %2137 = vmatmul.mubr.bf16.gmra.mrb[0].mxu0 %v830
        %v2138 = vpop.f32.mrb[0].mxu0
        %v2139 = vadd.f32 %v2074, %v2138
        %v2140 = vpop.f32.mrb[0].mxu0
        %v2141 = vpop.f32.mrb[0].mxu0
        %v2142 = vadd.f32 %v2077, %v2141
        %v2143 = vpop.f32.mrb[0].mxu0
        %2144 = vmatprep.mubr.bf16.mxu0 %v835
        %2145 = vmatmul.mubr.bf16.gmra.mrb[0].mxu0 %v834
        %v2146 = vpop.f32.mrb[0].mxu0
        %v2147 = vadd.f32 %v2082, %v2146
        %v2148 = vpop.f32.mrb[0].mxu0
        %v2149 = vpop.f32.mrb[0].mxu0
        %v2150 = vadd.f32 %v2085, %v2149
        %v2151 = vpop.f32.mrb[0].mxu0
        %2152 = vdwg.mxu0
        %2153 = vmatprep.subr.bf16.mxu0 0
        %2154 = vmatpush1.bf16.msra.mxu0 %v1750
        %2155 = vmatprep.subr.bf16.mxu0 0
        %2156 = vmatpush1.bf16.msra.mxu0 %v1751
        %2157 = vmatprep.subr.bf16.mxu0 0
        %2158 = vmatpush1.bf16.msra.mxu0 %v1752
        %2159 = vmatprep.subr.bf16.mxu0 0
        %2160 = vmatpush1.bf16.msra.mxu0 %v1753
        %2161 = vmatprep.subr.bf16.mxu0 0
        %2162 = vmatpush1.bf16.msra.mxu0 %v1754
        %2163 = vmatprep.subr.bf16.mxu0 0
        %2164 = vmatpush1.bf16.msra.mxu0 %v1755
        %2165 = vmatprep.subr.bf16.mxu0 0
        %2166 = vmatpush1.bf16.msra.mxu0 %v1756
        %2167 = vmatprep.subr.bf16.mxu0 0
        %2168 = vmatpush1.bf16.msra.mxu0 %v1757
        %2169 = vmatprep.subr.bf16.mxu0 0
        %2170 = vmatpush1.bf16.msra.mxu0 %v1758
        %2171 = vmatprep.subr.bf16.mxu0 0
        %2172 = vmatpush1.bf16.msra.mxu0 %v1759
        %2173 = vmatprep.subr.bf16.mxu0 0
        %2174 = vmatpush1.bf16.msra.mxu0 %v1760
        %2175 = vmatprep.subr.bf16.mxu0 0
        %2176 = vmatpush1.bf16.msra.mxu0 %v1761
        %2177 = vmatprep.subr.bf16.mxu0 0
        %2178 = vmatpush1.bf16.msra.mxu0 %v1762
        %2179 = vmatprep.subr.bf16.mxu0 0
        %2180 = vmatpush1.bf16.msra.mxu0 %v1763
        %2181 = vmatprep.subr.bf16.mxu0 0
        %2182 = vmatpush1.bf16.msra.mxu0 %v1764
        %2183 = vmatprep.subr.bf16.mxu0 0
        %2184 = vmatpush1.bf16.msra.mxu0 %v1765
        %2185 = vmatprep.mubr.bf16.mxu0 %v825
        %2186 = vmatmul.mubr.bf16.gmra.mrb[0].mxu0 %v824
        %v2187 = vpop.f32.mrb[0].mxu0
        %v2188 = vadd.f32 %v2123, %v2187
        %v2189 = vpop.f32.mrb[0].mxu0
        %v2190 = vpop.f32.mrb[0].mxu0
        %v2191 = vadd.f32 %v2126, %v2190
        %v2192 = vpop.f32.mrb[0].mxu0
        %2193 = vmatprep.mubr.bf16.mxu0 %v829
        %2194 = vmatmul.mubr.bf16.gmra.mrb[0].mxu0 %v828
        %v2195 = vpop.f32.mrb[0].mxu0
        %v2196 = vadd.f32 %v2131, %v2195
        %v2197 = vpop.f32.mrb[0].mxu0
        %v2198 = vpop.f32.mrb[0].mxu0
        %v2199 = vadd.f32 %v2134, %v2198
        %v2200 = vpop.f32.mrb[0].mxu0
        %2201 = vmatprep.mubr.bf16.mxu0 %v833
        %2202 = vmatmul.mubr.bf16.gmra.mrb[0].mxu0 %v832
        %v2203 = vpop.f32.mrb[0].mxu0
        %v2204 = vadd.f32 %v2139, %v2203
        %v2205 = vpop.f32.mrb[0].mxu0
        %v2206 = vpop.f32.mrb[0].mxu0
        %v2207 = vadd.f32 %v2142, %v2206
        %v2208 = vpop.f32.mrb[0].mxu0
        %2209 = vmatprep.mubr.bf16.mxu0 %v837
        %2210 = vmatmul.mubr.bf16.gmra.mrb[0].mxu0 %v836
        %v2211 = vpop.f32.mrb[0].mxu0
        %v2212 = vadd.f32 %v2147, %v2211
        %v2213 = vpop.f32.mrb[0].mxu0
        %v2214 = vpop.f32.mrb[0].mxu0
        %v2215 = vadd.f32 %v2150, %v2214
        %v2216 = vpop.f32.mrb[0].mxu0
        %2217 = vdwg.mxu0
        %2218 = vmatprep.subr.bf16.mxu0 0
        %2219 = vmatpush1.bf16.msra.mxu0 %v1766
        %2220 = vmatprep.subr.bf16.mxu0 0
        %2221 = vmatpush1.bf16.msra.mxu0 %v1767
        %2222 = vmatprep.subr.bf16.mxu0 0
        %2223 = vmatpush1.bf16.msra.mxu0 %v1768
        %2224 = vmatprep.subr.bf16.mxu0 0
        %2225 = vmatpush1.bf16.msra.mxu0 %v1769
        %2226 = vmatprep.subr.bf16.mxu0 0
        %2227 = vmatpush1.bf16.msra.mxu0 %v1770
        %2228 = vmatprep.subr.bf16.mxu0 0
        %2229 = vmatpush1.bf16.msra.mxu0 %v1771
        %2230 = vmatprep.subr.bf16.mxu0 0
        %2231 = vmatpush1.bf16.msra.mxu0 %v1772
        %2232 = vmatprep.subr.bf16.mxu0 0
        %2233 = vmatpush1.bf16.msra.mxu0 %v1773
        %2234 = vmatprep.subr.bf16.mxu0 0
        %2235 = vmatpush1.bf16.msra.mxu0 %v1774
        %2236 = vmatprep.subr.bf16.mxu0 0
        %2237 = vmatpush1.bf16.msra.mxu0 %v1775
        %2238 = vmatprep.subr.bf16.mxu0 0
        %2239 = vmatpush1.bf16.msra.mxu0 %v1776
        %2240 = vmatprep.subr.bf16.mxu0 0
        %2241 = vmatpush1.bf16.msra.mxu0 %v1777
        %2242 = vmatprep.subr.bf16.mxu0 0
        %2243 = vmatpush1.bf16.msra.mxu0 %v1778
        %2244 = vmatprep.subr.bf16.mxu0 0
        %2245 = vmatpush1.bf16.msra.mxu0 %v1779
        %2246 = vmatprep.subr.bf16.mxu0 0
        %2247 = vmatpush1.bf16.msra.mxu0 %v1780
        %2248 = vmatprep.subr.bf16.mxu0 0
        %2249 = vmatpush1.bf16.msra.mxu0 %v1781
        %2250 = vmatprep.mubr.bf16.mxu0 %v861
        %2251 = vmatmul.mubr.bf16.gmra.mrb[0].mxu0 %v860
        %v2252 = vpop.f32.mrb[0].mxu0
        %v2253 = vadd.f32 %v2188, %v2252
        %v2254 = vpop.f32.mrb[0].mxu0
        %v2255 = vpop.f32.mrb[0].mxu0
        %v2256 = vadd.f32 %v2191, %v2255
        %v2257 = vpop.f32.mrb[0].mxu0
        %2258 = vmatprep.mubr.bf16.mxu0 %v865
        %2259 = vmatmul.mubr.bf16.gmra.mrb[0].mxu0 %v864
        %v2260 = vpop.f32.mrb[0].mxu0
        %v2261 = vadd.f32 %v2196, %v2260
        %v2262 = vpop.f32.mrb[0].mxu0
        %v2263 = vpop.f32.mrb[0].mxu0
        %v2264 = vadd.f32 %v2199, %v2263
        %v2265 = vpop.f32.mrb[0].mxu0
        %2266 = vmatprep.mubr.bf16.mxu0 %v869
        %2267 = vmatmul.mubr.bf16.gmra.mrb[0].mxu0 %v868
        %v2268 = vpop.f32.mrb[0].mxu0
        %v2269 = vadd.f32 %v2204, %v2268
        %v2270 = vpop.f32.mrb[0].mxu0
        %v2271 = vpop.f32.mrb[0].mxu0
        %v2272 = vadd.f32 %v2207, %v2271
        %v2273 = vpop.f32.mrb[0].mxu0
        %2274 = vmatprep.mubr.bf16.mxu0 %v873
        %2275 = vmatmul.mubr.bf16.gmra.mrb[0].mxu0 %v872
        %v2276 = vpop.f32.mrb[0].mxu0
        %v2277 = vadd.f32 %v2212, %v2276
        %v2278 = vpop.f32.mrb[0].mxu0
        %v2279 = vpop.f32.mrb[0].mxu0
        %v2280 = vadd.f32 %v2215, %v2279
        %v2281 = vpop.f32.mrb[0].mxu0
        %2282 = vdwg.mxu0
        %2283 = vmatprep.subr.bf16.mxu0 0
        %2284 = vmatpush1.bf16.msra.mxu0 %v1782
        %2285 = vmatprep.subr.bf16.mxu0 0
        %2286 = vmatpush1.bf16.msra.mxu0 %v1783
        %2287 = vmatprep.subr.bf16.mxu0 0
        %2288 = vmatpush1.bf16.msra.mxu0 %v1784
        %2289 = vmatprep.subr.bf16.mxu0 0
        %2290 = vmatpush1.bf16.msra.mxu0 %v1785
        %2291 = vmatprep.subr.bf16.mxu0 0
        %2292 = vmatpush1.bf16.msra.mxu0 %v1786
        %2293 = vmatprep.subr.bf16.mxu0 0
        %2294 = vmatpush1.bf16.msra.mxu0 %v1787
        %2295 = vmatprep.subr.bf16.mxu0 0
        %2296 = vmatpush1.bf16.msra.mxu0 %v1788
        %2297 = vmatprep.subr.bf16.mxu0 0
        %2298 = vmatpush1.bf16.msra.mxu0 %v1789
        %2299 = vmatprep.subr.bf16.mxu0 0
        %2300 = vmatpush1.bf16.msra.mxu0 %v1790
        %2301 = vmatprep.subr.bf16.mxu0 0
        %2302 = vmatpush1.bf16.msra.mxu0 %v1791
        %2303 = vmatprep.subr.bf16.mxu0 0
        %2304 = vmatpush1.bf16.msra.mxu0 %v1792
        %2305 = vmatprep.subr.bf16.mxu0 0
        %2306 = vmatpush1.bf16.msra.mxu0 %v1793
        %2307 = vmatprep.subr.bf16.mxu0 0
        %2308 = vmatpush1.bf16.msra.mxu0 %v1794
        %2309 = vmatprep.subr.bf16.mxu0 0
        %2310 = vmatpush1.bf16.msra.mxu0 %v1795
        %2311 = vmatprep.subr.bf16.mxu0 0
        %2312 = vmatpush1.bf16.msra.mxu0 %v1796
        %2313 = vmatprep.subr.bf16.mxu0 0
        %2314 = vmatpush1.bf16.msra.mxu0 %v1797
        %2315 = vmatprep.mubr.bf16.mxu0 %v863
        %2316 = vmatmul.mubr.bf16.gmra.mrb[0].mxu0 %v862
        %v2317 = vpop.f32.mrb[0].mxu0
        %v2318 = vadd.f32 %v2253, %v2317
        %v2319 = vpop.f32.mrb[0].mxu0
        %v2320 = vpop.f32.mrb[0].mxu0
        %v2321 = vadd.f32 %v2256, %v2320
        %v2322 = vpop.f32.mrb[0].mxu0
        %2323 = vmatprep.mubr.bf16.mxu0 %v867
        %2324 = vmatmul.mubr.bf16.gmra.mrb[0].mxu0 %v866
        %v2325 = vpop.f32.mrb[0].mxu0
        %v2326 = vadd.f32 %v2261, %v2325
        %v2327 = vpop.f32.mrb[0].mxu0
        %v2328 = vpop.f32.mrb[0].mxu0
        %v2329 = vadd.f32 %v2264, %v2328
        %v2330 = vpop.f32.mrb[0].mxu0
        %2331 = vmatprep.mubr.bf16.mxu0 %v871
        %2332 = vmatmul.mubr.bf16.gmra.mrb[0].mxu0 %v870
        %v2333 = vpop.f32.mrb[0].mxu0
        %v2334 = vadd.f32 %v2269, %v2333
        %v2335 = vpop.f32.mrb[0].mxu0
        %v2336 = vpop.f32.mrb[0].mxu0
        %v2337 = vadd.f32 %v2272, %v2336
        %v2338 = vpop.f32.mrb[0].mxu0
        %2339 = vmatprep.mubr.bf16.mxu0 %v875
        %2340 = vmatmul.mubr.bf16.gmra.mrb[0].mxu0 %v874
        %v2341 = vpop.f32.mrb[0].mxu0
        %v2342 = vadd.f32 %v2277, %v2341
        %v2343 = vpop.f32.mrb[0].mxu0
        %v2344 = vpop.f32.mrb[0].mxu0
        %v2345 = vadd.f32 %v2280, %v2344
        %v2346 = vpop.f32.mrb[0].mxu0
        %2347 = vdwg.mxu0
        %2348 = vmatprep.subr.bf16.mxu0 0
        %2349 = vmatpush1.bf16.msra.mxu0 %v1798
        %2350 = vmatprep.subr.bf16.mxu0 0
        %2351 = vmatpush1.bf16.msra.mxu0 %v1799
        %2352 = vmatprep.subr.bf16.mxu0 0
        %2353 = vmatpush1.bf16.msra.mxu0 %v1800
        %2354 = vmatprep.subr.bf16.mxu0 0
        %2355 = vmatpush1.bf16.msra.mxu0 %v1801
        %2356 = vmatprep.subr.bf16.mxu0 0
        %2357 = vmatpush1.bf16.msra.mxu0 %v1802
        %2358 = vmatprep.subr.bf16.mxu0 0
        %2359 = vmatpush1.bf16.msra.mxu0 %v1803
        %2360 = vmatprep.subr.bf16.mxu0 0
        %2361 = vmatpush1.bf16.msra.mxu0 %v1804
        %2362 = vmatprep.subr.bf16.mxu0 0
        %2363 = vmatpush1.bf16.msra.mxu0 %v1805
        %2364 = vmatprep.subr.bf16.mxu0 0
        %2365 = vmatpush1.bf16.msra.mxu0 %v1806
        %2366 = vmatprep.subr.bf16.mxu0 0
        %2367 = vmatpush1.bf16.msra.mxu0 %v1807
        %2368 = vmatprep.subr.bf16.mxu0 0
        %2369 = vmatpush1.bf16.msra.mxu0 %v1808
        %2370 = vmatprep.subr.bf16.mxu0 0
        %2371 = vmatpush1.bf16.msra.mxu0 %v1809
        %2372 = vmatprep.subr.bf16.mxu0 0
        %2373 = vmatpush1.bf16.msra.mxu0 %v1810
        %2374 = vmatprep.subr.bf16.mxu0 0
        %2375 = vmatpush1.bf16.msra.mxu0 %v1811
        %2376 = vmatprep.subr.bf16.mxu0 0
        %2377 = vmatpush1.bf16.msra.mxu0 %v1812
        %2378 = vmatprep.subr.bf16.mxu0 0
        %2379 = vmatpush1.bf16.msra.mxu0 %v1813
        %2380 = vmatprep.mubr.bf16.mxu0 %v897
        %2381 = vmatmul.mubr.bf16.gmra.mrb[0].mxu0 %v896
        %v2382 = vpop.f32.mrb[0].mxu0
        %v2383 = vadd.f32 %v2318, %v2382
        %v2384 = vpop.f32.mrb[0].mxu0
        %v2385 = vpop.f32.mrb[0].mxu0
        %v2386 = vadd.f32 %v2321, %v2385
        %v2387 = vpop.f32.mrb[0].mxu0
        %2388 = vmatprep.mubr.bf16.mxu0 %v901
        %2389 = vmatmul.mubr.bf16.gmra.mrb[0].mxu0 %v900
        %v2390 = vpop.f32.mrb[0].mxu0
        %v2391 = vadd.f32 %v2326, %v2390
        %v2392 = vpop.f32.mrb[0].mxu0
        %v2393 = vpop.f32.mrb[0].mxu0
        %v2394 = vadd.f32 %v2329, %v2393
        %v2395 = vpop.f32.mrb[0].mxu0
        %2396 = vmatprep.mubr.bf16.mxu0 %v905
        %2397 = vmatmul.mubr.bf16.gmra.mrb[0].mxu0 %v904
        %v2398 = vpop.f32.mrb[0].mxu0
        %v2399 = vadd.f32 %v2334, %v2398
        %v2400 = vpop.f32.mrb[0].mxu0
        %v2401 = vpop.f32.mrb[0].mxu0
        %v2402 = vadd.f32 %v2337, %v2401
        %v2403 = vpop.f32.mrb[0].mxu0
        %2404 = vmatprep.mubr.bf16.mxu0 %v909
        %2405 = vmatmul.mubr.bf16.gmra.mrb[0].mxu0 %v908
        %v2406 = vpop.f32.mrb[0].mxu0
        %v2407 = vadd.f32 %v2342, %v2406
        %v2408 = vpop.f32.mrb[0].mxu0
        %v2409 = vpop.f32.mrb[0].mxu0
        %v2410 = vadd.f32 %v2345, %v2409
        %v2411 = vpop.f32.mrb[0].mxu0
        %2412 = vdwg.mxu0
        %2413 = vmatprep.subr.bf16.mxu0 0
        %2414 = vmatpush1.bf16.msra.mxu0 %v1814
        %2415 = vmatprep.subr.bf16.mxu0 0
        %2416 = vmatpush1.bf16.msra.mxu0 %v1815
        %2417 = vmatprep.subr.bf16.mxu0 0
        %2418 = vmatpush1.bf16.msra.mxu0 %v1816
        %2419 = vmatprep.subr.bf16.mxu0 0
        %2420 = vmatpush1.bf16.msra.mxu0 %v1817
        %2421 = vmatprep.subr.bf16.mxu0 0
        %2422 = vmatpush1.bf16.msra.mxu0 %v1818
        %2423 = vmatprep.subr.bf16.mxu0 0
        %2424 = vmatpush1.bf16.msra.mxu0 %v1819
        %2425 = vmatprep.subr.bf16.mxu0 0
        %2426 = vmatpush1.bf16.msra.mxu0 %v1820
        %2427 = vmatprep.subr.bf16.mxu0 0
        %2428 = vmatpush1.bf16.msra.mxu0 %v1821
        %2429 = vmatprep.subr.bf16.mxu0 0
        %2430 = vmatpush1.bf16.msra.mxu0 %v1822
        %2431 = vmatprep.subr.bf16.mxu0 0
        %2432 = vmatpush1.bf16.msra.mxu0 %v1823
        %2433 = vmatprep.subr.bf16.mxu0 0
        %2434 = vmatpush1.bf16.msra.mxu0 %v1824
        %2435 = vmatprep.subr.bf16.mxu0 0
        %2436 = vmatpush1.bf16.msra.mxu0 %v1825
        %2437 = vmatprep.subr.bf16.mxu0 0
        %2438 = vmatpush1.bf16.msra.mxu0 %v1826
        %2439 = vmatprep.subr.bf16.mxu0 0
        %2440 = vmatpush1.bf16.msra.mxu0 %v1827
        %2441 = vmatprep.subr.bf16.mxu0 0
        %2442 = vmatpush1.bf16.msra.mxu0 %v1828
        %2443 = vmatprep.subr.bf16.mxu0 0
        %2444 = vmatpush1.bf16.msra.mxu0 %v1829
        %2445 = vmatprep.mubr.bf16.mxu0 %v899
        %2446 = vmatmul.mubr.bf16.gmra.mrb[0].mxu0 %v898
        %v2447 = vpop.f32.mrb[0].mxu0
        %v2448 = vadd.f32 %v2383, %v2447
        %v2449 = vpop.f32.mrb[0].mxu0
        %v2450 = vpop.f32.mrb[0].mxu0
        %v2451 = vadd.f32 %v2386, %v2450
        %v2452 = vpop.f32.mrb[0].mxu0
        %2453 = vmatprep.mubr.bf16.mxu0 %v903
        %2454 = vmatmul.mubr.bf16.gmra.mrb[0].mxu0 %v902
        %v2455 = vpop.f32.mrb[0].mxu0
        %v2456 = vadd.f32 %v2391, %v2455
        %v2457 = vpop.f32.mrb[0].mxu0
        %v2458 = vpop.f32.mrb[0].mxu0
        %v2459 = vadd.f32 %v2394, %v2458
        %v2460 = vpop.f32.mrb[0].mxu0
        %2461 = vmatprep.mubr.bf16.mxu0 %v907
        %2462 = vmatmul.mubr.bf16.gmra.mrb[0].mxu0 %v906
        %v2463 = vpop.f32.mrb[0].mxu0
        %v2464 = vadd.f32 %v2399, %v2463
        %v2465 = vpop.f32.mrb[0].mxu0
        %v2466 = vpop.f32.mrb[0].mxu0
        %v2467 = vadd.f32 %v2402, %v2466
        %v2468 = vpop.f32.mrb[0].mxu0
        %2469 = vmatprep.mubr.bf16.mxu0 %v911
        %2470 = vmatmul.mubr.bf16.gmra.mrb[0].mxu0 %v910
        %v2471 = vpop.f32.mrb[0].mxu0
        %v2472 = vadd.f32 %v2407, %v2471
        %v2473 = vpop.f32.mrb[0].mxu0
        %v2474 = vpop.f32.mrb[0].mxu0
        %v2475 = vadd.f32 %v2410, %v2474
        %v2476 = vpop.f32.mrb[0].mxu0
        %2477 = vdwg.mxu0
        %v2478 = vmax.f32 %v2448, 0.0
        %v2479 = vmax.f32 %v2451, 0.0
        %v2480 = vmax.f32 %v2456, 0.0
        %v2481 = vmax.f32 %v2459, 0.0
        %v2482 = vmax.f32 %v2464, 0.0
        %v2483 = vmax.f32 %v2467, 0.0
        %v2484 = vmax.f32 %v2472, 0.0
        %v2485 = vmax.f32 %v2475, 0.0
        %v2486 = vpack.c.bf16 %v2479, %v2478
        %v2487 = vpack.c.bf16 %v2481, %v2480
        %v2488 = vpack.c.bf16 %v2483, %v2482
        %v2489 = vpack.c.bf16 %v2485, %v2484
        %v2494 = vunpack.c.l.b16 %v2486
        %v2495 = vunpack.c.h.b16 %v2486
        %v2496 = vunpack.c.l.b16 %v2487
        %v2497 = vunpack.c.h.b16 %v2487
        %v2498 = vunpack.c.l.b16 %v2488
        %v2499 = vunpack.c.h.b16 %v2488
        %v2500 = vunpack.c.l.b16 %v2489
        %v2501 = vunpack.c.h.b16 %v2489
        %v2502 = vpack.c.b16 %v2494, %v2494
        %v2503 = vpack.c.b16 %v2495, %v2495
        %v2504 = vpack.c.b16 %v2496, %v2496
        %v2505 = vpack.c.b16 %v2497, %v2497
        %v2506 = vpack.c.b16 %v2498, %v2498
        %v2507 = vpack.c.b16 %v2499, %v2499
        %v2508 = vpack.c.b16 %v2500, %v2500
        %v2509 = vpack.c.b16 %v2501, %v2501
        %2518 = vst [vmem:[%s408] sm:$0xf] %v2502
        %2519 = vst [vmem:[%s408 + $0x4] sm:$0xf] %v2503
        %2520 = vst [vmem:[%s408 + $0x8] sm:$0xf] %v2504
        %2521 = vst [vmem:[%s408 + $0xc] sm:$0xf] %v2505
        %2522 = vst [vmem:[%s408 + $0x10] sm:$0xf] %v2506
        %2523 = vst [vmem:[%s408 + $0x14] sm:$0xf] %v2507
        %2524 = vst [vmem:[%s408 + $0x18] sm:$0xf] %v2508
        %2525 = vst [vmem:[%s408 + $0x1c] sm:$0xf] %v2509
        %2526 = vst [vmem:[#allocation2] sm:$0xf] 0
        %2527 = vst [vmem:[#allocation2 + $0x4] sm:$0x3] 0
        %s2528 = scalar_lea.vmem [#allocation2], 72
        %2529 = vst [vmem:[%s2528] sm:$0xf] 0
        %2530 = vst [vmem:[%s2528 + $0x4] sm:$0x3] 0
        %2531 = vst [vmem:[#allocation2] sm:$0x1] 0
        %2532 = vst [vmem:[#allocation2 + $0x8] sm:$0x1] 0
        %2533 = vst [vmem:[#allocation2 + $0x10] sm:$0x1] 0
        %2534 = vst [vmem:[#allocation2 + $0x18] sm:$0x1] 0
        %2535 = vst [vmem:[#allocation2 + $0x20] sm:$0x1] 0
        %2536 = vst [vmem:[#allocation2 + $0x28] sm:$0x1] 0
        %2537 = vst [vmem:[#allocation2 + $0x30] sm:$0x1] 0
        %2538 = vst [vmem:[#allocation2 + $0x38] sm:$0x1] 0
        %2539 = vst [vmem:[#allocation2 + $0x40] sm:$0x1] 0
        %2540 = vst [vmem:[#allocation2 + $0x48] sm:$0x1] 0
        %2541 = vst [vmem:[#allocation2 + $0x4] sm:$0x2] 0
        %2542 = vst [vmem:[#allocation2 + $0xc] sm:$0x2] 0
        %2543 = vst [vmem:[#allocation2 + $0x14] sm:$0x2] 0
        %2544 = vst [vmem:[#allocation2 + $0x1c] sm:$0x2] 0
        %2545 = vst [vmem:[#allocation2 + $0x24] sm:$0x2] 0
        %2546 = vst [vmem:[#allocation2 + $0x2c] sm:$0x2] 0
        %2547 = vst [vmem:[#allocation2 + $0x34] sm:$0x2] 0
        %2548 = vst [vmem:[#allocation2 + $0x3c] sm:$0x2] 0
        %2549 = vst [vmem:[#allocation2 + $0x44] sm:$0x2] 0
        %2550 = vst [vmem:[#allocation2 + $0x4c] sm:$0x2] 0
        %v2551 = vrot.slane %v2502, 7
        %v2552 = vrot.slane %v2551, 4
        %v2553 = vrot.slane %v2503, 7
        %v2554 = vrot.slane %v2553, 4
        %v2555 = vrot.slane %v2504, 7
        %v2556 = vrot.slane %v2555, 4
        %v2557 = vrot.slane %v2505, 7
        %v2558 = vrot.slane %v2557, 4
        %v2559 = vrot.slane %v2506, 7
        %v2560 = vrot.slane %v2559, 4
        %v2561 = vrot.slane %v2507, 7
        %v2562 = vrot.slane %v2561, 4
        %v2563 = vrot.slane %v2508, 7
        %v2564 = vrot.slane %v2563, 4
        %v2565 = vrot.slane %v2509, 7
        %v2566 = vrot.slane %v2565, 4
        %s2583 = scalar_lea.vmem [#allocation2], 8
        %2584 = vst [vmem:[%s2583] sm:$0xe] %v2551
        %2585 = vst [vmem:[%s2583 + $0x4] sm:$0x1] %v2552
        %2586 = vst [vmem:[%s2583 + $0x8] sm:$0xe] %v2553
        %2587 = vst [vmem:[%s2583 + $0xc] sm:$0x1] %v2554
        %2588 = vst [vmem:[%s2583 + $0x10] sm:$0xe] %v2555
        %2589 = vst [vmem:[%s2583 + $0x14] sm:$0x1] %v2556
        %2590 = vst [vmem:[%s2583 + $0x18] sm:$0xe] %v2557
        %2591 = vst [vmem:[%s2583 + $0x1c] sm:$0x1] %v2558
        %2592 = vst [vmem:[%s2583 + $0x20] sm:$0xe] %v2559
        %2593 = vst [vmem:[%s2583 + $0x24] sm:$0x1] %v2560
        %2594 = vst [vmem:[%s2583 + $0x28] sm:$0xe] %v2561
        %2595 = vst [vmem:[%s2583 + $0x2c] sm:$0x1] %v2562
        %2596 = vst [vmem:[%s2583 + $0x30] sm:$0xe] %v2563
        %2597 = vst [vmem:[%s2583 + $0x34] sm:$0x1] %v2564
        %2598 = vst [vmem:[%s2583 + $0x38] sm:$0xe] %v2565
        %2599 = vst [vmem:[%s2583 + $0x3c] sm:$0x1] %v2566
        %v2600 = vld [vmem:[#allocation2] sm:$0xf]
        %v2601 = vld [vmem:[#allocation2 + $0x4] sm:$0x3]
        %v2602 = vld [vmem:[#allocation2 + $0x8] sm:$0xf]
        %v2603 = vld [vmem:[#allocation2 + $0xc] sm:$0x3]
        %v2604 = vld [vmem:[#allocation2 + $0x10] sm:$0xf]
        %v2605 = vld [vmem:[#allocation2 + $0x14] sm:$0x3]
        %v2606 = vld [vmem:[#allocation2 + $0x18] sm:$0xf]
        %v2607 = vld [vmem:[#allocation2 + $0x1c] sm:$0x3]
        %v2608 = vld [vmem:[#allocation2 + $0x20] sm:$0xf]
        %v2609 = vld [vmem:[#allocation2 + $0x24] sm:$0x3]
        %v2610 = vld [vmem:[#allocation2 + $0x28] sm:$0xf]
        %v2611 = vld [vmem:[#allocation2 + $0x2c] sm:$0x3]
        %v2612 = vld [vmem:[#allocation2 + $0x30] sm:$0xf]
        %v2613 = vld [vmem:[#allocation2 + $0x34] sm:$0x3]
        %v2614 = vld [vmem:[#allocation2 + $0x38] sm:$0xf]
        %v2615 = vld [vmem:[#allocation2 + $0x3c] sm:$0x3]
        %v2616 = vld [vmem:[#allocation2 + $0x40] sm:$0xf]
        %v2617 = vld [vmem:[#allocation2 + $0x44] sm:$0x3]
        %v2618 = vld [vmem:[#allocation2 + $0x48] sm:$0xf]
        %v2619 = vld [vmem:[#allocation2 + $0x4c] sm:$0x3]
        %v2621 = vshrl.u32 %v2600, 16
        %v2623 = vrot.slane %v2621, 4
        %v2624 = vshll.u32 %v2600, 16
        %v2626 = vrot.slane %v2624, 5
        %v2627 = vor.u32 %v2623, %v2626
        %v2628 = vrot.slane %v2627, 4
        %v2630 = vshll.u32 %v2601, 16
        %v2632 = vrot.slane %v2630, 5
        %v2633 = vsel %vm457, %v2628, %v2632
        %v2635 = vshrl.u32 %v2602, 16
        %v2637 = vrot.slane %v2635, 4
        %v2638 = vshll.u32 %v2602, 16
        %v2640 = vrot.slane %v2638, 5
        %v2641 = vor.u32 %v2637, %v2640
        %v2642 = vrot.slane %v2641, 4
        %v2644 = vshll.u32 %v2603, 16
        %v2646 = vrot.slane %v2644, 5
        %v2647 = vsel %vm457, %v2642, %v2646
        %v2649 = vshrl.u32 %v2604, 16
        %v2651 = vrot.slane %v2649, 4
        %v2652 = vshll.u32 %v2604, 16
        %v2654 = vrot.slane %v2652, 5
        %v2655 = vor.u32 %v2651, %v2654
        %v2656 = vrot.slane %v2655, 4
        %v2658 = vshll.u32 %v2605, 16
        %v2660 = vrot.slane %v2658, 5
        %v2661 = vsel %vm457, %v2656, %v2660
        %v2663 = vshrl.u32 %v2606, 16
        %v2665 = vrot.slane %v2663, 4
        %v2666 = vshll.u32 %v2606, 16
        %v2668 = vrot.slane %v2666, 5
        %v2669 = vor.u32 %v2665, %v2668
        %v2670 = vrot.slane %v2669, 4
        %v2672 = vshll.u32 %v2607, 16
        %v2674 = vrot.slane %v2672, 5
        %v2675 = vsel %vm457, %v2670, %v2674
        %v2677 = vshrl.u32 %v2608, 16
        %v2679 = vrot.slane %v2677, 4
        %v2680 = vshll.u32 %v2608, 16
        %v2682 = vrot.slane %v2680, 5
        %v2683 = vor.u32 %v2679, %v2682
        %v2684 = vrot.slane %v2683, 4
        %v2686 = vshll.u32 %v2609, 16
        %v2688 = vrot.slane %v2686, 5
        %v2689 = vsel %vm457, %v2684, %v2688
        %v2691 = vshrl.u32 %v2610, 16
        %v2693 = vrot.slane %v2691, 4
        %v2694 = vshll.u32 %v2610, 16
        %v2696 = vrot.slane %v2694, 5
        %v2697 = vor.u32 %v2693, %v2696
        %v2698 = vrot.slane %v2697, 4
        %v2700 = vshll.u32 %v2611, 16
        %v2702 = vrot.slane %v2700, 5
        %v2703 = vsel %vm457, %v2698, %v2702
        %v2705 = vshrl.u32 %v2612, 16
        %v2707 = vrot.slane %v2705, 4
        %v2708 = vshll.u32 %v2612, 16
        %v2710 = vrot.slane %v2708, 5
        %v2711 = vor.u32 %v2707, %v2710
        %v2712 = vrot.slane %v2711, 4
        %v2714 = vshll.u32 %v2613, 16
        %v2716 = vrot.slane %v2714, 5
        %v2717 = vsel %vm457, %v2712, %v2716
        %v2719 = vshrl.u32 %v2614, 16
        %v2721 = vrot.slane %v2719, 4
        %v2722 = vshll.u32 %v2614, 16
        %v2724 = vrot.slane %v2722, 5
        %v2725 = vor.u32 %v2721, %v2724
        %v2726 = vrot.slane %v2725, 4
        %v2728 = vshll.u32 %v2615, 16
        %v2730 = vrot.slane %v2728, 5
        %v2731 = vsel %vm457, %v2726, %v2730
        %vm2748 = vcmask 1042432
        %vm2749 = vcmask 1046532
        %vm2750 = vmor %vm2748, %vm2749
        %v2751 = vrot.slane %v2600, 5
        %v2752 = vrot.slane %v2751, 4
        %v2753 = vrot.slane %v2601, 5
        %v2754 = vsel %vm2750, %v2752, %v2753
        %v2755 = vrot.slane %v2602, 5
        %v2756 = vrot.slane %v2755, 4
        %v2757 = vrot.slane %v2603, 5
        %v2758 = vsel %vm2750, %v2756, %v2757
        %v2759 = vrot.slane %v2604, 5
        %v2760 = vrot.slane %v2759, 4
        %v2761 = vrot.slane %v2605, 5
        %v2762 = vsel %vm2750, %v2760, %v2761
        %v2763 = vrot.slane %v2606, 5
        %v2764 = vrot.slane %v2763, 4
        %v2765 = vrot.slane %v2607, 5
        %v2766 = vsel %vm2750, %v2764, %v2765
        %v2767 = vrot.slane %v2608, 5
        %v2768 = vrot.slane %v2767, 4
        %v2769 = vrot.slane %v2609, 5
        %v2770 = vsel %vm2750, %v2768, %v2769
        %v2771 = vrot.slane %v2610, 5
        %v2772 = vrot.slane %v2771, 4
        %v2773 = vrot.slane %v2611, 5
        %v2774 = vsel %vm2750, %v2772, %v2773
        %v2775 = vrot.slane %v2612, 5
        %v2776 = vrot.slane %v2775, 4
        %v2777 = vrot.slane %v2613, 5
        %v2778 = vsel %vm2750, %v2776, %v2777
        %v2779 = vrot.slane %v2614, 5
        %v2780 = vrot.slane %v2779, 4
        %v2781 = vrot.slane %v2615, 5
        %v2782 = vsel %vm2750, %v2780, %v2781
        %vm2783 = vsmask.f32 2304
        %vm2784 = vsmask.f32 6416
        %vm2785 = vmor %vm2783, %vm2784
        %v2786 = vrot.slane %v2621, 5
        %v2787 = vrot.slane %v2624, 6
        %v2788 = vor.u32 %v2786, %v2787
        %v2789 = vrot.slane %v2788, 4
        %v2790 = vshrl.u32 %v2601, 16
        %v2792 = vrot.slane %v2790, 5
        %v2793 = vrot.slane %v2630, 6
        %v2794 = vor.u32 %v2792, %v2793
        %v2795 = vsel %vm2785, %v2789, %v2794
        %v2796 = vrot.slane %v2635, 5
        %v2797 = vrot.slane %v2638, 6
        %v2798 = vor.u32 %v2796, %v2797
        %v2799 = vrot.slane %v2798, 4
        %v2800 = vshrl.u32 %v2603, 16
        %v2802 = vrot.slane %v2800, 5
        %v2803 = vrot.slane %v2644, 6
        %v2804 = vor.u32 %v2802, %v2803
        %v2805 = vsel %vm2785, %v2799, %v2804
        %v2806 = vrot.slane %v2649, 5
        %v2807 = vrot.slane %v2652, 6
        %v2808 = vor.u32 %v2806, %v2807
        %v2809 = vrot.slane %v2808, 4
        %v2810 = vshrl.u32 %v2605, 16
        %v2812 = vrot.slane %v2810, 5
        %v2813 = vrot.slane %v2658, 6
        %v2814 = vor.u32 %v2812, %v2813
        %v2815 = vsel %vm2785, %v2809, %v2814
        %v2816 = vrot.slane %v2663, 5
        %v2817 = vrot.slane %v2666, 6
        %v2818 = vor.u32 %v2816, %v2817
        %v2819 = vrot.slane %v2818, 4
        %v2820 = vshrl.u32 %v2607, 16
        %v2822 = vrot.slane %v2820, 5
        %v2823 = vrot.slane %v2672, 6
        %v2824 = vor.u32 %v2822, %v2823
        %v2825 = vsel %vm2785, %v2819, %v2824
        %v2826 = vrot.slane %v2677, 5
        %v2827 = vrot.slane %v2680, 6
        %v2828 = vor.u32 %v2826, %v2827
        %v2829 = vrot.slane %v2828, 4
        %v2830 = vshrl.u32 %v2609, 16
        %v2832 = vrot.slane %v2830, 5
        %v2833 = vrot.slane %v2686, 6
        %v2834 = vor.u32 %v2832, %v2833
        %v2835 = vsel %vm2785, %v2829, %v2834
        %v2836 = vrot.slane %v2691, 5
        %v2837 = vrot.slane %v2694, 6
        %v2838 = vor.u32 %v2836, %v2837
        %v2839 = vrot.slane %v2838, 4
        %v2840 = vshrl.u32 %v2611, 16
        %v2842 = vrot.slane %v2840, 5
        %v2843 = vrot.slane %v2700, 6
        %v2844 = vor.u32 %v2842, %v2843
        %v2845 = vsel %vm2785, %v2839, %v2844
        %v2846 = vrot.slane %v2705, 5
        %v2847 = vrot.slane %v2708, 6
        %v2848 = vor.u32 %v2846, %v2847
        %v2849 = vrot.slane %v2848, 4
        %v2850 = vshrl.u32 %v2613, 16
        %v2852 = vrot.slane %v2850, 5
        %v2853 = vrot.slane %v2714, 6
        %v2854 = vor.u32 %v2852, %v2853
        %v2855 = vsel %vm2785, %v2849, %v2854
        %v2856 = vrot.slane %v2719, 5
        %v2857 = vrot.slane %v2722, 6
        %v2858 = vor.u32 %v2856, %v2857
        %v2859 = vrot.slane %v2858, 4
        %v2860 = vshrl.u32 %v2615, 16
        %v2862 = vrot.slane %v2860, 5
        %v2863 = vrot.slane %v2728, 6
        %v2864 = vor.u32 %v2862, %v2863
        %v2865 = vsel %vm2785, %v2859, %v2864
        %v2867 = vshrl.u32 %v2616, 16
        %v2869 = vrot.slane %v2867, 4
        %v2870 = vshll.u32 %v2616, 16
        %v2872 = vrot.slane %v2870, 5
        %v2873 = vor.u32 %v2869, %v2872
        %v2874 = vrot.slane %v2873, 4
        %v2876 = vshll.u32 %v2617, 16
        %v2878 = vrot.slane %v2876, 5
        %v2879 = vsel %vm457, %v2874, %v2878
        %v2882 = vrot.slane %v2616, 5
        %v2883 = vrot.slane %v2882, 4
        %v2884 = vrot.slane %v2617, 5
        %v2885 = vsel %vm2750, %v2883, %v2884
        %v2886 = vrot.slane %v2867, 5
        %v2887 = vrot.slane %v2870, 6
        %v2888 = vor.u32 %v2886, %v2887
        %v2889 = vrot.slane %v2888, 4
        %v2890 = vshrl.u32 %v2617, 16
        %v2892 = vrot.slane %v2890, 5
        %v2893 = vrot.slane %v2876, 6
        %v2894 = vor.u32 %v2892, %v2893
        %v2895 = vsel %vm2785, %v2889, %v2894
        %v2897 = vshrl.u32 %v2618, 16
        %v2899 = vrot.slane %v2897, 4
        %v2900 = vshll.u32 %v2618, 16
        %v2902 = vrot.slane %v2900, 5
        %v2903 = vor.u32 %v2899, %v2902
        %v2904 = vrot.slane %v2903, 4
        %v2906 = vshll.u32 %v2619, 16
        %v2908 = vrot.slane %v2906, 5
        %v2909 = vsel %vm457, %v2904, %v2908
        %v2912 = vrot.slane %v2618, 5
        %v2913 = vrot.slane %v2912, 4
        %v2914 = vrot.slane %v2619, 5
        %v2915 = vsel %vm2750, %v2913, %v2914
        %v2916 = vrot.slane %v2897, 5
        %v2917 = vrot.slane %v2900, 6
        %v2918 = vor.u32 %v2916, %v2917
        %v2919 = vrot.slane %v2918, 4
        %v2920 = vshrl.u32 %v2619, 16
        %v2922 = vrot.slane %v2920, 5
        %v2923 = vrot.slane %v2906, 6
        %v2924 = vor.u32 %v2922, %v2923
        %v2925 = vsel %vm2785, %v2919, %v2924
        %v2926 = vunpack.c.l.b16 %v2633
        %v2927 = vunpack.c.l.b16 %v2647
        %v2928 = vunpack.c.l.b16 %v2661
        %v2929 = vunpack.c.l.b16 %v2675
        %v2930 = vunpack.c.l.b16 %v2689
        %v2931 = vunpack.c.l.b16 %v2703
        %v2932 = vunpack.c.l.b16 %v2717
        %v2933 = vunpack.c.l.b16 %v2731
        %v2934 = vpack.c.b16 %v2927, %v2926
        %v2935 = vpack.c.b16 %v2929, %v2928
        %v2936 = vpack.c.b16 %v2931, %v2930
        %v2937 = vpack.c.b16 %v2933, %v2932
        %v2942 = vunpack.c.l.b16 %v2754
        %v2943 = vunpack.c.l.b16 %v2758
        %v2944 = vunpack.c.l.b16 %v2762
        %v2945 = vunpack.c.l.b16 %v2766
        %v2946 = vunpack.c.l.b16 %v2770
        %v2947 = vunpack.c.l.b16 %v2774
        %v2948 = vunpack.c.l.b16 %v2778
        %v2949 = vunpack.c.l.b16 %v2782
        %v2950 = vpack.c.b16 %v2943, %v2942
        %v2951 = vpack.c.b16 %v2945, %v2944
        %v2952 = vpack.c.b16 %v2947, %v2946
        %v2953 = vpack.c.b16 %v2949, %v2948
        %v2958 = vunpack.c.l.b16 %v2795
        %v2959 = vunpack.c.l.b16 %v2805
        %v2960 = vunpack.c.l.b16 %v2815
        %v2961 = vunpack.c.l.b16 %v2825
        %v2962 = vunpack.c.l.b16 %v2835
        %v2963 = vunpack.c.l.b16 %v2845
        %v2964 = vunpack.c.l.b16 %v2855
        %v2965 = vunpack.c.l.b16 %v2865
        %v2966 = vpack.c.b16 %v2959, %v2958
        %v2967 = vpack.c.b16 %v2961, %v2960
        %v2968 = vpack.c.b16 %v2963, %v2962
        %v2969 = vpack.c.b16 %v2965, %v2964
        %v2974 = vunpack.c.l.b16 %v2879
        %v2975 = vpack.c.b16 %v2928, %v2927
        %v2976 = vpack.c.b16 %v2930, %v2929
        %v2977 = vpack.c.b16 %v2932, %v2931
        %v2978 = vpack.c.b16 %v2974, %v2933
        %v2983 = vunpack.c.l.b16 %v2885
        %v2984 = vpack.c.b16 %v2944, %v2943
        %v2985 = vpack.c.b16 %v2946, %v2945
        %v2986 = vpack.c.b16 %v2948, %v2947
        %v2987 = vpack.c.b16 %v2983, %v2949
        %v2992 = vunpack.c.l.b16 %v2895
        %v2993 = vpack.c.b16 %v2960, %v2959
        %v2994 = vpack.c.b16 %v2962, %v2961
        %v2995 = vpack.c.b16 %v2964, %v2963
        %v2996 = vpack.c.b16 %v2992, %v2965
        %v3001 = vunpack.c.l.b16 %v2909
        %v3002 = vpack.c.b16 %v3001, %v2974
        %v3004 = vunpack.c.l.b16 %v2915
        %v3005 = vpack.c.b16 %v3004, %v2983
        %v3007 = vunpack.c.l.b16 %v2925
        %v3008 = vpack.c.b16 %v3007, %v2992
        %v3010 = vld [vmem:[#allocation9] sm:$0xf]
        %v3011 = vld [vmem:[#allocation9 + $0x4] sm:$0xf]
        %v3012 = vld [vmem:[#allocation9 + $0x8] sm:$0xf]
        %v3013 = vld [vmem:[#allocation9 + $0xc] sm:$0xf]
        %v3014 = vld [vmem:[#allocation9 + $0x10] sm:$0xf]
        %v3015 = vld [vmem:[#allocation9 + $0x14] sm:$0xf]
        %v3016 = vld [vmem:[#allocation9 + $0x18] sm:$0xf]
        %v3017 = vld [vmem:[#allocation9 + $0x1c] sm:$0xf]
        %v3018 = vld [vmem:[#allocation9 + $0x20] sm:$0xf]
        %v3019 = vld [vmem:[#allocation9 + $0x24] sm:$0xf]
        %v3020 = vld [vmem:[#allocation9 + $0x28] sm:$0xf]
        %v3021 = vld [vmem:[#allocation9 + $0x2c] sm:$0xf]
        %v3022 = vld [vmem:[#allocation9 + $0x30] sm:$0xf]
        %v3023 = vld [vmem:[#allocation9 + $0x34] sm:$0xf]
        %v3024 = vld [vmem:[#allocation9 + $0x38] sm:$0xf]
        %v3025 = vld [vmem:[#allocation9 + $0x3c] sm:$0xf]
        %v3026 = vld [vmem:[#allocation9 + $0x40] sm:$0xf]
        %v3027 = vld [vmem:[#allocation9 + $0x44] sm:$0xf]
        %v3028 = vld [vmem:[#allocation9 + $0x48] sm:$0xf]
        %v3029 = vld [vmem:[#allocation9 + $0x4c] sm:$0xf]
        %v3030 = vld [vmem:[#allocation9 + $0x50] sm:$0xf]
        %v3031 = vld [vmem:[#allocation9 + $0x54] sm:$0xf]
        %v3032 = vld [vmem:[#allocation9 + $0x58] sm:$0xf]
        %v3033 = vld [vmem:[#allocation9 + $0x5c] sm:$0xf]
        %v3034 = vld [vmem:[#allocation9 + $0x60] sm:$0xf]
        %v3035 = vld [vmem:[#allocation9 + $0x64] sm:$0xf]
        %v3036 = vld [vmem:[#allocation9 + $0x68] sm:$0xf]
        %v3037 = vld [vmem:[#allocation9 + $0x6c] sm:$0xf]
        %v3038 = vld [vmem:[#allocation9 + $0x70] sm:$0xf]
        %v3039 = vld [vmem:[#allocation9 + $0x74] sm:$0xf]
        %v3040 = vld [vmem:[#allocation9 + $0x78] sm:$0xf]
        %v3041 = vld [vmem:[#allocation9 + $0x7c] sm:$0xf]
        %v3042 = vld [vmem:[#allocation9 + $0x80] sm:$0xf]
        %v3043 = vld [vmem:[#allocation9 + $0x84] sm:$0xf]
        %v3044 = vld [vmem:[#allocation9 + $0x88] sm:$0xf]
        %v3045 = vld [vmem:[#allocation9 + $0x8c] sm:$0xf]
        %v3046 = vld [vmem:[#allocation9 + $0x90] sm:$0xf]
        %v3047 = vld [vmem:[#allocation9 + $0x94] sm:$0xf]
        %v3048 = vld [vmem:[#allocation9 + $0x98] sm:$0xf]
        %v3049 = vld [vmem:[#allocation9 + $0x9c] sm:$0xf]
        %v3050 = vld [vmem:[#allocation9 + $0xa0] sm:$0xf]
        %v3051 = vld [vmem:[#allocation9 + $0xa4] sm:$0xf]
        %v3052 = vld [vmem:[#allocation9 + $0xa8] sm:$0xf]
        %v3053 = vld [vmem:[#allocation9 + $0xac] sm:$0xf]
        %v3054 = vld [vmem:[#allocation9 + $0xb0] sm:$0xf]
        %v3055 = vld [vmem:[#allocation9 + $0xb4] sm:$0xf]
        %v3056 = vld [vmem:[#allocation9 + $0xb8] sm:$0xf]
        %v3057 = vld [vmem:[#allocation9 + $0xbc] sm:$0xf]
        %v3058 = vld [vmem:[#allocation9 + $0xc0] sm:$0xf]
        %v3059 = vld [vmem:[#allocation9 + $0xc4] sm:$0xf]
        %v3060 = vld [vmem:[#allocation9 + $0xc8] sm:$0xf]
        %v3061 = vld [vmem:[#allocation9 + $0xcc] sm:$0xf]
        %v3062 = vld [vmem:[#allocation9 + $0xd0] sm:$0xf]
        %v3063 = vld [vmem:[#allocation9 + $0xd4] sm:$0xf]
        %v3064 = vld [vmem:[#allocation9 + $0xd8] sm:$0xf]
        %v3065 = vld [vmem:[#allocation9 + $0xdc] sm:$0xf]
        %v3066 = vld [vmem:[#allocation9 + $0xe0] sm:$0xf]
        %v3067 = vld [vmem:[#allocation9 + $0xe4] sm:$0xf]
        %v3068 = vld [vmem:[#allocation9 + $0xe8] sm:$0xf]
        %v3069 = vld [vmem:[#allocation9 + $0xec] sm:$0xf]
        %v3070 = vld [vmem:[#allocation9 + $0xf0] sm:$0xf]
        %v3071 = vld [vmem:[#allocation9 + $0xf4] sm:$0xf]
        %v3072 = vld [vmem:[#allocation9 + $0xf8] sm:$0xf]
        %v3073 = vld [vmem:[#allocation9 + $0xfc] sm:$0xf]
        %v3074 = vld [vmem:[#allocation9 + $0x100] sm:$0xf]
        %v3075 = vld [vmem:[#allocation9 + $0x104] sm:$0xf]
        %v3076 = vld [vmem:[#allocation9 + $0x108] sm:$0xf]
        %v3077 = vld [vmem:[#allocation9 + $0x10c] sm:$0xf]
        %v3078 = vld [vmem:[#allocation9 + $0x110] sm:$0xf]
        %v3079 = vld [vmem:[#allocation9 + $0x114] sm:$0xf]
        %v3080 = vld [vmem:[#allocation9 + $0x118] sm:$0xf]
        %v3081 = vld [vmem:[#allocation9 + $0x11c] sm:$0xf]
        %v3082 = vld [vmem:[#allocation9 + $0x120] sm:$0xf]
        %v3083 = vld [vmem:[#allocation9 + $0x124] sm:$0xf]
        %v3084 = vld [vmem:[#allocation9 + $0x128] sm:$0xf]
        %v3085 = vld [vmem:[#allocation9 + $0x12c] sm:$0xf]
        %v3086 = vld [vmem:[#allocation9 + $0x130] sm:$0xf]
        %v3087 = vld [vmem:[#allocation9 + $0x134] sm:$0xf]
        %v3088 = vld [vmem:[#allocation9 + $0x138] sm:$0xf]
        %v3089 = vld [vmem:[#allocation9 + $0x13c] sm:$0xf]
        %v3090 = vld [vmem:[#allocation9 + $0x140] sm:$0xf]
        %v3091 = vld [vmem:[#allocation9 + $0x144] sm:$0xf]
        %v3092 = vld [vmem:[#allocation9 + $0x148] sm:$0xf]
        %v3093 = vld [vmem:[#allocation9 + $0x14c] sm:$0xf]
        %v3094 = vld [vmem:[#allocation9 + $0x150] sm:$0xf]
        %v3095 = vld [vmem:[#allocation9 + $0x154] sm:$0xf]
        %v3096 = vld [vmem:[#allocation9 + $0x158] sm:$0xf]
        %v3097 = vld [vmem:[#allocation9 + $0x15c] sm:$0xf]
        %v3098 = vld [vmem:[#allocation9 + $0x160] sm:$0xf]
        %v3099 = vld [vmem:[#allocation9 + $0x164] sm:$0xf]
        %v3100 = vld [vmem:[#allocation9 + $0x168] sm:$0xf]
        %v3101 = vld [vmem:[#allocation9 + $0x16c] sm:$0xf]
        %v3102 = vld [vmem:[#allocation9 + $0x170] sm:$0xf]
        %v3103 = vld [vmem:[#allocation9 + $0x174] sm:$0xf]
        %v3104 = vld [vmem:[#allocation9 + $0x178] sm:$0xf]
        %v3105 = vld [vmem:[#allocation9 + $0x17c] sm:$0xf]
        %v3106 = vld [vmem:[#allocation9 + $0x180] sm:$0xf]
        %v3107 = vld [vmem:[#allocation9 + $0x184] sm:$0xf]
        %v3108 = vld [vmem:[#allocation9 + $0x188] sm:$0xf]
        %v3109 = vld [vmem:[#allocation9 + $0x18c] sm:$0xf]
        %v3110 = vld [vmem:[#allocation9 + $0x190] sm:$0xf]
        %v3111 = vld [vmem:[#allocation9 + $0x194] sm:$0xf]
        %v3112 = vld [vmem:[#allocation9 + $0x198] sm:$0xf]
        %v3113 = vld [vmem:[#allocation9 + $0x19c] sm:$0xf]
        %v3114 = vld [vmem:[#allocation9 + $0x1a0] sm:$0xf]
        %v3115 = vld [vmem:[#allocation9 + $0x1a4] sm:$0xf]
        %v3116 = vld [vmem:[#allocation9 + $0x1a8] sm:$0xf]
        %v3117 = vld [vmem:[#allocation9 + $0x1ac] sm:$0xf]
        %v3118 = vld [vmem:[#allocation9 + $0x1b0] sm:$0xf]
        %v3119 = vld [vmem:[#allocation9 + $0x1b4] sm:$0xf]
        %v3120 = vld [vmem:[#allocation9 + $0x1b8] sm:$0xf]
        %v3121 = vld [vmem:[#allocation9 + $0x1bc] sm:$0xf]
        %v3122 = vld [vmem:[#allocation9 + $0x1c0] sm:$0xf]
        %v3123 = vld [vmem:[#allocation9 + $0x1c4] sm:$0xf]
        %v3124 = vld [vmem:[#allocation9 + $0x1c8] sm:$0xf]
        %v3125 = vld [vmem:[#allocation9 + $0x1cc] sm:$0xf]
        %v3126 = vld [vmem:[#allocation9 + $0x1d0] sm:$0xf]
        %v3127 = vld [vmem:[#allocation9 + $0x1d4] sm:$0xf]
        %v3128 = vld [vmem:[#allocation9 + $0x1d8] sm:$0xf]
        %v3129 = vld [vmem:[#allocation9 + $0x1dc] sm:$0xf]
        %v3130 = vld [vmem:[#allocation9 + $0x1e0] sm:$0xf]
        %v3131 = vld [vmem:[#allocation9 + $0x1e4] sm:$0xf]
        %v3132 = vld [vmem:[#allocation9 + $0x1e8] sm:$0xf]
        %v3133 = vld [vmem:[#allocation9 + $0x1ec] sm:$0xf]
        %v3134 = vld [vmem:[#allocation9 + $0x1f0] sm:$0xf]
        %v3135 = vld [vmem:[#allocation9 + $0x1f4] sm:$0xf]
        %v3136 = vld [vmem:[#allocation9 + $0x1f8] sm:$0xf]
        %v3137 = vld [vmem:[#allocation9 + $0x1fc] sm:$0xf]
        %v3138 = vld [vmem:[#allocation9 + $0x200] sm:$0xf]
        %v3139 = vld [vmem:[#allocation9 + $0x204] sm:$0xf]
        %v3140 = vld [vmem:[#allocation9 + $0x208] sm:$0xf]
        %v3141 = vld [vmem:[#allocation9 + $0x20c] sm:$0xf]
        %v3142 = vld [vmem:[#allocation9 + $0x210] sm:$0xf]
        %v3143 = vld [vmem:[#allocation9 + $0x214] sm:$0xf]
        %v3144 = vld [vmem:[#allocation9 + $0x218] sm:$0xf]
        %v3145 = vld [vmem:[#allocation9 + $0x21c] sm:$0xf]
        %v3146 = vld [vmem:[#allocation9 + $0x220] sm:$0xf]
        %v3147 = vld [vmem:[#allocation9 + $0x224] sm:$0xf]
        %v3148 = vld [vmem:[#allocation9 + $0x228] sm:$0xf]
        %v3149 = vld [vmem:[#allocation9 + $0x22c] sm:$0xf]
        %v3150 = vld [vmem:[#allocation9 + $0x230] sm:$0xf]
        %v3151 = vld [vmem:[#allocation9 + $0x234] sm:$0xf]
        %v3152 = vld [vmem:[#allocation9 + $0x238] sm:$0xf]
        %v3153 = vld [vmem:[#allocation9 + $0x23c] sm:$0xf]
        %v3154 = vld [vmem:[#allocation11] sm:$0x1]
        %v3156 = vlaneseq
        %v3157 = vshrl.u32 %v3156, 7
        %v3158 = vsub.s32 0, %v3157
        %v3159 = vrot.slane %v3154, %v3158
        %v3305 = vunpack.c.l.b16 %v3010
        %v3306 = vunpack.c.l.b16 %v3011
        %v3307 = vunpack.c.l.b16 %v3012
        %v3308 = vunpack.c.l.b16 %v3013
        %v3309 = vunpack.c.l.b16 %v3014
        %v3310 = vunpack.c.l.b16 %v3015
        %v3311 = vunpack.c.l.b16 %v3016
        %v3312 = vunpack.c.l.b16 %v3017
        %v3313 = vunpack.c.l.b16 %v3018
        %v3314 = vunpack.c.l.b16 %v3019
        %v3315 = vunpack.c.l.b16 %v3020
        %v3316 = vunpack.c.l.b16 %v3021
        %v3317 = vunpack.c.l.b16 %v3022
        %v3318 = vunpack.c.l.b16 %v3023
        %v3319 = vunpack.c.l.b16 %v3024
        %v3320 = vunpack.c.l.b16 %v3025
        %v3321 = vunpack.c.l.b16 %v3026
        %v3322 = vunpack.c.l.b16 %v3027
        %v3323 = vunpack.c.l.b16 %v3028
        %v3324 = vunpack.c.l.b16 %v3029
        %v3325 = vunpack.c.l.b16 %v3030
        %v3326 = vunpack.c.l.b16 %v3031
        %v3327 = vunpack.c.l.b16 %v3032
        %v3328 = vunpack.c.l.b16 %v3033
        %v3329 = vunpack.c.l.b16 %v3034
        %v3330 = vunpack.c.l.b16 %v3035
        %v3331 = vunpack.c.l.b16 %v3036
        %v3332 = vunpack.c.l.b16 %v3037
        %v3333 = vunpack.c.l.b16 %v3038
        %v3334 = vunpack.c.l.b16 %v3039
        %v3335 = vunpack.c.l.b16 %v3040
        %v3336 = vunpack.c.l.b16 %v3041
        %v3337 = vunpack.c.l.b16 %v3042
        %v3338 = vunpack.c.l.b16 %v3043
        %v3339 = vunpack.c.l.b16 %v3044
        %v3340 = vunpack.c.l.b16 %v3045
        %v3341 = vunpack.c.l.b16 %v3046
        %v3342 = vunpack.c.l.b16 %v3047
        %v3343 = vunpack.c.l.b16 %v3048
        %v3344 = vunpack.c.l.b16 %v3049
        %v3345 = vunpack.c.l.b16 %v3050
        %v3346 = vunpack.c.l.b16 %v3051
        %v3347 = vunpack.c.l.b16 %v3052
        %v3348 = vunpack.c.l.b16 %v3053
        %v3349 = vunpack.c.l.b16 %v3054
        %v3350 = vunpack.c.l.b16 %v3055
        %v3351 = vunpack.c.l.b16 %v3056
        %v3352 = vunpack.c.l.b16 %v3057
        %v3353 = vunpack.c.l.b16 %v3058
        %v3354 = vunpack.c.l.b16 %v3059
        %v3355 = vunpack.c.l.b16 %v3060
        %v3356 = vunpack.c.l.b16 %v3061
        %v3357 = vunpack.c.l.b16 %v3062
        %v3358 = vunpack.c.l.b16 %v3063
        %v3359 = vunpack.c.l.b16 %v3064
        %v3360 = vunpack.c.l.b16 %v3065
        %v3361 = vunpack.c.l.b16 %v3066
        %v3362 = vunpack.c.l.b16 %v3067
        %v3363 = vunpack.c.l.b16 %v3068
        %v3364 = vunpack.c.l.b16 %v3069
        %v3365 = vunpack.c.l.b16 %v3070
        %v3366 = vunpack.c.l.b16 %v3071
        %v3367 = vunpack.c.l.b16 %v3072
        %v3368 = vunpack.c.l.b16 %v3073
        %v3369 = vunpack.c.l.b16 %v3074
        %v3370 = vunpack.c.l.b16 %v3075
        %v3371 = vunpack.c.l.b16 %v3076
        %v3372 = vunpack.c.l.b16 %v3077
        %v3373 = vunpack.c.l.b16 %v3078
        %v3374 = vunpack.c.l.b16 %v3079
        %v3375 = vunpack.c.l.b16 %v3080
        %v3376 = vunpack.c.l.b16 %v3081
        %v3377 = vunpack.c.l.b16 %v3082
        %v3378 = vunpack.c.l.b16 %v3083
        %v3379 = vunpack.c.l.b16 %v3084
        %v3380 = vunpack.c.l.b16 %v3085
        %v3381 = vunpack.c.l.b16 %v3086
        %v3382 = vunpack.c.l.b16 %v3087
        %v3383 = vunpack.c.l.b16 %v3088
        %v3384 = vunpack.c.l.b16 %v3089
        %v3385 = vunpack.c.l.b16 %v3090
        %v3386 = vunpack.c.l.b16 %v3091
        %v3387 = vunpack.c.l.b16 %v3092
        %v3388 = vunpack.c.l.b16 %v3093
        %v3389 = vunpack.c.l.b16 %v3094
        %v3390 = vunpack.c.l.b16 %v3095
        %v3391 = vunpack.c.l.b16 %v3096
        %v3392 = vunpack.c.l.b16 %v3097
        %v3393 = vunpack.c.l.b16 %v3098
        %v3394 = vunpack.c.l.b16 %v3099
        %v3395 = vunpack.c.l.b16 %v3100
        %v3396 = vunpack.c.l.b16 %v3101
        %v3397 = vunpack.c.l.b16 %v3102
        %v3398 = vunpack.c.l.b16 %v3103
        %v3399 = vunpack.c.l.b16 %v3104
        %v3400 = vunpack.c.l.b16 %v3105
        %v3401 = vunpack.c.l.b16 %v3106
        %v3402 = vunpack.c.l.b16 %v3107
        %v3403 = vunpack.c.l.b16 %v3108
        %v3404 = vunpack.c.l.b16 %v3109
        %v3405 = vunpack.c.l.b16 %v3110
        %v3406 = vunpack.c.l.b16 %v3111
        %v3407 = vunpack.c.l.b16 %v3112
        %v3408 = vunpack.c.l.b16 %v3113
        %v3409 = vunpack.c.l.b16 %v3114
        %v3410 = vunpack.c.l.b16 %v3115
        %v3411 = vunpack.c.l.b16 %v3116
        %v3412 = vunpack.c.l.b16 %v3117
        %v3413 = vunpack.c.l.b16 %v3118
        %v3414 = vunpack.c.l.b16 %v3119
        %v3415 = vunpack.c.l.b16 %v3120
        %v3416 = vunpack.c.l.b16 %v3121
        %v3417 = vunpack.c.l.b16 %v3122
        %v3418 = vunpack.c.l.b16 %v3123
        %v3419 = vunpack.c.l.b16 %v3124
        %v3420 = vunpack.c.l.b16 %v3125
        %v3421 = vunpack.c.l.b16 %v3126
        %v3422 = vunpack.c.l.b16 %v3127
        %v3423 = vunpack.c.l.b16 %v3128
        %v3424 = vunpack.c.l.b16 %v3129
        %v3425 = vunpack.c.l.b16 %v3130
        %v3426 = vunpack.c.l.b16 %v3131
        %v3427 = vunpack.c.l.b16 %v3132
        %v3428 = vunpack.c.l.b16 %v3133
        %v3429 = vunpack.c.l.b16 %v3134
        %v3430 = vunpack.c.l.b16 %v3135
        %v3431 = vunpack.c.l.b16 %v3136
        %v3432 = vunpack.c.l.b16 %v3137
        %v3433 = vunpack.c.l.b16 %v3138
        %v3434 = vunpack.c.l.b16 %v3139
        %v3435 = vunpack.c.l.b16 %v3140
        %v3436 = vunpack.c.l.b16 %v3141
        %v3437 = vunpack.c.l.b16 %v3142
        %v3438 = vunpack.c.l.b16 %v3143
        %v3439 = vunpack.c.l.b16 %v3144
        %v3440 = vunpack.c.l.b16 %v3145
        %v3441 = vunpack.c.l.b16 %v3146
        %v3442 = vunpack.c.l.b16 %v3147
        %v3443 = vunpack.c.l.b16 %v3148
        %v3444 = vunpack.c.l.b16 %v3149
        %v3445 = vunpack.c.l.b16 %v3150
        %v3446 = vunpack.c.l.b16 %v3151
        %v3447 = vunpack.c.l.b16 %v3152
        %v3448 = vunpack.c.l.b16 %v3153
        %v3449 = vpack.c.b16 %v3306, %v3305
        %v3450 = vpack.c.b16 %v3308, %v3307
        %v3451 = vpack.c.b16 %v3310, %v3309
        %v3452 = vpack.c.b16 %v3312, %v3311
        %v3453 = vpack.c.b16 %v3314, %v3313
        %v3454 = vpack.c.b16 %v3316, %v3315
        %v3455 = vpack.c.b16 %v3318, %v3317
        %v3456 = vpack.c.b16 %v3320, %v3319
        %v3457 = vpack.c.b16 %v3322, %v3321
        %v3458 = vpack.c.b16 %v3324, %v3323
        %v3459 = vpack.c.b16 %v3326, %v3325
        %v3460 = vpack.c.b16 %v3328, %v3327
        %v3461 = vpack.c.b16 %v3330, %v3329
        %v3462 = vpack.c.b16 %v3332, %v3331
        %v3463 = vpack.c.b16 %v3334, %v3333
        %v3464 = vpack.c.b16 %v3336, %v3335
        %v3465 = vpack.c.b16 %v3338, %v3337
        %v3466 = vpack.c.b16 %v3340, %v3339
        %v3467 = vpack.c.b16 %v3342, %v3341
        %v3468 = vpack.c.b16 %v3344, %v3343
        %v3469 = vpack.c.b16 %v3346, %v3345
        %v3470 = vpack.c.b16 %v3348, %v3347
        %v3471 = vpack.c.b16 %v3350, %v3349
        %v3472 = vpack.c.b16 %v3352, %v3351
        %v3473 = vpack.c.b16 %v3354, %v3353
        %v3474 = vpack.c.b16 %v3356, %v3355
        %v3475 = vpack.c.b16 %v3358, %v3357
        %v3476 = vpack.c.b16 %v3360, %v3359
        %v3477 = vpack.c.b16 %v3362, %v3361
        %v3478 = vpack.c.b16 %v3364, %v3363
        %v3479 = vpack.c.b16 %v3366, %v3365
        %v3480 = vpack.c.b16 %v3368, %v3367
        %v3481 = vpack.c.b16 %v3370, %v3369
        %v3482 = vpack.c.b16 %v3372, %v3371
        %v3483 = vpack.c.b16 %v3374, %v3373
        %v3484 = vpack.c.b16 %v3376, %v3375
        %v3485 = vpack.c.b16 %v3378, %v3377
        %v3486 = vpack.c.b16 %v3380, %v3379
        %v3487 = vpack.c.b16 %v3382, %v3381
        %v3488 = vpack.c.b16 %v3384, %v3383
        %v3489 = vpack.c.b16 %v3386, %v3385
        %v3490 = vpack.c.b16 %v3388, %v3387
        %v3491 = vpack.c.b16 %v3390, %v3389
        %v3492 = vpack.c.b16 %v3392, %v3391
        %v3493 = vpack.c.b16 %v3394, %v3393
        %v3494 = vpack.c.b16 %v3396, %v3395
        %v3495 = vpack.c.b16 %v3398, %v3397
        %v3496 = vpack.c.b16 %v3400, %v3399
        %v3497 = vpack.c.b16 %v3402, %v3401
        %v3498 = vpack.c.b16 %v3404, %v3403
        %v3499 = vpack.c.b16 %v3406, %v3405
        %v3500 = vpack.c.b16 %v3408, %v3407
        %v3501 = vpack.c.b16 %v3410, %v3409
        %v3502 = vpack.c.b16 %v3412, %v3411
        %v3503 = vpack.c.b16 %v3414, %v3413
        %v3504 = vpack.c.b16 %v3416, %v3415
        %v3505 = vpack.c.b16 %v3418, %v3417
        %v3506 = vpack.c.b16 %v3420, %v3419
        %v3507 = vpack.c.b16 %v3422, %v3421
        %v3508 = vpack.c.b16 %v3424, %v3423
        %v3509 = vpack.c.b16 %v3426, %v3425
        %v3510 = vpack.c.b16 %v3428, %v3427
        %v3511 = vpack.c.b16 %v3430, %v3429
        %v3512 = vpack.c.b16 %v3432, %v3431
        %v3513 = vpack.c.b16 %v3434, %v3433
        %v3514 = vpack.c.b16 %v3436, %v3435
        %v3515 = vpack.c.b16 %v3438, %v3437
        %v3516 = vpack.c.b16 %v3440, %v3439
        %v3517 = vpack.c.b16 %v3442, %v3441
        %v3518 = vpack.c.b16 %v3444, %v3443
        %v3519 = vpack.c.b16 %v3446, %v3445
        %v3520 = vpack.c.b16 %v3448, %v3447
        %3593 = vmatprep.subr.bf16.mxu0 0
        %3594 = vmatpush1.bf16.msra.mxu0 %v3449
        %3595 = vmatprep.subr.bf16.mxu0 0
        %3596 = vmatpush1.bf16.msra.mxu0 %v3450
        %3597 = vmatprep.subr.bf16.mxu0 0
        %3598 = vmatpush1.bf16.msra.mxu0 %v3451
        %3599 = vmatprep.subr.bf16.mxu0 0
        %3600 = vmatpush1.bf16.msra.mxu0 %v3452
        %3601 = vmatprep.subr.bf16.mxu0 0
        %3602 = vmatpush1.bf16.msra.mxu0 %v3453
        %3603 = vmatprep.subr.bf16.mxu0 0
        %3604 = vmatpush1.bf16.msra.mxu0 %v3454
        %3605 = vmatprep.subr.bf16.mxu0 0
        %3606 = vmatpush1.bf16.msra.mxu0 %v3455
        %3607 = vmatprep.subr.bf16.mxu0 0
        %3608 = vmatpush1.bf16.msra.mxu0 %v3456
        %3609 = vmatprep.subr.bf16.mxu0 0
        %3610 = vmatpush1.bf16.msra.mxu0 %v3457
        %3611 = vmatprep.subr.bf16.mxu0 0
        %3612 = vmatpush1.bf16.msra.mxu0 %v3458
        %3613 = vmatprep.subr.bf16.mxu0 0
        %3614 = vmatpush1.bf16.msra.mxu0 %v3459
        %3615 = vmatprep.subr.bf16.mxu0 0
        %3616 = vmatpush1.bf16.msra.mxu0 %v3460
        %3617 = vmatprep.subr.bf16.mxu0 0
        %3618 = vmatpush1.bf16.msra.mxu0 %v3461
        %3619 = vmatprep.subr.bf16.mxu0 0
        %3620 = vmatpush1.bf16.msra.mxu0 %v3462
        %3621 = vmatprep.subr.bf16.mxu0 0
        %3622 = vmatpush1.bf16.msra.mxu0 %v3463
        %3623 = vmatprep.subr.bf16.mxu0 0
        %3624 = vmatpush1.bf16.msra.mxu0 %v3464
        %3625 = vmatprep.mubr.bf16.mxu0 %v2950
        %3626 = vmatmul.mubr.bf16.gmra.mrb[0].mxu0 %v2934
        %v3627 = vpop.f32.mrb[0].mxu0
        %v3628 = vadd.f32 %v3159, %v3627
        %v3629 = vpop.f32.mrb[0].mxu0
        %v3630 = vpop.f32.mrb[0].mxu0
        %v3631 = vadd.f32 %v3159, %v3630
        %v3632 = vpop.f32.mrb[0].mxu0
        %3633 = vmatprep.mubr.bf16.mxu0 %v2951
        %3634 = vmatmul.mubr.bf16.gmra.mrb[0].mxu0 %v2935
        %v3635 = vpop.f32.mrb[0].mxu0
        %v3636 = vadd.f32 %v3159, %v3635
        %v3637 = vpop.f32.mrb[0].mxu0
        %v3638 = vpop.f32.mrb[0].mxu0
        %v3639 = vadd.f32 %v3159, %v3638
        %v3640 = vpop.f32.mrb[0].mxu0
        %3641 = vmatprep.mubr.bf16.mxu0 %v2952
        %3642 = vmatmul.mubr.bf16.gmra.mrb[0].mxu0 %v2936
        %v3643 = vpop.f32.mrb[0].mxu0
        %v3644 = vadd.f32 %v3159, %v3643
        %v3645 = vpop.f32.mrb[0].mxu0
        %v3646 = vpop.f32.mrb[0].mxu0
        %v3647 = vadd.f32 %v3159, %v3646
        %v3648 = vpop.f32.mrb[0].mxu0
        %3649 = vmatprep.mubr.bf16.mxu0 %v2953
        %3650 = vmatmul.mubr.bf16.gmra.mrb[0].mxu0 %v2937
        %v3651 = vpop.f32.mrb[0].mxu0
        %v3652 = vadd.f32 %v3159, %v3651
        %v3653 = vpop.f32.mrb[0].mxu0
        %v3654 = vpop.f32.mrb[0].mxu0
        %v3655 = vadd.f32 %v3159, %v3654
        %v3656 = vpop.f32.mrb[0].mxu0
        %3657 = vdwg.mxu0
        %3658 = vmatprep.subr.bf16.mxu0 0
        %3659 = vmatpush1.bf16.msra.mxu0 %v3465
        %3660 = vmatprep.subr.bf16.mxu0 0
        %3661 = vmatpush1.bf16.msra.mxu0 %v3466
        %3662 = vmatprep.subr.bf16.mxu0 0
        %3663 = vmatpush1.bf16.msra.mxu0 %v3467
        %3664 = vmatprep.subr.bf16.mxu0 0
        %3665 = vmatpush1.bf16.msra.mxu0 %v3468
        %3666 = vmatprep.subr.bf16.mxu0 0
        %3667 = vmatpush1.bf16.msra.mxu0 %v3469
        %3668 = vmatprep.subr.bf16.mxu0 0
        %3669 = vmatpush1.bf16.msra.mxu0 %v3470
        %3670 = vmatprep.subr.bf16.mxu0 0
        %3671 = vmatpush1.bf16.msra.mxu0 %v3471
        %3672 = vmatprep.subr.bf16.mxu0 0
        %3673 = vmatpush1.bf16.msra.mxu0 %v3472
        %3674 = vmatprep.subr.bf16.mxu0 0
        %3675 = vmatpush1.bf16.msra.mxu0 %v3473
        %3676 = vmatprep.subr.bf16.mxu0 0
        %3677 = vmatpush1.bf16.msra.mxu0 %v3474
        %3678 = vmatprep.subr.bf16.mxu0 0
        %3679 = vmatpush1.bf16.msra.mxu0 %v3475
        %3680 = vmatprep.subr.bf16.mxu0 0
        %3681 = vmatpush1.bf16.msra.mxu0 %v3476
        %3682 = vmatprep.subr.bf16.mxu0 0
        %3683 = vmatpush1.bf16.msra.mxu0 %v3477
        %3684 = vmatprep.subr.bf16.mxu0 0
        %3685 = vmatpush1.bf16.msra.mxu0 %v3478
        %3686 = vmatprep.subr.bf16.mxu0 0
        %3687 = vmatpush1.bf16.msra.mxu0 %v3479
        %3688 = vmatprep.subr.bf16.mxu0 0
        %3689 = vmatpush1.bf16.msra.mxu0 %v3480
        %3690 = vmatprep.mubr.bf16.mxu0 %v2975
        %3691 = vmatmul.mubr.bf16.gmra.mrb[0].mxu0 %v2966
        %v3692 = vpop.f32.mrb[0].mxu0
        %v3693 = vadd.f32 %v3628, %v3692
        %v3694 = vpop.f32.mrb[0].mxu0
        %v3695 = vpop.f32.mrb[0].mxu0
        %v3696 = vadd.f32 %v3631, %v3695
        %v3697 = vpop.f32.mrb[0].mxu0
        %3698 = vmatprep.mubr.bf16.mxu0 %v2976
        %3699 = vmatmul.mubr.bf16.gmra.mrb[0].mxu0 %v2967
        %v3700 = vpop.f32.mrb[0].mxu0
        %v3701 = vadd.f32 %v3636, %v3700
        %v3702 = vpop.f32.mrb[0].mxu0
        %v3703 = vpop.f32.mrb[0].mxu0
        %v3704 = vadd.f32 %v3639, %v3703
        %v3705 = vpop.f32.mrb[0].mxu0
        %3706 = vmatprep.mubr.bf16.mxu0 %v2977
        %3707 = vmatmul.mubr.bf16.gmra.mrb[0].mxu0 %v2968
        %v3708 = vpop.f32.mrb[0].mxu0
        %v3709 = vadd.f32 %v3644, %v3708
        %v3710 = vpop.f32.mrb[0].mxu0
        %v3711 = vpop.f32.mrb[0].mxu0
        %v3712 = vadd.f32 %v3647, %v3711
        %v3713 = vpop.f32.mrb[0].mxu0
        %3714 = vmatprep.mubr.bf16.mxu0 %v2978
        %3715 = vmatmul.mubr.bf16.gmra.mrb[0].mxu0 %v2969
        %v3716 = vpop.f32.mrb[0].mxu0
        %v3717 = vadd.f32 %v3652, %v3716
        %v3718 = vpop.f32.mrb[0].mxu0
        %v3719 = vpop.f32.mrb[0].mxu0
        %v3720 = vadd.f32 %v3655, %v3719
        %v3721 = vpop.f32.mrb[0].mxu0
        %3722 = vdwg.mxu0
        %3723 = vmatprep.subr.bf16.mxu0 0
        %3724 = vmatpush1.bf16.msra.mxu0 %v3481
        %3725 = vmatprep.subr.bf16.mxu0 0
        %3726 = vmatpush1.bf16.msra.mxu0 %v3482
        %3727 = vmatprep.subr.bf16.mxu0 0
        %3728 = vmatpush1.bf16.msra.mxu0 %v3483
        %3729 = vmatprep.subr.bf16.mxu0 0
        %3730 = vmatpush1.bf16.msra.mxu0 %v3484
        %3731 = vmatprep.subr.bf16.mxu0 0
        %3732 = vmatpush1.bf16.msra.mxu0 %v3485
        %3733 = vmatprep.subr.bf16.mxu0 0
        %3734 = vmatpush1.bf16.msra.mxu0 %v3486
        %3735 = vmatprep.subr.bf16.mxu0 0
        %3736 = vmatpush1.bf16.msra.mxu0 %v3487
        %3737 = vmatprep.subr.bf16.mxu0 0
        %3738 = vmatpush1.bf16.msra.mxu0 %v3488
        %3739 = vmatprep.subr.bf16.mxu0 0
        %3740 = vmatpush1.bf16.msra.mxu0 %v3489
        %3741 = vmatprep.subr.bf16.mxu0 0
        %3742 = vmatpush1.bf16.msra.mxu0 %v3490
        %3743 = vmatprep.subr.bf16.mxu0 0
        %3744 = vmatpush1.bf16.msra.mxu0 %v3491
        %3745 = vmatprep.subr.bf16.mxu0 0
        %3746 = vmatpush1.bf16.msra.mxu0 %v3492
        %3747 = vmatprep.subr.bf16.mxu0 0
        %3748 = vmatpush1.bf16.msra.mxu0 %v3493
        %3749 = vmatprep.subr.bf16.mxu0 0
        %3750 = vmatpush1.bf16.msra.mxu0 %v3494
        %3751 = vmatprep.subr.bf16.mxu0 0
        %3752 = vmatpush1.bf16.msra.mxu0 %v3495
        %3753 = vmatprep.subr.bf16.mxu0 0
        %3754 = vmatpush1.bf16.msra.mxu0 %v3496
        %3755 = vmatprep.mubr.bf16.mxu0 %v2993
        %3756 = vmatmul.mubr.bf16.gmra.mrb[0].mxu0 %v2984
        %v3757 = vpop.f32.mrb[0].mxu0
        %v3758 = vadd.f32 %v3693, %v3757
        %v3759 = vpop.f32.mrb[0].mxu0
        %v3760 = vpop.f32.mrb[0].mxu0
        %v3761 = vadd.f32 %v3696, %v3760
        %v3762 = vpop.f32.mrb[0].mxu0
        %3763 = vmatprep.mubr.bf16.mxu0 %v2994
        %3764 = vmatmul.mubr.bf16.gmra.mrb[0].mxu0 %v2985
        %v3765 = vpop.f32.mrb[0].mxu0
        %v3766 = vadd.f32 %v3701, %v3765
        %v3767 = vpop.f32.mrb[0].mxu0
        %v3768 = vpop.f32.mrb[0].mxu0
        %v3769 = vadd.f32 %v3704, %v3768
        %v3770 = vpop.f32.mrb[0].mxu0
        %3771 = vmatprep.mubr.bf16.mxu0 %v2995
        %3772 = vmatmul.mubr.bf16.gmra.mrb[0].mxu0 %v2986
        %v3773 = vpop.f32.mrb[0].mxu0
        %v3774 = vadd.f32 %v3709, %v3773
        %v3775 = vpop.f32.mrb[0].mxu0
        %v3776 = vpop.f32.mrb[0].mxu0
        %v3777 = vadd.f32 %v3712, %v3776
        %v3778 = vpop.f32.mrb[0].mxu0
        %3779 = vmatprep.mubr.bf16.mxu0 %v2996
        %3780 = vmatmul.mubr.bf16.gmra.mrb[0].mxu0 %v2987
        %v3781 = vpop.f32.mrb[0].mxu0
        %v3782 = vadd.f32 %v3717, %v3781
        %v3783 = vpop.f32.mrb[0].mxu0
        %v3784 = vpop.f32.mrb[0].mxu0
        %v3785 = vadd.f32 %v3720, %v3784
        %v3786 = vpop.f32.mrb[0].mxu0
        %3787 = vdwg.mxu0
        %3788 = vmatprep.subr.bf16.mxu0 0
        %3789 = vmatpush1.bf16.msra.mxu0 %v3497
        %3790 = vmatprep.subr.bf16.mxu0 0
        %3791 = vmatpush1.bf16.msra.mxu0 %v3498
        %3792 = vmatprep.subr.bf16.mxu0 0
        %3793 = vmatpush1.bf16.msra.mxu0 %v3499
        %3794 = vmatprep.subr.bf16.mxu0 0
        %3795 = vmatpush1.bf16.msra.mxu0 %v3500
        %3796 = vmatprep.subr.bf16.mxu0 0
        %3797 = vmatpush1.bf16.msra.mxu0 %v3501
        %3798 = vmatprep.subr.bf16.mxu0 0
        %3799 = vmatpush1.bf16.msra.mxu0 %v3502
        %3800 = vmatprep.subr.bf16.mxu0 0
        %3801 = vmatpush1.bf16.msra.mxu0 %v3503
        %3802 = vmatprep.subr.bf16.mxu0 0
        %3803 = vmatpush1.bf16.msra.mxu0 %v3504
        %3804 = vmatprep.subr.bf16.mxu0 0
        %3805 = vmatpush1.bf16.msra.mxu0 %v3505
        %3806 = vmatprep.subr.bf16.mxu0 0
        %3807 = vmatpush1.bf16.msra.mxu0 %v3506
        %3808 = vmatprep.subr.bf16.mxu0 0
        %3809 = vmatpush1.bf16.msra.mxu0 %v3507
        %3810 = vmatprep.subr.bf16.mxu0 0
        %3811 = vmatpush1.bf16.msra.mxu0 %v3508
        %3812 = vmatprep.subr.bf16.mxu0 0
        %3813 = vmatpush1.bf16.msra.mxu0 %v3509
        %3814 = vmatprep.subr.bf16.mxu0 0
        %3815 = vmatpush1.bf16.msra.mxu0 %v3510
        %3816 = vmatprep.subr.bf16.mxu0 0
        %3817 = vmatpush1.bf16.msra.mxu0 %v3511
        %3818 = vmatprep.subr.bf16.mxu0 0
        %3819 = vmatpush1.bf16.msra.mxu0 %v3512
        %3820 = vmatprep.mubr.bf16.mxu0 %v2951
        %3821 = vmatmul.mubr.bf16.gmra.mrb[0].mxu0 %v2935
        %v3822 = vpop.f32.mrb[0].mxu0
        %v3823 = vadd.f32 %v3758, %v3822
        %v3824 = vpop.f32.mrb[0].mxu0
        %v3825 = vpop.f32.mrb[0].mxu0
        %v3826 = vadd.f32 %v3761, %v3825
        %v3827 = vpop.f32.mrb[0].mxu0
        %3828 = vmatprep.mubr.bf16.mxu0 %v2952
        %3829 = vmatmul.mubr.bf16.gmra.mrb[0].mxu0 %v2936
        %v3830 = vpop.f32.mrb[0].mxu0
        %v3831 = vadd.f32 %v3766, %v3830
        %v3832 = vpop.f32.mrb[0].mxu0
        %v3833 = vpop.f32.mrb[0].mxu0
        %v3834 = vadd.f32 %v3769, %v3833
        %v3835 = vpop.f32.mrb[0].mxu0
        %3836 = vmatprep.mubr.bf16.mxu0 %v2953
        %3837 = vmatmul.mubr.bf16.gmra.mrb[0].mxu0 %v2937
        %v3838 = vpop.f32.mrb[0].mxu0
        %v3839 = vadd.f32 %v3774, %v3838
        %v3840 = vpop.f32.mrb[0].mxu0
        %v3841 = vpop.f32.mrb[0].mxu0
        %v3842 = vadd.f32 %v3777, %v3841
        %v3843 = vpop.f32.mrb[0].mxu0
        %3844 = vmatprep.mubr.bf16.mxu0 %v3005
        %3845 = vmatmul.mubr.bf16.gmra.mrb[0].mxu0 %v3002
        %v3846 = vpop.f32.mrb[0].mxu0
        %v3847 = vadd.f32 %v3782, %v3846
        %v3848 = vpop.f32.mrb[0].mxu0
        %v3849 = vpop.f32.mrb[0].mxu0
        %v3850 = vadd.f32 %v3785, %v3849
        %v3851 = vpop.f32.mrb[0].mxu0
        %3852 = vdwg.mxu0
        %3853 = vmatprep.subr.bf16.mxu0 0
        %3854 = vmatpush1.bf16.msra.mxu0 %v3513
        %3855 = vmatprep.subr.bf16.mxu0 0
        %3856 = vmatpush1.bf16.msra.mxu0 %v3514
        %3857 = vmatprep.subr.bf16.mxu0 0
        %3858 = vmatpush1.bf16.msra.mxu0 %v3515
        %3859 = vmatprep.subr.bf16.mxu0 0
        %3860 = vmatpush1.bf16.msra.mxu0 %v3516
        %3861 = vmatprep.subr.bf16.mxu0 0
        %3862 = vmatpush1.bf16.msra.mxu0 %v3517
        %3863 = vmatprep.subr.bf16.mxu0 0
        %3864 = vmatpush1.bf16.msra.mxu0 %v3518
        %3865 = vmatprep.subr.bf16.mxu0 0
        %3866 = vmatpush1.bf16.msra.mxu0 %v3519
        %3867 = vmatprep.subr.bf16.mxu0 0
        %3868 = vmatpush1.bf16.msra.mxu0 %v3520
        %3869 = vmatprep.subr.bf16.mxu0 0
        %3870 = vmatpush1.bf16.msra.mxu0 0
        %3871 = vmatprep.subr.bf16.mxu0 0
        %3872 = vmatpush1.bf16.msra.mxu0 0
        %3873 = vmatprep.subr.bf16.mxu0 0
        %3874 = vmatpush1.bf16.msra.mxu0 0
        %3875 = vmatprep.subr.bf16.mxu0 0
        %3876 = vmatpush1.bf16.msra.mxu0 0
        %3877 = vmatprep.subr.bf16.mxu0 0
        %3878 = vmatpush1.bf16.msra.mxu0 0
        %3879 = vmatprep.subr.bf16.mxu0 0
        %3880 = vmatpush1.bf16.msra.mxu0 0
        %3881 = vmatprep.subr.bf16.mxu0 0
        %3882 = vmatpush1.bf16.msra.mxu0 0
        %3883 = vmatprep.subr.bf16.mxu0 0
        %3884 = vmatpush1.bf16.msra.mxu0 0
        %3885 = vmatprep.mubr.bf16.mxu0 0
        %3886 = vmatmul.mubr.bf16.gmra.mrb[0].mxu0 %v2967
        %v3887 = vpop.f32.mrb[0].mxu0
        %v3888 = vadd.f32 %v3823, %v3887
        %v3889 = vpop.f32.mrb[0].mxu0
        %v3890 = vpop.f32.mrb[0].mxu0
        %v3891 = vadd.f32 %v3826, %v3890
        %v3892 = vpop.f32.mrb[0].mxu0
        %3893 = vmatprep.mubr.bf16.mxu0 0
        %3894 = vmatmul.mubr.bf16.gmra.mrb[0].mxu0 %v2968
        %v3895 = vpop.f32.mrb[0].mxu0
        %v3896 = vadd.f32 %v3831, %v3895
        %v3897 = vpop.f32.mrb[0].mxu0
        %v3898 = vpop.f32.mrb[0].mxu0
        %v3899 = vadd.f32 %v3834, %v3898
        %v3900 = vpop.f32.mrb[0].mxu0
        %3901 = vmatprep.mubr.bf16.mxu0 0
        %3902 = vmatmul.mubr.bf16.gmra.mrb[0].mxu0 %v2969
        %v3903 = vpop.f32.mrb[0].mxu0
        %v3904 = vadd.f32 %v3839, %v3903
        %v3905 = vpop.f32.mrb[0].mxu0
        %v3906 = vpop.f32.mrb[0].mxu0
        %v3907 = vadd.f32 %v3842, %v3906
        %v3908 = vpop.f32.mrb[0].mxu0
        %3909 = vmatprep.mubr.bf16.mxu0 0
        %3910 = vmatmul.mubr.bf16.gmra.mrb[0].mxu0 %v3008
        %v3911 = vpop.f32.mrb[0].mxu0
        %v3912 = vadd.f32 %v3847, %v3911
        %v3913 = vpop.f32.mrb[0].mxu0
        %v3914 = vpop.f32.mrb[0].mxu0
        %v3915 = vadd.f32 %v3850, %v3914
        %v3916 = vpop.f32.mrb[0].mxu0
        %3917 = vdwg.mxu0
        %v3918 = vmax.f32 %v3888, 0.0
        %v3919 = vmax.f32 %v3891, 0.0
        %v3920 = vmax.f32 %v3896, 0.0
        %v3921 = vmax.f32 %v3899, 0.0
        %v3922 = vmax.f32 %v3904, 0.0
        %v3923 = vmax.f32 %v3907, 0.0
        %v3924 = vmax.f32 %v3912, 0.0
        %v3925 = vmax.f32 %v3915, 0.0
        %v3926 = vpack.c.bf16 %v3919, %v3918
        %v3927 = vpack.c.bf16 %v3921, %v3920
        %v3928 = vpack.c.bf16 %v3923, %v3922
        %v3929 = vpack.c.bf16 %v3925, %v3924
        %v3930 = vld [vmem:[#allocation12] sm:$0xf]
        %v3931 = vld [vmem:[#allocation12 + $0x4] sm:$0xf]
        %v3932 = vld [vmem:[#allocation12 + $0x8] sm:$0xf]
        %v3933 = vld [vmem:[#allocation12 + $0xc] sm:$0xf]
        %v3934 = vld [vmem:[#allocation12 + $0x10] sm:$0xf]
        %v3935 = vld [vmem:[#allocation12 + $0x14] sm:$0xf]
        %v3936 = vld [vmem:[#allocation12 + $0x18] sm:$0xf]
        %v3937 = vld [vmem:[#allocation12 + $0x1c] sm:$0xf]
        %v3938 = vld [vmem:[#allocation12 + $0x20] sm:$0xf]
        %v3939 = vld [vmem:[#allocation12 + $0x24] sm:$0xf]
        %v3940 = vld [vmem:[#allocation12 + $0x28] sm:$0xf]
        %v3941 = vld [vmem:[#allocation12 + $0x2c] sm:$0xf]
        %v3942 = vld [vmem:[#allocation12 + $0x30] sm:$0xf]
        %v3943 = vld [vmem:[#allocation12 + $0x34] sm:$0xf]
        %v3944 = vld [vmem:[#allocation12 + $0x38] sm:$0xf]
        %v3945 = vld [vmem:[#allocation12 + $0x3c] sm:$0xf]
        %v3946 = vld [vmem:[#allocation14] sm:$0x1]
        %v3948 = vlaneseq
        %v3949 = vshrl.u32 %v3948, 7
        %v3950 = vsub.s32 0, %v3949
        %v3951 = vrot.slane %v3946, %v3950
        %v3969 = vunpack.c.l.b16 %v3930
        %v3970 = vunpack.c.l.b16 %v3931
        %v3971 = vunpack.c.l.b16 %v3932
        %v3972 = vunpack.c.l.b16 %v3933
        %v3973 = vunpack.c.l.b16 %v3934
        %v3974 = vunpack.c.l.b16 %v3935
        %v3975 = vunpack.c.l.b16 %v3936
        %v3976 = vunpack.c.l.b16 %v3937
        %v3977 = vunpack.c.l.b16 %v3938
        %v3978 = vunpack.c.l.b16 %v3939
        %v3979 = vunpack.c.l.b16 %v3940
        %v3980 = vunpack.c.l.b16 %v3941
        %v3981 = vunpack.c.l.b16 %v3942
        %v3982 = vunpack.c.l.b16 %v3943
        %v3983 = vunpack.c.l.b16 %v3944
        %v3984 = vunpack.c.l.b16 %v3945
        %v3985 = vpack.c.b16 %v3970, %v3969
        %v3986 = vpack.c.b16 %v3972, %v3971
        %v3987 = vpack.c.b16 %v3974, %v3973
        %v3988 = vpack.c.b16 %v3976, %v3975
        %v3989 = vpack.c.b16 %v3978, %v3977
        %v3990 = vpack.c.b16 %v3980, %v3979
        %v3991 = vpack.c.b16 %v3982, %v3981
        %v3992 = vpack.c.b16 %v3984, %v3983
        %4001 = vmatprep.subr.bf16.mxu0 0
        %4002 = vmatpush1.bf16.msra.mxu0 %v3985
        %4003 = vmatprep.subr.bf16.mxu0 0
        %4004 = vmatpush1.bf16.msra.mxu0 %v3986
        %4005 = vmatprep.subr.bf16.mxu0 0
        %4006 = vmatpush1.bf16.msra.mxu0 %v3987
        %4007 = vmatprep.subr.bf16.mxu0 0
        %4008 = vmatpush1.bf16.msra.mxu0 %v3988
        %4009 = vmatprep.subr.bf16.mxu0 0
        %4010 = vmatpush1.bf16.msra.mxu0 %v3989
        %4011 = vmatprep.subr.bf16.mxu0 0
        %4012 = vmatpush1.bf16.msra.mxu0 %v3990
        %4013 = vmatprep.subr.bf16.mxu0 0
        %4014 = vmatpush1.bf16.msra.mxu0 %v3991
        %4015 = vmatprep.subr.bf16.mxu0 0
        %4016 = vmatpush1.bf16.msra.mxu0 %v3992
        %4017 = vmatprep.subr.bf16.mxu0 0
        %4018 = vmatpush1.bf16.msra.mxu0 0
        %4019 = vmatprep.subr.bf16.mxu0 0
        %4020 = vmatpush1.bf16.msra.mxu0 0
        %4021 = vmatprep.subr.bf16.mxu0 0
        %4022 = vmatpush1.bf16.msra.mxu0 0
        %4023 = vmatprep.subr.bf16.mxu0 0
        %4024 = vmatpush1.bf16.msra.mxu0 0
        %4025 = vmatprep.subr.bf16.mxu0 0
        %4026 = vmatpush1.bf16.msra.mxu0 0
        %4027 = vmatprep.subr.bf16.mxu0 0
        %4028 = vmatpush1.bf16.msra.mxu0 0
        %4029 = vmatprep.subr.bf16.mxu0 0
        %4030 = vmatpush1.bf16.msra.mxu0 0
        %4031 = vmatprep.subr.bf16.mxu0 0
        %4032 = vmatpush1.bf16.msra.mxu0 0
        %4033 = vmatprep.mubr.bf16.mxu0 0
        %4034 = vmatmul.mubr.bf16.gmra.mrb[0].mxu0 %v3926
        %v4035 = vpop.f32.mrb[0].mxu0
        %v4036 = vadd.f32 %v3951, %v4035
        %v4037 = vpop.f32.mrb[0].mxu0
        %v4038 = vpop.f32.mrb[0].mxu0
        %v4039 = vadd.f32 %v3951, %v4038
        %v4040 = vpop.f32.mrb[0].mxu0
        %4041 = vmatprep.mubr.bf16.mxu0 0
        %4042 = vmatmul.mubr.bf16.gmra.mrb[0].mxu0 %v3927
        %v4043 = vpop.f32.mrb[0].mxu0
        %v4044 = vadd.f32 %v3951, %v4043
        %v4045 = vpop.f32.mrb[0].mxu0
        %v4046 = vpop.f32.mrb[0].mxu0
        %v4047 = vadd.f32 %v3951, %v4046
        %v4048 = vpop.f32.mrb[0].mxu0
        %4049 = vmatprep.mubr.bf16.mxu0 0
        %4050 = vmatmul.mubr.bf16.gmra.mrb[0].mxu0 %v3928
        %v4051 = vpop.f32.mrb[0].mxu0
        %v4052 = vadd.f32 %v3951, %v4051
        %v4053 = vpop.f32.mrb[0].mxu0
        %v4054 = vpop.f32.mrb[0].mxu0
        %v4055 = vadd.f32 %v3951, %v4054
        %v4056 = vpop.f32.mrb[0].mxu0
        %4057 = vmatprep.mubr.bf16.mxu0 0
        %4058 = vmatmul.mubr.bf16.gmra.mrb[0].mxu0 %v3929
        %v4059 = vpop.f32.mrb[0].mxu0
        %v4060 = vadd.f32 %v3951, %v4059
        %v4061 = vpop.f32.mrb[0].mxu0
        %v4062 = vpop.f32.mrb[0].mxu0
        %v4063 = vadd.f32 %v3951, %v4062
        %v4064 = vpop.f32.mrb[0].mxu0
        %4065 = vdwg.mxu0
        %v4066 = vpack.c.bf16 %v4039, %v4036
        %v4067 = vpack.c.bf16 %v4047, %v4044
        %v4068 = vpack.c.bf16 %v4055, %v4052
        %v4069 = vpack.c.bf16 %v4063, %v4060
        %v4074 = vunpack.c.l.b16 %v4066
        %v4075 = vunpack.c.h.b16 %v4066
        %v4076 = vunpack.c.l.b16 %v4067
        %v4077 = vunpack.c.h.b16 %v4067
        %v4078 = vunpack.c.l.b16 %v4068
        %v4079 = vunpack.c.h.b16 %v4068
        %v4080 = vunpack.c.l.b16 %v4069
        %v4081 = vunpack.c.h.b16 %v4069
        %v4082 = vpack.c.b16 %v4074, %v4074
        %v4083 = vpack.c.b16 %v4075, %v4075
        %v4084 = vpack.c.b16 %v4076, %v4076
        %v4085 = vpack.c.b16 %v4077, %v4077
        %v4086 = vpack.c.b16 %v4078, %v4078
        %v4087 = vpack.c.b16 %v4079, %v4079
        %v4088 = vpack.c.b16 %v4080, %v4080
        %v4089 = vpack.c.b16 %v4081, %v4081
        %4098 = vst [vmem:[%s415] sm:$0xf] %v4082
        %4099 = vst [vmem:[%s415 + $0x4] sm:$0xf] %v4083
        %4100 = vst [vmem:[%s415 + $0x8] sm:$0xf] %v4084
        %4101 = vst [vmem:[%s415 + $0xc] sm:$0xf] %v4085
        %4102 = vst [vmem:[%s415 + $0x10] sm:$0xf] %v4086
        %4103 = vst [vmem:[%s415 + $0x14] sm:$0xf] %v4087
        %4104 = vst [vmem:[%s415 + $0x18] sm:$0xf] %v4088
        %4105 = vst [vmem:[%s415 + $0x1c] sm:$0xf] %v4089
        %s4106 = sand.u32 %s192, 1
        %s4107 = scalar_lea.sflag [#allocation5], %s4106
        %s4108 = sand.u32 %s192, 1
        %s4109 = smul.addr %s4108, 32
        %s4110 = scalar_lea.vmem [#allocation15], %s4109
        %s4111 = sand.u32 %s218, 1
        %s4112 = scalar_lea.sflag [#allocation17], %s4111
        %s4113 = sand.u32 %s218, 1
        %s4114 = smul.addr %s4113, 32
        %s4115 = scalar_lea.vmem [#allocation16], %s4114
        // Predicated region
        $region77: #{maskrcnn_forward.4} parent=47 // pred_check
          %p4116 = pneg %p202
        $region78: #{maskrcnn_forward.4} parent=47 // pred_check_branch
          %4118 = sbr.rel (%p4116) target = $region80
        $region79: #{maskrcnn_forward.4} parent=47 // pred_region
          %s4120 = ssub.s32 512, 512
          %4121 = vsyncadd %s4107, %s4120
          %s4122 = smul.addr %s32, 8
          %s4123 = smul.addr %s4122, 64
          %s4124 = scalar_lea.hbm %s7, %s4123
          %s4125 = sshll.u32 %s4110, 4
          %s4126 = int_to_ptr.vmem [resolvable:$true] %s4125
          %4131 = dma.vmem_to_hbm [thread:$0]  %s4126, 512, %s4124, %s4107, 64, 64, 4
        $region80: #{maskrcnn_forward.4} parent=47 // pred_fallthru
          _
        // Predicated region
        $region81: #{maskrcnn_forward.4} parent=47 // pred_check
          %p4132 = pneg %p228
        $region82: #{maskrcnn_forward.4} parent=47 // pred_check_branch
          %4134 = sbr.rel (%p4132) target = $region84
        $region83: #{maskrcnn_forward.4} parent=47 // pred_region
          %s4135 = smul.u32 8, %s32
          %s4137 = ssub.s32 512, 512
          %4138 = vsyncadd %s4112, %s4137
          %s4139 = smul.addr %s4135, 64
          %s4140 = scalar_lea.hbm %s8, %s4139
          %s4141 = sshll.u32 %s4115, 4
          %s4142 = int_to_ptr.vmem [resolvable:$true] %s4141
          %4147 = dma.vmem_to_hbm [thread:$0]  %s4142, 512, %s4140, %s4112, 64, 64, 4
        $region84: #{maskrcnn_forward.4} parent=47 // pred_fallthru
          _
      $region48: #{maskrcnn_forward.4} parent=5 // pred_fallthru
        _
      %p4148 = scmp.le.s32.totalorder 2, %s27
      // Predicated region
      $region85: #{maskrcnn_forward.4} parent=5 // pred_check
        %p4149 = pneg %p4148
      $region86: #{maskrcnn_forward.4} parent=5 // pred_check_branch
        %4151 = sbr.rel (%p4149) target = $region88
      $region87: #{maskrcnn_forward.4} parent=5 // pred_region
        %s4152 = ssub.s32 %s27, 2
        // Predicated region
        $region89: #{maskrcnn_forward.4} parent=87 // pred_check
          %p4153 = pneg %p208
        $region90: #{maskrcnn_forward.4} parent=87 // pred_check_branch
          %4155 = sbr.rel (%p4153) target = $region92
        $region91: #{maskrcnn_forward.4} parent=87 // pred_region
          %s4156 = sand.u32 %s193, 1
          %s4157 = scalar_lea.sflag [#allocation5], %s4156
          %s4158 = sand.u32 %s193, 1
          %s4159 = smul.addr %s4158, 32
          %s4160 = scalar_lea.vmem [#allocation15], %s4159
          %4161 = dma.done %s4157, 512
        $region92: #{maskrcnn_forward.4} parent=87 // pred_fallthru
          _
        // Predicated region
        $region93: #{maskrcnn_forward.4} parent=87 // pred_check
          %p4162 = pneg %p234
        $region94: #{maskrcnn_forward.4} parent=87 // pred_check_branch
          %4164 = sbr.rel (%p4162) target = $region96
        $region95: #{maskrcnn_forward.4} parent=87 // pred_region
          %s4165 = sand.u32 %s219, 1
          %s4166 = scalar_lea.sflag [#allocation17], %s4165
          %s4167 = sand.u32 %s219, 1
          %s4168 = smul.addr %s4167, 32
          %s4169 = scalar_lea.vmem [#allocation16], %s4168
          %4170 = dma.done %s4166, 512
        $region96: #{maskrcnn_forward.4} parent=87 // pred_fallthru
          _
      $region88: #{maskrcnn_forward.4} parent=5 // pred_fallthru
        _
    $region6: #{maskrcnn_forward.4} parent=1 // loop_footer
      %s31 = sadd.s32 1, %s27
    $region7: #{maskrcnn_forward.4} parent=1 // loop_footer_branch
      %26 = sbr.rel target = $region3
    $region8: #{maskrcnn_forward.4} parent=1 // loop_exit
      _
    %4171 = vsyncpa [#allocation4], 1
    %s4172 = scalar_lea.sflag [#allocation4], 1
    %4173 = vsyncpa %s4172, 1
    %4174 = vsyncpa [#allocation7], 1
    %4175 = vsyncpa [#allocation10], 1
    %4176 = vsyncpa [#allocation13], 1
    %4177 = vsyncpa [#allocation5], 1
    %s4178 = scalar_lea.sflag [#allocation5], 1
    %4179 = vsyncpa %s4178, 1
    %4180 = vsyncpa [#allocation17], 1
    %s4181 = scalar_lea.sflag [#allocation17], 1
    %4182 = vsyncpa %s4181, 1

// kernel: maskrcnn_forward.5
$region0: #{maskrcnn_forward.5}
  #allocation0 [shape = 'u32[]', space=smem, size = 0x4, offset = 0x4, fixed_abs, tag = 'smem constant byte address 0x4 - core index']
  #allocation1 [shape = 'u32[144,128]{1,0:T(1,128)}', space=vmem, size = 0x12000, scoped, tag = 'internal scratch']
  %s0 = inlined_call_operand.vmem [shape: bf16[32,128], index: 0, kind: input, shape index: {}]
  %s1 = inlined_call_operand.vmem [shape: bf16[128,256], index: 1, kind: input, shape index: {}]
  %s2 = inlined_call_operand.vmem [shape: f32[1,256], index: 2, kind: input, shape index: {}]
  %s3 = inlined_call_operand.vmem [shape: bf16[256,512], index: 3, kind: input, shape index: {}]
  %s4 = inlined_call_operand.vmem [shape: f32[1,512], index: 4, kind: input, shape index: {}]
  %s5 = inlined_call_operand.vmem [shape: f32[32,128], index: 5, kind: output, shape index: {0}]
  %s6 = inlined_call_operand.vmem [shape: f32[32,384], index: 6, kind: output, shape index: {1}]
  %7 = xla_tuple %s5, %s6
  %s8 = sld [smem:[#allocation0]]
  $region38: #{maskrcnn_forward.5} parent=0
    _
  %s10 = ssub.s32 1, %s8
  %s11 = scalar_select 0, %s10, %s8
  // Predicated region
  $region2: #{maskrcnn_forward.5} parent=0 // pred_check
    _
  $region3: #{maskrcnn_forward.5} parent=0 // pred_check_branch
    %13 = sbr.rel (0) target = $region5
  $region4: #{maskrcnn_forward.5} parent=0 // pred_region
    _
  $region5: #{maskrcnn_forward.5} parent=0 // pred_fallthru
    _
  // Predicated region
  $region6: #{maskrcnn_forward.5} parent=0 // pred_check
    _
  $region7: #{maskrcnn_forward.5} parent=0 // pred_check_branch
    %15 = sbr.rel (0) target = $region9
  $region8: #{maskrcnn_forward.5} parent=0 // pred_region
    _
  $region9: #{maskrcnn_forward.5} parent=0 // pred_fallthru
    _
  // Predicated region
  $region10: #{maskrcnn_forward.5} parent=0 // pred_check
    _
  $region11: #{maskrcnn_forward.5} parent=0 // pred_check_branch
    %17 = sbr.rel (0) target = $region13
  $region12: #{maskrcnn_forward.5} parent=0 // pred_region
    _
  $region13: #{maskrcnn_forward.5} parent=0 // pred_fallthru
    _
  // Predicated region
  $region14: #{maskrcnn_forward.5} parent=0 // pred_check
    _
  $region15: #{maskrcnn_forward.5} parent=0 // pred_check_branch
    %19 = sbr.rel (0) target = $region17
  $region16: #{maskrcnn_forward.5} parent=0 // pred_region
    _
  $region17: #{maskrcnn_forward.5} parent=0 // pred_fallthru
    _
  // Predicated region
  $region18: #{maskrcnn_forward.5} parent=0 // pred_check
    _
  $region19: #{maskrcnn_forward.5} parent=0 // pred_check_branch
    %21 = sbr.rel (0) target = $region21
  $region20: #{maskrcnn_forward.5} parent=0 // pred_region
    _
  $region21: #{maskrcnn_forward.5} parent=0 // pred_fallthru
    _
  %v23 = vld [vmem:[%s0] sm:$0xf]
  %v24 = vld [vmem:[%s0 + $0x4] sm:$0xf]
  %v25 = vld [vmem:[%s0 + $0x8] sm:$0xf]
  %v26 = vld [vmem:[%s0 + $0xc] sm:$0xf]
  %v27 = vld [vmem:[%s1] sm:$0xff]
  %v28 = vld [vmem:[%s1 + $0x8] sm:$0xff]
  %v29 = vld [vmem:[%s1 + $0x10] sm:$0xff]
  %v30 = vld [vmem:[%s1 + $0x18] sm:$0xff]
  %v31 = vld [vmem:[%s1 + $0x20] sm:$0xff]
  %v32 = vld [vmem:[%s1 + $0x28] sm:$0xff]
  %v33 = vld [vmem:[%s1 + $0x30] sm:$0xff]
  %v34 = vld [vmem:[%s1 + $0x38] sm:$0xff]
  %v35 = vld [vmem:[%s1 + $0x40] sm:$0xff]
  %v36 = vld [vmem:[%s1 + $0x48] sm:$0xff]
  %v37 = vld [vmem:[%s1 + $0x50] sm:$0xff]
  %v38 = vld [vmem:[%s1 + $0x58] sm:$0xff]
  %v39 = vld [vmem:[%s1 + $0x60] sm:$0xff]
  %v40 = vld [vmem:[%s1 + $0x68] sm:$0xff]
  %v41 = vld [vmem:[%s1 + $0x70] sm:$0xff]
  %v42 = vld [vmem:[%s1 + $0x78] sm:$0xff]
  %v43 = vld [vmem:[%s2] sm:$0x3]
  %v45 = vlaneseq
  %v46 = vshrl.u32 %v45, 7
  %v47 = vsub.s32 0, %v46
  %v48 = vrot.slane %v43, %v47
  %v49 = vlaneseq
  %v50 = vshrl.u32 %v49, 7
  %v51 = vsub.s32 1, %v50
  %v52 = vrot.slane %v43, %v51
  %v59 = vunpack.c.l.b16 %v23
  %v60 = vunpack.c.l.b16 %v24
  %v61 = vunpack.c.l.b16 %v25
  %v62 = vunpack.c.l.b16 %v26
  %v63 = vpack.c.b16 %v60, %v59
  %v64 = vpack.c.b16 %v62, %v61
  %v83 = vunpack.c.l.b16 %v27
  %v84 = vunpack.c.h.b16 %v27
  %v85 = vunpack.c.l.b16 %v28
  %v86 = vunpack.c.h.b16 %v28
  %v87 = vunpack.c.l.b16 %v29
  %v88 = vunpack.c.h.b16 %v29
  %v89 = vunpack.c.l.b16 %v30
  %v90 = vunpack.c.h.b16 %v30
  %v91 = vunpack.c.l.b16 %v31
  %v92 = vunpack.c.h.b16 %v31
  %v93 = vunpack.c.l.b16 %v32
  %v94 = vunpack.c.h.b16 %v32
  %v95 = vunpack.c.l.b16 %v33
  %v96 = vunpack.c.h.b16 %v33
  %v97 = vunpack.c.l.b16 %v34
  %v98 = vunpack.c.h.b16 %v34
  %v99 = vunpack.c.l.b16 %v35
  %v100 = vunpack.c.h.b16 %v35
  %v101 = vunpack.c.l.b16 %v36
  %v102 = vunpack.c.h.b16 %v36
  %v103 = vunpack.c.l.b16 %v37
  %v104 = vunpack.c.h.b16 %v37
  %v105 = vunpack.c.l.b16 %v38
  %v106 = vunpack.c.h.b16 %v38
  %v107 = vunpack.c.l.b16 %v39
  %v108 = vunpack.c.h.b16 %v39
  %v109 = vunpack.c.l.b16 %v40
  %v110 = vunpack.c.h.b16 %v40
  %v111 = vunpack.c.l.b16 %v41
  %v112 = vunpack.c.h.b16 %v41
  %v113 = vunpack.c.l.b16 %v42
  %v114 = vunpack.c.h.b16 %v42
  %v115 = vpack.c.b16 %v85, %v83
  %v116 = vpack.c.b16 %v86, %v84
  %v117 = vpack.c.b16 %v89, %v87
  %v118 = vpack.c.b16 %v90, %v88
  %v119 = vpack.c.b16 %v93, %v91
  %v120 = vpack.c.b16 %v94, %v92
  %v121 = vpack.c.b16 %v97, %v95
  %v122 = vpack.c.b16 %v98, %v96
  %v123 = vpack.c.b16 %v101, %v99
  %v124 = vpack.c.b16 %v102, %v100
  %v125 = vpack.c.b16 %v105, %v103
  %v126 = vpack.c.b16 %v106, %v104
  %v127 = vpack.c.b16 %v109, %v107
  %v128 = vpack.c.b16 %v110, %v108
  %v129 = vpack.c.b16 %v113, %v111
  %v130 = vpack.c.b16 %v114, %v112
  %147 = vmatprep.subr.bf16.mxu0 %v116
  %148 = vmatpush1.bf16.msra.mxu0 %v115
  %149 = vmatprep.subr.bf16.mxu0 %v118
  %150 = vmatpush1.bf16.msra.mxu0 %v117
  %151 = vmatprep.subr.bf16.mxu0 %v120
  %152 = vmatpush1.bf16.msra.mxu0 %v119
  %153 = vmatprep.subr.bf16.mxu0 %v122
  %154 = vmatpush1.bf16.msra.mxu0 %v121
  %155 = vmatprep.subr.bf16.mxu0 %v124
  %156 = vmatpush1.bf16.msra.mxu0 %v123
  %157 = vmatprep.subr.bf16.mxu0 %v126
  %158 = vmatpush1.bf16.msra.mxu0 %v125
  %159 = vmatprep.subr.bf16.mxu0 %v128
  %160 = vmatpush1.bf16.msra.mxu0 %v127
  %161 = vmatprep.subr.bf16.mxu0 %v130
  %162 = vmatpush1.bf16.msra.mxu0 %v129
  %163 = vmatprep.subr.bf16.mxu0 0
  %164 = vmatpush1.bf16.msra.mxu0 0
  %165 = vmatprep.subr.bf16.mxu0 0
  %166 = vmatpush1.bf16.msra.mxu0 0
  %167 = vmatprep.subr.bf16.mxu0 0
  %168 = vmatpush1.bf16.msra.mxu0 0
  %169 = vmatprep.subr.bf16.mxu0 0
  %170 = vmatpush1.bf16.msra.mxu0 0
  %171 = vmatprep.subr.bf16.mxu0 0
  %172 = vmatpush1.bf16.msra.mxu0 0
  %173 = vmatprep.subr.bf16.mxu0 0
  %174 = vmatpush1.bf16.msra.mxu0 0
  %175 = vmatprep.subr.bf16.mxu0 0
  %176 = vmatpush1.bf16.msra.mxu0 0
  %177 = vmatprep.subr.bf16.mxu0 0
  %178 = vmatpush1.bf16.msra.mxu0 0
  %179 = vmatprep.mubr.bf16.mxu0 0
  %180 = vmatmul.mubr.bf16.gmra.mrb[0].mxu0 %v63
  %v181 = vpop.f32.mrb[0].mxu0
  %v182 = vadd.f32 %v48, %v181
  %v183 = vpop.f32.mrb[0].mxu0
  %v184 = vadd.f32 %v52, %v183
  %v185 = vpop.f32.mrb[0].mxu0
  %v186 = vadd.f32 %v48, %v185
  %v187 = vpop.f32.mrb[0].mxu0
  %v188 = vadd.f32 %v52, %v187
  %189 = vmatprep.mubr.bf16.mxu0 0
  %190 = vmatmul.mubr.bf16.gmra.mrb[0].mxu0 %v64
  %v191 = vpop.f32.mrb[0].mxu0
  %v192 = vadd.f32 %v48, %v191
  %v193 = vpop.f32.mrb[0].mxu0
  %v194 = vadd.f32 %v52, %v193
  %v195 = vpop.f32.mrb[0].mxu0
  %v196 = vadd.f32 %v48, %v195
  %v197 = vpop.f32.mrb[0].mxu0
  %v198 = vadd.f32 %v52, %v197
  %199 = vdwg.mxu0
  %v200 = vmax.f32 %v182, 0.0
  %v201 = vmax.f32 %v184, 0.0
  %v202 = vmax.f32 %v186, 0.0
  %v203 = vmax.f32 %v188, 0.0
  %v204 = vmax.f32 %v192, 0.0
  %v205 = vmax.f32 %v194, 0.0
  %v206 = vmax.f32 %v196, 0.0
  %v207 = vmax.f32 %v198, 0.0
  %v208 = vpack.c.bf16 %v202, %v200
  %v209 = vpack.c.bf16 %v203, %v201
  %v210 = vpack.c.bf16 %v206, %v204
  %v211 = vpack.c.bf16 %v207, %v205
  %v212 = vld [vmem:[%s3] sm:$0xff]
  %v213 = vld [vmem:[%s3 + $0x8] sm:$0xff]
  %v214 = vld [vmem:[%s3 + $0x10] sm:$0xff]
  %v215 = vld [vmem:[%s3 + $0x18] sm:$0xff]
  %v216 = vld [vmem:[%s3 + $0x20] sm:$0xff]
  %v217 = vld [vmem:[%s3 + $0x28] sm:$0xff]
  %v218 = vld [vmem:[%s3 + $0x30] sm:$0xff]
  %v219 = vld [vmem:[%s3 + $0x38] sm:$0xff]
  %v220 = vld [vmem:[%s3 + $0x40] sm:$0xff]
  %v221 = vld [vmem:[%s3 + $0x48] sm:$0xff]
  %v222 = vld [vmem:[%s3 + $0x50] sm:$0xff]
  %v223 = vld [vmem:[%s3 + $0x58] sm:$0xff]
  %v224 = vld [vmem:[%s3 + $0x60] sm:$0xff]
  %v225 = vld [vmem:[%s3 + $0x68] sm:$0xff]
  %v226 = vld [vmem:[%s3 + $0x70] sm:$0xff]
  %v227 = vld [vmem:[%s3 + $0x78] sm:$0xff]
  %v228 = vld [vmem:[%s3 + $0x80] sm:$0xff]
  %v229 = vld [vmem:[%s3 + $0x88] sm:$0xff]
  %v230 = vld [vmem:[%s3 + $0x90] sm:$0xff]
  %v231 = vld [vmem:[%s3 + $0x98] sm:$0xff]
  %v232 = vld [vmem:[%s3 + $0xa0] sm:$0xff]
  %v233 = vld [vmem:[%s3 + $0xa8] sm:$0xff]
  %v234 = vld [vmem:[%s3 + $0xb0] sm:$0xff]
  %v235 = vld [vmem:[%s3 + $0xb8] sm:$0xff]
  %v236 = vld [vmem:[%s3 + $0xc0] sm:$0xff]
  %v237 = vld [vmem:[%s3 + $0xc8] sm:$0xff]
  %v238 = vld [vmem:[%s3 + $0xd0] sm:$0xff]
  %v239 = vld [vmem:[%s3 + $0xd8] sm:$0xff]
  %v240 = vld [vmem:[%s3 + $0xe0] sm:$0xff]
  %v241 = vld [vmem:[%s3 + $0xe8] sm:$0xff]
  %v242 = vld [vmem:[%s3 + $0xf0] sm:$0xff]
  %v243 = vld [vmem:[%s3 + $0xf8] sm:$0xff]
  %v244 = vld [vmem:[%s3 + $0x100] sm:$0xff]
  %v245 = vld [vmem:[%s3 + $0x108] sm:$0xff]
  %v246 = vld [vmem:[%s3 + $0x110] sm:$0xff]
  %v247 = vld [vmem:[%s3 + $0x118] sm:$0xff]
  %v248 = vld [vmem:[%s3 + $0x120] sm:$0xff]
  %v249 = vld [vmem:[%s3 + $0x128] sm:$0xff]
  %v250 = vld [vmem:[%s3 + $0x130] sm:$0xff]
  %v251 = vld [vmem:[%s3 + $0x138] sm:$0xff]
  %v252 = vld [vmem:[%s3 + $0x140] sm:$0xff]
  %v253 = vld [vmem:[%s3 + $0x148] sm:$0xff]
  %v254 = vld [vmem:[%s3 + $0x150] sm:$0xff]
  %v255 = vld [vmem:[%s3 + $0x158] sm:$0xff]
  %v256 = vld [vmem:[%s3 + $0x160] sm:$0xff]
  %v257 = vld [vmem:[%s3 + $0x168] sm:$0xff]
  %v258 = vld [vmem:[%s3 + $0x170] sm:$0xff]
  %v259 = vld [vmem:[%s3 + $0x178] sm:$0xff]
  %v260 = vld [vmem:[%s3 + $0x180] sm:$0xff]
  %v261 = vld [vmem:[%s3 + $0x188] sm:$0xff]
  %v262 = vld [vmem:[%s3 + $0x190] sm:$0xff]
  %v263 = vld [vmem:[%s3 + $0x198] sm:$0xff]
  %v264 = vld [vmem:[%s3 + $0x1a0] sm:$0xff]
  %v265 = vld [vmem:[%s3 + $0x1a8] sm:$0xff]
  %v266 = vld [vmem:[%s3 + $0x1b0] sm:$0xff]
  %v267 = vld [vmem:[%s3 + $0x1b8] sm:$0xff]
  %v268 = vld [vmem:[%s3 + $0x1c0] sm:$0xff]
  %v269 = vld [vmem:[%s3 + $0x1c8] sm:$0xff]
  %v270 = vld [vmem:[%s3 + $0x1d0] sm:$0xff]
  %v271 = vld [vmem:[%s3 + $0x1d8] sm:$0xff]
  %v272 = vld [vmem:[%s3 + $0x1e0] sm:$0xff]
  %v273 = vld [vmem:[%s3 + $0x1e8] sm:$0xff]
  %v274 = vld [vmem:[%s3 + $0x1f0] sm:$0xff]
  %v275 = vld [vmem:[%s3 + $0x1f8] sm:$0xff]
  %v276 = vld [vmem:[%s4] sm:$0xf]
  %v278 = vlaneseq
  %v279 = vshrl.u32 %v278, 7
  %v280 = vsub.s32 0, %v279
  %v281 = vrot.slane %v276, %v280
  %v282 = vlaneseq
  %v283 = vshrl.u32 %v282, 7
  %v284 = vsub.s32 1, %v283
  %v285 = vrot.slane %v276, %v284
  %v286 = vlaneseq
  %v287 = vshrl.u32 %v286, 7
  %v288 = vsub.s32 2, %v287
  %v289 = vrot.slane %v276, %v288
  %v290 = vlaneseq
  %v291 = vshrl.u32 %v290, 7
  %v292 = vsub.s32 3, %v291
  %v293 = vrot.slane %v276, %v292
  %v362 = vunpack.c.l.b16 %v212
  %v363 = vunpack.c.h.b16 %v212
  %v364 = vunpack.c.l.b16 %v213
  %v365 = vunpack.c.h.b16 %v213
  %v366 = vunpack.c.l.b16 %v214
  %v367 = vunpack.c.h.b16 %v214
  %v368 = vunpack.c.l.b16 %v215
  %v369 = vunpack.c.h.b16 %v215
  %v370 = vunpack.c.l.b16 %v216
  %v371 = vunpack.c.h.b16 %v216
  %v372 = vunpack.c.l.b16 %v217
  %v373 = vunpack.c.h.b16 %v217
  %v374 = vunpack.c.l.b16 %v218
  %v375 = vunpack.c.h.b16 %v218
  %v376 = vunpack.c.l.b16 %v219
  %v377 = vunpack.c.h.b16 %v219
  %v378 = vunpack.c.l.b16 %v220
  %v379 = vunpack.c.h.b16 %v220
  %v380 = vunpack.c.l.b16 %v221
  %v381 = vunpack.c.h.b16 %v221
  %v382 = vunpack.c.l.b16 %v222
  %v383 = vunpack.c.h.b16 %v222
  %v384 = vunpack.c.l.b16 %v223
  %v385 = vunpack.c.h.b16 %v223
  %v386 = vunpack.c.l.b16 %v224
  %v387 = vunpack.c.h.b16 %v224
  %v388 = vunpack.c.l.b16 %v225
  %v389 = vunpack.c.h.b16 %v225
  %v390 = vunpack.c.l.b16 %v226
  %v391 = vunpack.c.h.b16 %v226
  %v392 = vunpack.c.l.b16 %v227
  %v393 = vunpack.c.h.b16 %v227
  %v394 = vunpack.c.l.b16 %v228
  %v395 = vunpack.c.h.b16 %v228
  %v396 = vunpack.c.l.b16 %v229
  %v397 = vunpack.c.h.b16 %v229
  %v398 = vunpack.c.l.b16 %v230
  %v399 = vunpack.c.h.b16 %v230
  %v400 = vunpack.c.l.b16 %v231
  %v401 = vunpack.c.h.b16 %v231
  %v402 = vunpack.c.l.b16 %v232
  %v403 = vunpack.c.h.b16 %v232
  %v404 = vunpack.c.l.b16 %v233
  %v405 = vunpack.c.h.b16 %v233
  %v406 = vunpack.c.l.b16 %v234
  %v407 = vunpack.c.h.b16 %v234
  %v408 = vunpack.c.l.b16 %v235
  %v409 = vunpack.c.h.b16 %v235
  %v410 = vunpack.c.l.b16 %v236
  %v411 = vunpack.c.h.b16 %v236
  %v412 = vunpack.c.l.b16 %v237
  %v413 = vunpack.c.h.b16 %v237
  %v414 = vunpack.c.l.b16 %v238
  %v415 = vunpack.c.h.b16 %v238
  %v416 = vunpack.c.l.b16 %v239
  %v417 = vunpack.c.h.b16 %v239
  %v418 = vunpack.c.l.b16 %v240
  %v419 = vunpack.c.h.b16 %v240
  %v420 = vunpack.c.l.b16 %v241
  %v421 = vunpack.c.h.b16 %v241
  %v422 = vunpack.c.l.b16 %v242
  %v423 = vunpack.c.h.b16 %v242
  %v424 = vunpack.c.l.b16 %v243
  %v425 = vunpack.c.h.b16 %v243
  %v426 = vunpack.c.l.b16 %v244
  %v427 = vunpack.c.h.b16 %v244
  %v428 = vunpack.c.l.b16 %v245
  %v429 = vunpack.c.h.b16 %v245
  %v430 = vunpack.c.l.b16 %v246
  %v431 = vunpack.c.h.b16 %v246
  %v432 = vunpack.c.l.b16 %v247
  %v433 = vunpack.c.h.b16 %v247
  %v434 = vunpack.c.l.b16 %v248
  %v435 = vunpack.c.h.b16 %v248
  %v436 = vunpack.c.l.b16 %v249
  %v437 = vunpack.c.h.b16 %v249
  %v438 = vunpack.c.l.b16 %v250
  %v439 = vunpack.c.h.b16 %v250
  %v440 = vunpack.c.l.b16 %v251
  %v441 = vunpack.c.h.b16 %v251
  %v442 = vunpack.c.l.b16 %v252
  %v443 = vunpack.c.h.b16 %v252
  %v444 = vunpack.c.l.b16 %v253
  %v445 = vunpack.c.h.b16 %v253
  %v446 = vunpack.c.l.b16 %v254
  %v447 = vunpack.c.h.b16 %v254
  %v448 = vunpack.c.l.b16 %v255
  %v449 = vunpack.c.h.b16 %v255
  %v450 = vunpack.c.l.b16 %v256
  %v451 = vunpack.c.h.b16 %v256
  %v452 = vunpack.c.l.b16 %v257
  %v453 = vunpack.c.h.b16 %v257
  %v454 = vunpack.c.l.b16 %v258
  %v455 = vunpack.c.h.b16 %v258
  %v456 = vunpack.c.l.b16 %v259
  %v457 = vunpack.c.h.b16 %v259
  %v458 = vunpack.c.l.b16 %v260
  %v459 = vunpack.c.h.b16 %v260
  %v460 = vunpack.c.l.b16 %v261
  %v461 = vunpack.c.h.b16 %v261
  %v462 = vunpack.c.l.b16 %v262
  %v463 = vunpack.c.h.b16 %v262
  %v464 = vunpack.c.l.b16 %v263
  %v465 = vunpack.c.h.b16 %v263
  %v466 = vunpack.c.l.b16 %v264
  %v467 = vunpack.c.h.b16 %v264
  %v468 = vunpack.c.l.b16 %v265
  %v469 = vunpack.c.h.b16 %v265
  %v470 = vunpack.c.l.b16 %v266
  %v471 = vunpack.c.h.b16 %v266
  %v472 = vunpack.c.l.b16 %v267
  %v473 = vunpack.c.h.b16 %v267
  %v474 = vunpack.c.l.b16 %v268
  %v475 = vunpack.c.h.b16 %v268
  %v476 = vunpack.c.l.b16 %v269
  %v477 = vunpack.c.h.b16 %v269
  %v478 = vunpack.c.l.b16 %v270
  %v479 = vunpack.c.h.b16 %v270
  %v480 = vunpack.c.l.b16 %v271
  %v481 = vunpack.c.h.b16 %v271
  %v482 = vunpack.c.l.b16 %v272
  %v483 = vunpack.c.h.b16 %v272
  %v484 = vunpack.c.l.b16 %v273
  %v485 = vunpack.c.h.b16 %v273
  %v486 = vunpack.c.l.b16 %v274
  %v487 = vunpack.c.h.b16 %v274
  %v488 = vunpack.c.l.b16 %v275
  %v489 = vunpack.c.h.b16 %v275
  %v490 = vpack.c.b16 %v366, %v362
  %v491 = vpack.c.b16 %v367, %v363
  %v492 = vpack.c.b16 %v368, %v364
  %v493 = vpack.c.b16 %v369, %v365
  %v494 = vpack.c.b16 %v374, %v370
  %v495 = vpack.c.b16 %v375, %v371
  %v496 = vpack.c.b16 %v376, %v372
  %v497 = vpack.c.b16 %v377, %v373
  %v498 = vpack.c.b16 %v382, %v378
  %v499 = vpack.c.b16 %v383, %v379
  %v500 = vpack.c.b16 %v384, %v380
  %v501 = vpack.c.b16 %v385, %v381
  %v502 = vpack.c.b16 %v390, %v386
  %v503 = vpack.c.b16 %v391, %v387
  %v504 = vpack.c.b16 %v392, %v388
  %v505 = vpack.c.b16 %v393, %v389
  %v506 = vpack.c.b16 %v398, %v394
  %v507 = vpack.c.b16 %v399, %v395
  %v508 = vpack.c.b16 %v400, %v396
  %v509 = vpack.c.b16 %v401, %v397
  %v510 = vpack.c.b16 %v406, %v402
  %v511 = vpack.c.b16 %v407, %v403
  %v512 = vpack.c.b16 %v408, %v404
  %v513 = vpack.c.b16 %v409, %v405
  %v514 = vpack.c.b16 %v414, %v410
  %v515 = vpack.c.b16 %v415, %v411
  %v516 = vpack.c.b16 %v416, %v412
  %v517 = vpack.c.b16 %v417, %v413
  %v518 = vpack.c.b16 %v422, %v418
  %v519 = vpack.c.b16 %v423, %v419
  %v520 = vpack.c.b16 %v424, %v420
  %v521 = vpack.c.b16 %v425, %v421
  %v522 = vpack.c.b16 %v430, %v426
  %v523 = vpack.c.b16 %v431, %v427
  %v524 = vpack.c.b16 %v432, %v428
  %v525 = vpack.c.b16 %v433, %v429
  %v526 = vpack.c.b16 %v438, %v434
  %v527 = vpack.c.b16 %v439, %v435
  %v528 = vpack.c.b16 %v440, %v436
  %v529 = vpack.c.b16 %v441, %v437
  %v530 = vpack.c.b16 %v446, %v442
  %v531 = vpack.c.b16 %v447, %v443
  %v532 = vpack.c.b16 %v448, %v444
  %v533 = vpack.c.b16 %v449, %v445
  %v534 = vpack.c.b16 %v454, %v450
  %v535 = vpack.c.b16 %v455, %v451
  %v536 = vpack.c.b16 %v456, %v452
  %v537 = vpack.c.b16 %v457, %v453
  %v538 = vpack.c.b16 %v462, %v458
  %v539 = vpack.c.b16 %v463, %v459
  %v540 = vpack.c.b16 %v464, %v460
  %v541 = vpack.c.b16 %v465, %v461
  %v542 = vpack.c.b16 %v470, %v466
  %v543 = vpack.c.b16 %v471, %v467
  %v544 = vpack.c.b16 %v472, %v468
  %v545 = vpack.c.b16 %v473, %v469
  %v546 = vpack.c.b16 %v478, %v474
  %v547 = vpack.c.b16 %v479, %v475
  %v548 = vpack.c.b16 %v480, %v476
  %v549 = vpack.c.b16 %v481, %v477
  %v550 = vpack.c.b16 %v486, %v482
  %v551 = vpack.c.b16 %v487, %v483
  %v552 = vpack.c.b16 %v488, %v484
  %v553 = vpack.c.b16 %v489, %v485
  %618 = vmatprep.subr.bf16.mxu0 %v491
  %619 = vmatpush1.bf16.msra.mxu0 %v490
  %620 = vmatprep.subr.bf16.mxu0 %v495
  %621 = vmatpush1.bf16.msra.mxu0 %v494
  %622 = vmatprep.subr.bf16.mxu0 %v499
  %623 = vmatpush1.bf16.msra.mxu0 %v498
  %624 = vmatprep.subr.bf16.mxu0 %v503
  %625 = vmatpush1.bf16.msra.mxu0 %v502
  %626 = vmatprep.subr.bf16.mxu0 %v507
  %627 = vmatpush1.bf16.msra.mxu0 %v506
  %628 = vmatprep.subr.bf16.mxu0 %v511
  %629 = vmatpush1.bf16.msra.mxu0 %v510
  %630 = vmatprep.subr.bf16.mxu0 %v515
  %631 = vmatpush1.bf16.msra.mxu0 %v514
  %632 = vmatprep.subr.bf16.mxu0 %v519
  %633 = vmatpush1.bf16.msra.mxu0 %v518
  %634 = vmatprep.subr.bf16.mxu0 %v523
  %635 = vmatpush1.bf16.msra.mxu0 %v522
  %636 = vmatprep.subr.bf16.mxu0 %v527
  %637 = vmatpush1.bf16.msra.mxu0 %v526
  %638 = vmatprep.subr.bf16.mxu0 %v531
  %639 = vmatpush1.bf16.msra.mxu0 %v530
  %640 = vmatprep.subr.bf16.mxu0 %v535
  %641 = vmatpush1.bf16.msra.mxu0 %v534
  %642 = vmatprep.subr.bf16.mxu0 %v539
  %643 = vmatpush1.bf16.msra.mxu0 %v538
  %644 = vmatprep.subr.bf16.mxu0 %v543
  %645 = vmatpush1.bf16.msra.mxu0 %v542
  %646 = vmatprep.subr.bf16.mxu0 %v547
  %647 = vmatpush1.bf16.msra.mxu0 %v546
  %648 = vmatprep.subr.bf16.mxu0 %v551
  %649 = vmatpush1.bf16.msra.mxu0 %v550
  %650 = vmatprep.mubr.bf16.mxu0 %v209
  %651 = vmatmul.mubr.bf16.gmra.mrb[0].mxu0 %v208
  %v652 = vpop.f32.mrb[0].mxu0
  %v653 = vadd.f32 %v281, %v652
  %v654 = vpop.f32.mrb[0].mxu0
  %v655 = vadd.f32 %v285, %v654
  %v656 = vpop.f32.mrb[0].mxu0
  %v657 = vadd.f32 %v281, %v656
  %v658 = vpop.f32.mrb[0].mxu0
  %v659 = vadd.f32 %v285, %v658
  %660 = vmatprep.mubr.bf16.mxu0 %v211
  %661 = vmatmul.mubr.bf16.gmra.mrb[0].mxu0 %v210
  %v662 = vpop.f32.mrb[0].mxu0
  %v663 = vadd.f32 %v281, %v662
  %v664 = vpop.f32.mrb[0].mxu0
  %v665 = vadd.f32 %v285, %v664
  %v666 = vpop.f32.mrb[0].mxu0
  %v667 = vadd.f32 %v281, %v666
  %v668 = vpop.f32.mrb[0].mxu0
  %v669 = vadd.f32 %v285, %v668
  %670 = vdwg.mxu0
  %671 = vmatprep.subr.bf16.mxu0 %v493
  %672 = vmatpush1.bf16.msra.mxu0 %v492
  %673 = vmatprep.subr.bf16.mxu0 %v497
  %674 = vmatpush1.bf16.msra.mxu0 %v496
  %675 = vmatprep.subr.bf16.mxu0 %v501
  %676 = vmatpush1.bf16.msra.mxu0 %v500
  %677 = vmatprep.subr.bf16.mxu0 %v505
  %678 = vmatpush1.bf16.msra.mxu0 %v504
  %679 = vmatprep.subr.bf16.mxu0 %v509
  %680 = vmatpush1.bf16.msra.mxu0 %v508
  %681 = vmatprep.subr.bf16.mxu0 %v513
  %682 = vmatpush1.bf16.msra.mxu0 %v512
  %683 = vmatprep.subr.bf16.mxu0 %v517
  %684 = vmatpush1.bf16.msra.mxu0 %v516
  %685 = vmatprep.subr.bf16.mxu0 %v521
  %686 = vmatpush1.bf16.msra.mxu0 %v520
  %687 = vmatprep.subr.bf16.mxu0 %v525
  %688 = vmatpush1.bf16.msra.mxu0 %v524
  %689 = vmatprep.subr.bf16.mxu0 %v529
  %690 = vmatpush1.bf16.msra.mxu0 %v528
  %691 = vmatprep.subr.bf16.mxu0 %v533
  %692 = vmatpush1.bf16.msra.mxu0 %v532
  %693 = vmatprep.subr.bf16.mxu0 %v537
  %694 = vmatpush1.bf16.msra.mxu0 %v536
  %695 = vmatprep.subr.bf16.mxu0 %v541
  %696 = vmatpush1.bf16.msra.mxu0 %v540
  %697 = vmatprep.subr.bf16.mxu0 %v545
  %698 = vmatpush1.bf16.msra.mxu0 %v544
  %699 = vmatprep.subr.bf16.mxu0 %v549
  %700 = vmatpush1.bf16.msra.mxu0 %v548
  %701 = vmatprep.subr.bf16.mxu0 %v553
  %702 = vmatpush1.bf16.msra.mxu0 %v552
  %703 = vmatprep.mubr.bf16.mxu0 %v209
  %704 = vmatmul.mubr.bf16.gmra.mrb[0].mxu0 %v208
  %v705 = vpop.f32.mrb[0].mxu0
  %v706 = vadd.f32 %v289, %v705
  %v707 = vpop.f32.mrb[0].mxu0
  %v708 = vadd.f32 %v293, %v707
  %v709 = vpop.f32.mrb[0].mxu0
  %v710 = vadd.f32 %v289, %v709
  %v711 = vpop.f32.mrb[0].mxu0
  %v712 = vadd.f32 %v293, %v711
  %713 = vmatprep.mubr.bf16.mxu0 %v211
  %714 = vmatmul.mubr.bf16.gmra.mrb[0].mxu0 %v210
  %v715 = vpop.f32.mrb[0].mxu0
  %v716 = vadd.f32 %v289, %v715
  %v717 = vpop.f32.mrb[0].mxu0
  %v718 = vadd.f32 %v293, %v717
  %v719 = vpop.f32.mrb[0].mxu0
  %v720 = vadd.f32 %v289, %v719
  %v721 = vpop.f32.mrb[0].mxu0
  %v722 = vadd.f32 %v293, %v721
  %723 = vdwg.mxu0
  %724 = vmax.xlane.f32.xlu0 %v653
  %v725 = vpop.xlane.xlu0 %724
  %726 = vmax.xlane.f32.xlu0 %v657
  %v727 = vpop.xlane.xlu0 %726
  %728 = vmax.xlane.f32.xlu0 %v663
  %v729 = vpop.xlane.xlu0 %728
  %730 = vmax.xlane.f32.xlu0 %v667
  %v731 = vpop.xlane.xlu0 %730
  %v732 = vsub.f32 %v653, %v725
  %v733 = vsub.f32 %v657, %v727
  %v734 = vsub.f32 %v663, %v729
  %v735 = vsub.f32 %v667, %v731
  %v736 = vmul.f32 %v732, 1.442695
  %v737 = vpow.pop %v736
  %v738 = vmul.f32 %v733, 1.442695
  %v739 = vpow.pop %v738
  %v740 = vmul.f32 %v734, 1.442695
  %v741 = vpow.pop %v740
  %v742 = vmul.f32 %v735, 1.442695
  %v743 = vpow.pop %v742
  %744 = vadd.xlane.f32.xlu0 %v737
  %v745 = vpop.xlane.xlu0 %744
  %746 = vadd.xlane.f32.xlu0 %v739
  %v747 = vpop.xlane.xlu0 %746
  %748 = vadd.xlane.f32.xlu0 %v741
  %v749 = vpop.xlane.xlu0 %748
  %750 = vadd.xlane.f32.xlu0 %v743
  %v751 = vpop.xlane.xlu0 %750
  %v752 = vrcp.pop %v745
  %v753 = vmul.f32 %v737, %v752
  %v754 = vrcp.pop %v747
  %v755 = vmul.f32 %v739, %v754
  %v756 = vrcp.pop %v749
  %v757 = vmul.f32 %v741, %v756
  %v758 = vrcp.pop %v751
  %v759 = vmul.f32 %v743, %v758
  %760 = vst [vmem:[%s5] sm:$0xff] %v753
  %761 = vst [vmem:[%s5 + $0x8] sm:$0xff] %v755
  %762 = vst [vmem:[%s5 + $0x10] sm:$0xff] %v757
  %763 = vst [vmem:[%s5 + $0x18] sm:$0xff] %v759
  %764 = vst [vmem:[%s6] sm:$0xff] %v655
  %765 = vst [vmem:[%s6 + $0x8] sm:$0xff] %v706
  %766 = vst [vmem:[%s6 + $0x10] sm:$0xff] %v708
  %767 = vst [vmem:[%s6 + $0x18] sm:$0xff] %v659
  %768 = vst [vmem:[%s6 + $0x20] sm:$0xff] %v710
  %769 = vst [vmem:[%s6 + $0x28] sm:$0xff] %v712
  %770 = vst [vmem:[%s6 + $0x30] sm:$0xff] %v665
  %771 = vst [vmem:[%s6 + $0x38] sm:$0xff] %v716
  %772 = vst [vmem:[%s6 + $0x40] sm:$0xff] %v718
  %773 = vst [vmem:[%s6 + $0x48] sm:$0xff] %v669
  %774 = vst [vmem:[%s6 + $0x50] sm:$0xff] %v720
  %775 = vst [vmem:[%s6 + $0x58] sm:$0xff] %v722
  // Predicated region
  $region22: #{maskrcnn_forward.5} parent=0 // pred_check
    _
  $region23: #{maskrcnn_forward.5} parent=0 // pred_check_branch
    %777 = sbr.rel (0) target = $region25
  $region24: #{maskrcnn_forward.5} parent=0 // pred_region
    _
  $region25: #{maskrcnn_forward.5} parent=0 // pred_fallthru
    _
  // Predicated region
  $region26: #{maskrcnn_forward.5} parent=0 // pred_check
    _
  $region27: #{maskrcnn_forward.5} parent=0 // pred_check_branch
    %779 = sbr.rel (0) target = $region29
  $region28: #{maskrcnn_forward.5} parent=0 // pred_region
    _
  $region29: #{maskrcnn_forward.5} parent=0 // pred_fallthru
    _
  // Predicated region
  $region30: #{maskrcnn_forward.5} parent=0 // pred_check
    _
  $region31: #{maskrcnn_forward.5} parent=0 // pred_check_branch
    %781 = sbr.rel (0) target = $region33
  $region32: #{maskrcnn_forward.5} parent=0 // pred_region
    _
  $region33: #{maskrcnn_forward.5} parent=0 // pred_fallthru
    _
  // Predicated region
  $region34: #{maskrcnn_forward.5} parent=0 // pred_check
    _
  $region35: #{maskrcnn_forward.5} parent=0 // pred_check_branch
    %783 = sbr.rel (0) target = $region37
  $region36: #{maskrcnn_forward.5} parent=0 // pred_region
    _
  $region37: #{maskrcnn_forward.5} parent=0 // pred_fallthru
    _

</llo_original>
